<compile_context>
chip_gen: v6e
topology: v6e:2x2x1
jax: 0.10.0
libtpu: 0.0.40
codegen_flags: <defaults>
</compile_context>

<pallas_src>
import functools
import math

import jax
import jax.numpy as jnp
from jax import lax
from jax.experimental import pallas as pl
from jax.experimental.pallas import tpu as pltpu


def _round_up(n, m):
    return ((n + m - 1) // m) * m


def _pad_to(a, shape):
    pads = tuple((0, t - s) for s, t in zip(a.shape, shape))
    if any(p[1] for p in pads):
        return jnp.pad(a, pads)
    return a


def _plan_time_chunk(seq_len, b_tile, input_size, h_pad, mm_bytes, budget_bytes):
    """Pick the time-chunk length from a VMEM budget.

    Sized against worst-case double-buffered constants so the plan stays valid
    even if the Buffered(1) request is not honored by the running JAX build.
    """
    const_bytes = 2 * ((input_size * h_pad + h_pad * h_pad) * mm_bytes  # W_in, W_hh
                       + h_pad * 4                                      # folded bias (f32)
                       + b_tile * h_pad * 4)                            # h0 (f32)
    const_bytes += b_tile * h_pad * 4                                   # hidden carrier scratch
    per_step = 2 * b_tile * (input_size * mm_bytes + h_pad * 4)         # x + out blocks, 2x buffered
    avail = budget_bytes - const_bytes
    t_chunk = 1 if avail < per_step else min(int(avail // per_step), 512)
    t_chunk = max(1, min(t_chunk, seq_len))
    needed = const_bytes + per_step * t_chunk
    return t_chunk, needed


def _ctrnn_kernel(x_ref, h0_ref, w_in_ref, bias_ref, w_hh_ref, *rest,
                  alpha, t_chunk, noise_scale, unroll):
    """One grid step = one (batch-block, time-chunk) tile of the recurrence.

    x_ref:    (t_chunk, b_tile, input_size)   inputs for this chunk
    h0_ref:   (b_tile, h_pad)                 initial hidden (constant over chunks)
    w_in_ref: (input_size, h_pad)             input weights (constant)
    bias_ref: (1, h_pad)                      b_in + b_hh folded (constant, f32)
    w_hh_ref: (h_pad, h_pad)                  recurrent weights (constant)
    [seed_ref]: (1,) int32 in SMEM            only when noise_scale > 0
    out_ref:  (t_chunk, b_tile, h_pad)        per-chunk output slab (f32)
    h_ref:    (b_tile, h_pad) VMEM scratch    hidden carrier, persists across chunks
    """
    if noise_scale > 0.0:
        seed_ref, out_ref, h_ref = rest
    else:
        out_ref, h_ref = rest

    c = pl.program_id(1)  # time-chunk index (serial / "arbitrary" axis)

    @pl.when(c == 0)
    def _():
        h_ref[...] = h0_ref[...].astype(jnp.float32)

    if noise_scale > 0.0:
        # Independent stream per (batch-block, chunk); draws differ from torch.
        pltpu.prng_seed(seed_ref[0], pl.program_id(0), c)

    a = jnp.float32(alpha)
    one_m_a = jnp.float32(1.0 - alpha)
    mm_dtype = w_hh_ref.dtype

    def step(t, h):
        if noise_scale > 0.0:
            h = h + jnp.float32(noise_scale) * pltpu.stateful_normal(
                h.shape, jnp.float32)
        # Per-step input projection: independent of h, so under the partial
        # unroll it fills MXU slots left idle by the serial h @ W_hh chain.
        xp = jnp.dot(x_ref[t], w_in_ref[...],
                     preferred_element_type=jnp.float32)
        rec = jnp.dot(h.astype(mm_dtype), w_hh_ref[...],
                      preferred_element_type=jnp.float32)
        h_new = jnp.maximum(xp + rec + bias_ref[...], 0.0)        # relu
        h_next = h * one_m_a + h_new * a
        out_ref[t] = h_next                                       # lane-dense store
        return h_next

    h_ref[...] = lax.fori_loop(0, t_chunk, step, h_ref[...], unroll=unroll)


def ctrnn_forward(x, h0, w_in_t, b_in, w_hh_t, b_hh, *, alpha,
                  rnn_std=0.0, noise_seed=0,
                  param_dtype=jnp.float32, num_batch_blocks=1,
                  vmem_budget_bytes=None, unroll=8):
    """CTRNN forward over the full sequence with a Pallas TPU kernel.

    Args:
      x:       (seq_len, batch, input_size) f32
      h0:      (batch, hidden_size) f32 initial hidden
      w_in_t:  (input_size, hidden_size)  -- transpose of torch Linear weight
      b_in:    (1, hidden_size)
      w_hh_t:  (hidden_size, hidden_size) -- transpose of torch Linear weight
      b_hh:    (1, hidden_size)
      alpha:   dt / tau (python float)
      rnn_std: recurrent noise std (0 => deterministic; >0 uses TPU HW PRNG)
      param_dtype: matmul operand dtype (f32 default; bf16 halves w_hh VMEM and
                   MXU work, accumulation stays f32 -- validate tolerances)
      num_batch_blocks: leading "parallel" grid axis; set 2 on v7x (2 TCs/chip)
      vmem_budget_bytes: VMEM budget for chunk planning (None = auto from chip)
      unroll: inner-loop unroll factor (bounded, keeps temporaries in vregs)

    Returns:
      output (seq_len, batch, hidden_size) f32, hidden (batch, hidden_size) f32
    """
    seq_len, batch, input_size = x.shape
    hidden_size = w_in_t.shape[1]
    assert num_batch_blocks >= 1

    if seq_len == 0:
        return (jnp.zeros((0, batch, hidden_size), jnp.float32),
                h0.astype(jnp.float32))

    # Sublane-dense batch tile per batch block, lane-dense hidden.
    b_tile = _round_up(-(-batch // num_batch_blocks), 8)
    b_pad = b_tile * num_batch_blocks
    h_pad = _round_up(hidden_size, 128)
    mm_bytes = jnp.dtype(param_dtype).itemsize

    # Generation-aware VMEM planning (v5e/v6e: 128 MiB phys, v7x: 64 MiB).
    try:
        vmem_cap = int(pltpu.get_tpu_info().vmem_capacity_bytes)
    except Exception:
        vmem_cap = 64 * 2**20  # v7x-safe default
    if vmem_budget_bytes is None:
        vmem_budget_bytes = (55 * vmem_cap) // 100
    t_chunk, needed = _plan_time_chunk(seq_len, b_tile, input_size, h_pad,
                                       mm_bytes, int(vmem_budget_bytes))
    num_chunks = (seq_len + t_chunk - 1) // t_chunk
    seq_pad = num_chunks * t_chunk
    vmem_limit = max(32 * 2**20, min(needed + 8 * 2**20, (9 * vmem_cap) // 10))

    noise_scale = 0.0
    if rnn_std > 0.0:
        noise_scale = float(rnn_std) * math.sqrt(2.0 / float(alpha))

    # Zero-pad only when needed (padded hidden columns provably stay zero; the
    # padded batch rows / padded trailing timesteps compute garbage that never
    # feeds real rows and is sliced off below).
    x_k = _pad_to(x.astype(param_dtype), (seq_pad, b_pad, input_size))
    h0_p = _pad_to(h0.astype(jnp.float32), (b_pad, h_pad))
    w_in_p = _pad_to(w_in_t, (input_size, h_pad)).astype(param_dtype)
    bias_p = _pad_to((b_in + b_hh).astype(jnp.float32), (1, h_pad))
    w_hh_p = _pad_to(w_hh_t, (h_pad, h_pad)).astype(param_dtype)

    kernel = functools.partial(
        _ctrnn_kernel, alpha=float(alpha), t_chunk=t_chunk,
        noise_scale=noise_scale, unroll=min(int(unroll), t_chunk))

    args = [x_k, h0_p, w_in_p, bias_p, w_hh_p]
    if noise_scale > 0.0:
        args.append(jnp.asarray([noise_seed], dtype=jnp.int32))

    def _run(single_buffer_consts):
        def const_spec(shape, index_map):
            # Constants are never re-fetched along the chunk axis -> 1 buffer.
            if single_buffer_consts:
                return pl.BlockSpec(shape, index_map,
                                    pipeline_mode=pl.Buffered(1))
            return pl.BlockSpec(shape, index_map)

        in_specs = [
            # one (batch-block, time-chunk) tile of inputs per grid step
            pl.BlockSpec((t_chunk, b_tile, input_size), lambda b, c: (c, b, 0)),
            const_spec((b_tile, h_pad), lambda b, c: (b, 0)),
            const_spec((input_size, h_pad), lambda b, c: (0, 0)),
            const_spec((1, h_pad), lambda b, c: (0, 0)),
            const_spec((h_pad, h_pad), lambda b, c: (0, 0)),
        ]
        if noise_scale > 0.0:
            in_specs.append(pl.BlockSpec(memory_space=pltpu.MemorySpace.SMEM))

        grid_spec = pltpu.PrefetchScalarGridSpec(
            num_scalar_prefetch=0,
            grid=(num_batch_blocks, num_chunks),
            in_specs=in_specs,
            # lane-dense output slab (h_pad multiple of 128, b_tile multiple of 8)
            out_specs=pl.BlockSpec((t_chunk, b_tile, h_pad),
                                   lambda b, c: (c, b, 0)),
            # hidden carrier: persists across grid steps, re-init at c == 0
            scratch_shapes=[pltpu.VMEM((b_tile, h_pad), jnp.float32)],
        )
        return pl.pallas_call(
            kernel,
            out_shape=jax.ShapeDtypeStruct((seq_pad, b_pad, h_pad), jnp.float32),
            grid_spec=grid_spec,
            compiler_params=pltpu.CompilerParams(
                # batch-block axis is independent (megacore on v7x); the time
                # recurrence is inherently serial.
                dimension_semantics=("parallel", "arbitrary"),
                vmem_limit_bytes=int(vmem_limit)),
        )(*args)

    try:
        out3 = _run(True)
    except Exception:
        # Older JAX builds may reject pipeline_mode=pl.Buffered(1); fall back to
        # default double-buffered constants (identical semantics).
        out3 = _run(False)

    output = out3[:seq_len, :batch, :hidden_size]
    hidden = output[seq_len - 1]   # == final hidden by construction
    return output, hidden


def ctrnn_reference(x, h0, w_in_t, b_in, w_hh_t, b_hh, *, alpha):
    """Pure-JAX reference mirroring the PyTorch forward (rnn_std == 0)."""
    def step(h, x_t):
        h_new = jax.nn.relu(x_t @ w_in_t + b_in + h @ w_hh_t + b_hh)
        h = h * (1.0 - alpha) + h_new * alpha
        return h, h
    h_final, outs = jax.lax.scan(step, h0, x)
    return outs, h_final


if __name__ == "__main__":
    # Small, module-consistent shapes.
    seq_len, batch, input_size, hidden_size = 8, 4, 8, 32
    dt, tau = 10, 100
    alpha = dt / tau

    key = jax.random.PRNGKey(0)
    k_x, k_win, k_bin, k_whh, k_bhh, k_x2 = jax.random.split(key, 6)

    # PyTorch-Linear-style uniform(-1/sqrt(fan_in), 1/sqrt(fan_in)) init,
    # stored already transposed: (in_features, out_features).
    bound_in = 1.0 / (input_size ** 0.5)
    bound_hh = 1.0 / (hidden_size ** 0.5)
    w_in_t = jax.random.uniform(k_win, (input_size, hidden_size),
                                jnp.float32, -bound_in, bound_in)
    b_in = jax.random.uniform(k_bin, (1, hidden_size),
                              jnp.float32, -bound_in, bound_in)
    w_hh_t = jax.random.uniform(k_whh, (hidden_size, hidden_size),
                                jnp.float32, -bound_hh, bound_hh)
    b_hh = jax.random.uniform(k_bhh, (1, hidden_size),
                              jnp.float32, -bound_hh, bound_hh)

    x = jax.random.normal(k_x, (seq_len, batch, input_size), jnp.float32)
    h0 = jnp.zeros((batch, hidden_size), jnp.float32)  # init_hidden()

    # --- config A: default planning (single chunk here) ----------------------
    output, hidden = ctrnn_forward(x, h0, w_in_t, b_in, w_hh_t, b_hh, alpha=alpha)
    output = jax.block_until_ready(output)
    hidden = jax.block_until_ready(hidden)

    ref_out, ref_hidden = ctrnn_reference(x, h0, w_in_t, b_in, w_hh_t, b_hh,
                                          alpha=alpha)
    assert output.shape == (seq_len, batch, hidden_size)
    assert hidden.shape == (batch, hidden_size)
    assert jnp.allclose(output, ref_out, atol=1e-5, rtol=1e-5)
    assert jnp.allclose(hidden, ref_hidden, atol=1e-5, rtol=1e-5)

    # --- config B: odd seq_len + tiny VMEM budget -> multiple time chunks with
    # a zero-padded remainder chunk, plus the batch-parallel grid axis. --------
    seq_len2 = 13
    x2 = jax.random.normal(k_x2, (seq_len2, batch, input_size), jnp.float32)
    output2, hidden2 = ctrnn_forward(x2, h0, w_in_t, b_in, w_hh_t, b_hh,
                                     alpha=alpha, num_batch_blocks=2,
                                     vmem_budget_bytes=180 * 1024)
    output2 = jax.block_until_ready(output2)
    hidden2 = jax.block_until_ready(hidden2)

    ref_out2, ref_hidden2 = ctrnn_reference(x2, h0, w_in_t, b_in, w_hh_t, b_hh,
                                            alpha=alpha)
    assert output2.shape == (seq_len2, batch, hidden_size)
    assert jnp.allclose(output2, ref_out2, atol=1e-5, rtol=1e-5)
    assert jnp.allclose(hidden2, ref_hidden2, atol=1e-5, rtol=1e-5)

    print("KERNEL_OK")
</pallas_src>

<mosaic_0001>
module attributes {stable_mosaic.version = 11 : i64} {
  func.func @_ctrnn_kernel(%arg0: i32, %arg1: i32, %arg2: memref<8x8x8xf32, #tpu.memory_space<vmem>>, %arg3: memref<8x128xf32, #tpu.memory_space<vmem>>, %arg4: memref<8x128xf32, #tpu.memory_space<vmem>>, %arg5: memref<1x128xf32, #tpu.memory_space<vmem>>, %arg6: memref<128x128xf32, #tpu.memory_space<vmem>>, %arg7: memref<8x8x128xf32, #tpu.memory_space<vmem>>, %arg8: memref<8x128xf32, #tpu.memory_space<vmem>>) attributes {dimension_semantics = [#tpu.dimension_semantics<parallel>, #tpu.dimension_semantics<arbitrary>], iteration_bounds = array<i64: 1, 1>, scalar_prefetch = 0 : i64, scratch_operands = 1 : i64, tpu.core_type = #tpu.core_type<tc>, window_params = [{transform_indices = @transform_0, window_bounds = array<i64: 8, 8, 8>}, {pipeline_mode = #tpu.pipeline_mode<synchronous>, transform_indices = @transform_1, window_bounds = array<i64: 8, 128>}, {pipeline_mode = #tpu.pipeline_mode<synchronous>, transform_indices = @transform_2, window_bounds = array<i64: 8, 128>}, {pipeline_mode = #tpu.pipeline_mode<synchronous>, transform_indices = @transform_3, window_bounds = array<i64: 1, 128>}, {pipeline_mode = #tpu.pipeline_mode<synchronous>, transform_indices = @transform_4, window_bounds = array<i64: 128, 128>}, {transform_indices = @transform_5, window_bounds = array<i64: 8, 8, 128>}]} {
    %c0_i32 = arith.constant 0 : i32
    %0 = arith.cmpi eq, %arg1, %c0_i32 : i32
    %1 = arith.extui %0 : i1 to i32
    %c0_i32_0 = arith.constant 0 : i32
    %2 = arith.cmpi ne, %1, %c0_i32_0 : i32
    scf.if %2 {
      %c0_110 = arith.constant 0 : index
      %c0_111 = arith.constant 0 : index
      %181 = vector.load %arg3[%c0_110, %c0_111] : memref<8x128xf32, #tpu.memory_space<vmem>>, vector<8x128xf32>
      %c0_112 = arith.constant 0 : index
      %c0_113 = arith.constant 0 : index
      %182 = vector.load %arg8[%c0_112, %c0_113] : memref<8x128xf32, #tpu.memory_space<vmem>>, vector<8x128xf32>
      tpu.vector_store %arg8[%c0_112, %c0_113], %181 {strides = array<i32>} : memref<8x128xf32, #tpu.memory_space<vmem>>, vector<8x128xf32>,
    } else {
    }
    %c0 = arith.constant 0 : index
    %c0_1 = arith.constant 0 : index
    %3 = vector.load %arg8[%c0, %c0_1] : memref<8x128xf32, #tpu.memory_space<vmem>>, vector<8x128xf32>
    %cst = arith.constant 0.899999976 : f32
    %cst_2 = arith.constant 1.000000e-01 : f32
    %c0_i32_3 = arith.constant 0 : i32
    %4 = arith.index_cast %c0_i32_3 : i32 to index
    %c0_4 = arith.constant 0 : index
    %c0_5 = arith.constant 0 : index
    %5 = vector.load %arg2[%4, %c0_4, %c0_5] : memref<8x8x8xf32, #tpu.memory_space<vmem>>, vector<1x8x8xf32>
    %6 = vector.shape_cast %5 : vector<1x8x8xf32> to vector<8x8xf32>
    %c0_6 = arith.constant 0 : index
    %c0_7 = arith.constant 0 : index
    %7 = vector.load %arg4[%c0_6, %c0_7] : memref<8x128xf32, #tpu.memory_space<vmem>>, vector<8x128xf32>
    %cst_8 = arith.constant dense<0.000000e+00> : vector<8x128xf32>
    %8 = tpu.matmul %6, %7, %cst_8 {dimension_numbers = #tpu.dot_dimension_numbers<[1], [0], [0], [1], [0, 0, 1, 1], [], []>} : vector<8x8xf32>, vector<8x128xf32>, vector<8x128xf32> -> vector<8x128xf32>
    %c0_9 = arith.constant 0 : index
    %c0_10 = arith.constant 0 : index
    %9 = vector.load %arg6[%c0_9, %c0_10] : memref<128x128xf32, #tpu.memory_space<vmem>>, vector<128x128xf32>
    %cst_11 = arith.constant dense<0.000000e+00> : vector<8x128xf32>
    %10 = tpu.matmul %3, %9, %cst_11 {dimension_numbers = #tpu.dot_dimension_numbers<[1], [0], [0], [1], [0, 0, 1, 1], [], []>} : vector<8x128xf32>, vector<128x128xf32>, vector<8x128xf32> -> vector<8x128xf32>
    %11 = arith.addf %8, %10 : vector<8x128xf32>
    %c0_12 = arith.constant 0 : index
    %c0_13 = arith.constant 0 : index
    %12 = vector.load %arg5[%c0_12, %c0_13] : memref<1x128xf32, #tpu.memory_space<vmem>>, vector<1x128xf32>
    %13 = vector.broadcast %12 : vector<1x128xf32> to vector<8x128xf32>
    %14 = arith.addf %11, %13 : vector<8x128xf32>
    %cst_14 = arith.constant 0.000000e+00 : f32
    %15 = vector.broadcast %cst_14 : f32 to vector<8x128xf32>
    %16 = arith.maximumf %14, %15 : vector<8x128xf32>
    %17 = vector.broadcast %cst : f32 to vector<8x128xf32>
    %18 = arith.mulf %3, %17 : vector<8x128xf32>
    %19 = vector.broadcast %cst_2 : f32 to vector<8x128xf32>
    %20 = arith.mulf %16, %19 : vector<8x128xf32>
    %21 = arith.addf %18, %20 : vector<8x128xf32>
    %22 = arith.index_cast %c0_i32_3 : i32 to index
    %c0_15 = arith.constant 0 : index
    %c0_16 = arith.constant 0 : index
    %23 = vector.load %arg7[%22, %c0_15, %c0_16] : memref<8x8x128xf32, #tpu.memory_space<vmem>>, vector<1x8x128xf32>
    %24 = vector.shape_cast %23 : vector<1x8x128xf32> to vector<8x128xf32>
    %25 = vector.shape_cast %21 : vector<8x128xf32> to vector<1x8x128xf32>
    tpu.vector_store %arg7[%22, %c0_15, %c0_16], %25 {strides = array<i32>} : memref<8x8x128xf32, #tpu.memory_space<vmem>>, vector<1x8x128xf32>,
    %c1_i32 = arith.constant 1 : i32
    %26 = arith.index_cast %c1_i32 : i32 to index
    %c0_17 = arith.constant 0 : index
    %c0_18 = arith.constant 0 : index
    %27 = vector.load %arg2[%26, %c0_17, %c0_18] : memref<8x8x8xf32, #tpu.memory_space<vmem>>, vector<1x8x8xf32>
    %28 = vector.shape_cast %27 : vector<1x8x8xf32> to vector<8x8xf32>
    %c0_19 = arith.constant 0 : index
    %c0_20 = arith.constant 0 : index
    %29 = vector.load %arg4[%c0_19, %c0_20] : memref<8x128xf32, #tpu.memory_space<vmem>>, vector<8x128xf32>
    %cst_21 = arith.constant dense<0.000000e+00> : vector<8x128xf32>
    %30 = tpu.matmul %28, %29, %cst_21 {dimension_numbers = #tpu.dot_dimension_numbers<[1], [0], [0], [1], [0, 0, 1, 1], [], []>} : vector<8x8xf32>, vector<8x128xf32>, vector<8x128xf32> -> vector<8x128xf32>
    %c0_22 = arith.constant 0 : index
    %c0_23 = arith.constant 0 : index
    %31 = vector.load %arg6[%c0_22, %c0_23] : memref<128x128xf32, #tpu.memory_space<vmem>>, vector<128x128xf32>
    %cst_24 = arith.constant dense<0.000000e+00> : vector<8x128xf32>
    %32 = tpu.matmul %21, %31, %cst_24 {dimension_numbers = #tpu.dot_dimension_numbers<[1], [0], [0], [1], [0, 0, 1, 1], [], []>} : vector<8x128xf32>, vector<128x128xf32>, vector<8x128xf32> -> vector<8x128xf32>
    %33 = arith.addf %30, %32 : vector<8x128xf32>
    %c0_25 = arith.constant 0 : index
    %c0_26 = arith.constant 0 : index
    %34 = vector.load %arg5[%c0_25, %c0_26] : memref<1x128xf32, #tpu.memory_space<vmem>>, vector<1x128xf32>
    %35 = vector.broadcast %34 : vector<1x128xf32> to vector<8x128xf32>
    %36 = arith.addf %33, %35 : vector<8x128xf32>
    %cst_27 = arith.constant 0.000000e+00 : f32
    %37 = vector.broadcast %cst_27 : f32 to vector<8x128xf32>
    %38 = arith.maximumf %36, %37 : vector<8x128xf32>
    %39 = vector.broadcast %cst : f32 to vector<8x128xf32>
    %40 = arith.mulf %21, %39 : vector<8x128xf32>
    %41 = vector.broadcast %cst_2 : f32 to vector<8x128xf32>
    %42 = arith.mulf %38, %41 : vector<8x128xf32>
    %43 = arith.addf %40, %42 : vector<8x128xf32>
    %44 = arith.index_cast %c1_i32 : i32 to index
    %c0_28 = arith.constant 0 : index
    %c0_29 = arith.constant 0 : index
    %45 = vector.load %arg7[%44, %c0_28, %c0_29] : memref<8x8x128xf32, #tpu.memory_space<vmem>>, vector<1x8x128xf32>
    %46 = vector.shape_cast %45 : vector<1x8x128xf32> to vector<8x128xf32>
    %47 = vector.shape_cast %43 : vector<8x128xf32> to vector<1x8x128xf32>
    tpu.vector_store %arg7[%44, %c0_28, %c0_29], %47 {strides = array<i32>} : memref<8x8x128xf32, #tpu.memory_space<vmem>>, vector<1x8x128xf32>,
    %c2_i32 = arith.constant 2 : i32
    %48 = arith.index_cast %c2_i32 : i32 to index
    %c0_30 = arith.constant 0 : index
    %c0_31 = arith.constant 0 : index
    %49 = vector.load %arg2[%48, %c0_30, %c0_31] : memref<8x8x8xf32, #tpu.memory_space<vmem>>, vector<1x8x8xf32>
    %50 = vector.shape_cast %49 : vector<1x8x8xf32> to vector<8x8xf32>
    %c0_32 = arith.constant 0 : index
    %c0_33 = arith.constant 0 : index
    %51 = vector.load %arg4[%c0_32, %c0_33] : memref<8x128xf32, #tpu.memory_space<vmem>>, vector<8x128xf32>
    %cst_34 = arith.constant dense<0.000000e+00> : vector<8x128xf32>
    %52 = tpu.matmul %50, %51, %cst_34 {dimension_numbers = #tpu.dot_dimension_numbers<[1], [0], [0], [1], [0, 0, 1, 1], [], []>} : vector<8x8xf32>, vector<8x128xf32>, vector<8x128xf32> -> vector<8x128xf32>
    %c0_35 = arith.constant 0 : index
    %c0_36 = arith.constant 0 : index
    %53 = vector.load %arg6[%c0_35, %c0_36] : memref<128x128xf32, #tpu.memory_space<vmem>>, vector<128x128xf32>
    %cst_37 = arith.constant dense<0.000000e+00> : vector<8x128xf32>
    %54 = tpu.matmul %43, %53, %cst_37 {dimension_numbers = #tpu.dot_dimension_numbers<[1], [0], [0], [1], [0, 0, 1, 1], [], []>} : vector<8x128xf32>, vector<128x128xf32>, vector<8x128xf32> -> vector<8x128xf32>
    %55 = arith.addf %52, %54 : vector<8x128xf32>
    %c0_38 = arith.constant 0 : index
    %c0_39 = arith.constant 0 : index
    %56 = vector.load %arg5[%c0_38, %c0_39] : memref<1x128xf32, #tpu.memory_space<vmem>>, vector<1x128xf32>
    %57 = vector.broadcast %56 : vector<1x128xf32> to vector<8x128xf32>
    %58 = arith.addf %55, %57 : vector<8x128xf32>
    %cst_40 = arith.constant 0.000000e+00 : f32
    %59 = vector.broadcast %cst_40 : f32 to vector<8x128xf32>
    %60 = arith.maximumf %58, %59 : vector<8x128xf32>
    %61 = vector.broadcast %cst : f32 to vector<8x128xf32>
    %62 = arith.mulf %43, %61 : vector<8x128xf32>
    %63 = vector.broadcast %cst_2 : f32 to vector<8x128xf32>
    %64 = arith.mulf %60, %63 : vector<8x128xf32>
    %65 = arith.addf %62, %64 : vector<8x128xf32>
    %66 = arith.index_cast %c2_i32 : i32 to index
    %c0_41 = arith.constant 0 : index
    %c0_42 = arith.constant 0 : index
    %67 = vector.load %arg7[%66, %c0_41, %c0_42] : memref<8x8x128xf32, #tpu.memory_space<vmem>>, vector<1x8x128xf32>
    %68 = vector.shape_cast %67 : vector<1x8x128xf32> to vector<8x128xf32>
    %69 = vector.shape_cast %65 : vector<8x128xf32> to vector<1x8x128xf32>
    tpu.vector_store %arg7[%66, %c0_41, %c0_42], %69 {strides = array<i32>} : memref<8x8x128xf32, #tpu.memory_space<vmem>>, vector<1x8x128xf32>,
    %c3_i32 = arith.constant 3 : i32
    %70 = arith.index_cast %c3_i32 : i32 to index
    %c0_43 = arith.constant 0 : index
    %c0_44 = arith.constant 0 : index
    %71 = vector.load %arg2[%70, %c0_43, %c0_44] : memref<8x8x8xf32, #tpu.memory_space<vmem>>, vector<1x8x8xf32>
    %72 = vector.shape_cast %71 : vector<1x8x8xf32> to vector<8x8xf32>
    %c0_45 = arith.constant 0 : index
    %c0_46 = arith.constant 0 : index
    %73 = vector.load %arg4[%c0_45, %c0_46] : memref<8x128xf32, #tpu.memory_space<vmem>>, vector<8x128xf32>
    %cst_47 = arith.constant dense<0.000000e+00> : vector<8x128xf32>
    %74 = tpu.matmul %72, %73, %cst_47 {dimension_numbers = #tpu.dot_dimension_numbers<[1], [0], [0], [1], [0, 0, 1, 1], [], []>} : vector<8x8xf32>, vector<8x128xf32>, vector<8x128xf32> -> vector<8x128xf32>
    %c0_48 = arith.constant 0 : index
    %c0_49 = arith.constant 0 : index
    %75 = vector.load %arg6[%c0_48, %c0_49] : memref<128x128xf32, #tpu.memory_space<vmem>>, vector<128x128xf32>
    %cst_50 = arith.constant dense<0.000000e+00> : vector<8x128xf32>
    %76 = tpu.matmul %65, %75, %cst_50 {dimension_numbers = #tpu.dot_dimension_numbers<[1], [0], [0], [1], [0, 0, 1, 1], [], []>} : vector<8x128xf32>, vector<128x128xf32>, vector<8x128xf32> -> vector<8x128xf32>
    %77 = arith.addf %74, %76 : vector<8x128xf32>
    %c0_51 = arith.constant 0 : index
    %c0_52 = arith.constant 0 : index
    %78 = vector.load %arg5[%c0_51, %c0_52] : memref<1x128xf32, #tpu.memory_space<vmem>>, vector<1x128xf32>
    %79 = vector.broadcast %78 : vector<1x128xf32> to vector<8x128xf32>
    %80 = arith.addf %77, %79 : vector<8x128xf32>
    %cst_53 = arith.constant 0.000000e+00 : f32
    %81 = vector.broadcast %cst_53 : f32 to vector<8x128xf32>
    %82 = arith.maximumf %80, %81 : vector<8x128xf32>
    %83 = vector.broadcast %cst : f32 to vector<8x128xf32>
    %84 = arith.mulf %65, %83 : vector<8x128xf32>
    %85 = vector.broadcast %cst_2 : f32 to vector<8x128xf32>
    %86 = arith.mulf %82, %85 : vector<8x128xf32>
    %87 = arith.addf %84, %86 : vector<8x128xf32>
    %88 = arith.index_cast %c3_i32 : i32 to index
    %c0_54 = arith.constant 0 : index
    %c0_55 = arith.constant 0 : index
    %89 = vector.load %arg7[%88, %c0_54, %c0_55] : memref<8x8x128xf32, #tpu.memory_space<vmem>>, vector<1x8x128xf32>
    %90 = vector.shape_cast %89 : vector<1x8x128xf32> to vector<8x128xf32>
    %91 = vector.shape_cast %87 : vector<8x128xf32> to vector<1x8x128xf32>
    tpu.vector_store %arg7[%88, %c0_54, %c0_55], %91 {strides = array<i32>} : memref<8x8x128xf32, #tpu.memory_space<vmem>>, vector<1x8x128xf32>,
    %c4_i32 = arith.constant 4 : i32
    %92 = arith.index_cast %c4_i32 : i32 to index
    %c0_56 = arith.constant 0 : index
    %c0_57 = arith.constant 0 : index
    %93 = vector.load %arg2[%92, %c0_56, %c0_57] : memref<8x8x8xf32, #tpu.memory_space<vmem>>, vector<1x8x8xf32>
    %94 = vector.shape_cast %93 : vector<1x8x8xf32> to vector<8x8xf32>
    %c0_58 = arith.constant 0 : index
    %c0_59 = arith.constant 0 : index
    %95 = vector.load %arg4[%c0_58, %c0_59] : memref<8x128xf32, #tpu.memory_space<vmem>>, vector<8x128xf32>
    %cst_60 = arith.constant dense<0.000000e+00> : vector<8x128xf32>
    %96 = tpu.matmul %94, %95, %cst_60 {dimension_numbers = #tpu.dot_dimension_numbers<[1], [0], [0], [1], [0, 0, 1, 1], [], []>} : vector<8x8xf32>, vector<8x128xf32>, vector<8x128xf32> -> vector<8x128xf32>
    %c0_61 = arith.constant 0 : index
    %c0_62 = arith.constant 0 : index
    %97 = vector.load %arg6[%c0_61, %c0_62] : memref<128x128xf32, #tpu.memory_space<vmem>>, vector<128x128xf32>
    %cst_63 = arith.constant dense<0.000000e+00> : vector<8x128xf32>
    %98 = tpu.matmul %87, %97, %cst_63 {dimension_numbers = #tpu.dot_dimension_numbers<[1], [0], [0], [1], [0, 0, 1, 1], [], []>} : vector<8x128xf32>, vector<128x128xf32>, vector<8x128xf32> -> vector<8x128xf32>
    %99 = arith.addf %96, %98 : vector<8x128xf32>
    %c0_64 = arith.constant 0 : index
    %c0_65 = arith.constant 0 : index
    %100 = vector.load %arg5[%c0_64, %c0_65] : memref<1x128xf32, #tpu.memory_space<vmem>>, vector<1x128xf32>
    %101 = vector.broadcast %100 : vector<1x128xf32> to vector<8x128xf32>
    %102 = arith.addf %99, %101 : vector<8x128xf32>
    %cst_66 = arith.constant 0.000000e+00 : f32
    %103 = vector.broadcast %cst_66 : f32 to vector<8x128xf32>
    %104 = arith.maximumf %102, %103 : vector<8x128xf32>
    %105 = vector.broadcast %cst : f32 to vector<8x128xf32>
    %106 = arith.mulf %87, %105 : vector<8x128xf32>
    %107 = vector.broadcast %cst_2 : f32 to vector<8x128xf32>
    %108 = arith.mulf %104, %107 : vector<8x128xf32>
    %109 = arith.addf %106, %108 : vector<8x128xf32>
    %110 = arith.index_cast %c4_i32 : i32 to index
    %c0_67 = arith.constant 0 : index
    %c0_68 = arith.constant 0 : index
    %111 = vector.load %arg7[%110, %c0_67, %c0_68] : memref<8x8x128xf32, #tpu.memory_space<vmem>>, vector<1x8x128xf32>
    %112 = vector.shape_cast %111 : vector<1x8x128xf32> to vector<8x128xf32>
    %113 = vector.shape_cast %109 : vector<8x128xf32> to vector<1x8x128xf32>
    tpu.vector_store %arg7[%110, %c0_67, %c0_68], %113 {strides = array<i32>} : memref<8x8x128xf32, #tpu.memory_space<vmem>>, vector<1x8x128xf32>,
    %c5_i32 = arith.constant 5 : i32
    %114 = arith.index_cast %c5_i32 : i32 to index
    %c0_69 = arith.constant 0 : index
    %c0_70 = arith.constant 0 : index
    %115 = vector.load %arg2[%114, %c0_69, %c0_70] : memref<8x8x8xf32, #tpu.memory_space<vmem>>, vector<1x8x8xf32>
    %116 = vector.shape_cast %115 : vector<1x8x8xf32> to vector<8x8xf32>
    %c0_71 = arith.constant 0 : index
    %c0_72 = arith.constant 0 : index
    %117 = vector.load %arg4[%c0_71, %c0_72] : memref<8x128xf32, #tpu.memory_space<vmem>>, vector<8x128xf32>
    %cst_73 = arith.constant dense<0.000000e+00> : vector<8x128xf32>
    %118 = tpu.matmul %116, %117, %cst_73 {dimension_numbers = #tpu.dot_dimension_numbers<[1], [0], [0], [1], [0, 0, 1, 1], [], []>} : vector<8x8xf32>, vector<8x128xf32>, vector<8x128xf32> -> vector<8x128xf32>
    %c0_74 = arith.constant 0 : index
    %c0_75 = arith.constant 0 : index
    %119 = vector.load %arg6[%c0_74, %c0_75] : memref<128x128xf32, #tpu.memory_space<vmem>>, vector<128x128xf32>
    %cst_76 = arith.constant dense<0.000000e+00> : vector<8x128xf32>
    %120 = tpu.matmul %109, %119, %cst_76 {dimension_numbers = #tpu.dot_dimension_numbers<[1], [0], [0], [1], [0, 0, 1, 1], [], []>} : vector<8x128xf32>, vector<128x128xf32>, vector<8x128xf32> -> vector<8x128xf32>
    %121 = arith.addf %118, %120 : vector<8x128xf32>
    %c0_77 = arith.constant 0 : index
    %c0_78 = arith.constant 0 : index
    %122 = vector.load %arg5[%c0_77, %c0_78] : memref<1x128xf32, #tpu.memory_space<vmem>>, vector<1x128xf32>
    %123 = vector.broadcast %122 : vector<1x128xf32> to vector<8x128xf32>
    %124 = arith.addf %121, %123 : vector<8x128xf32>
    %cst_79 = arith.constant 0.000000e+00 : f32
    %125 = vector.broadcast %cst_79 : f32 to vector<8x128xf32>
    %126 = arith.maximumf %124, %125 : vector<8x128xf32>
    %127 = vector.broadcast %cst : f32 to vector<8x128xf32>
    %128 = arith.mulf %109, %127 : vector<8x128xf32>
    %129 = vector.broadcast %cst_2 : f32 to vector<8x128xf32>
    %130 = arith.mulf %126, %129 : vector<8x128xf32>
    %131 = arith.addf %128, %130 : vector<8x128xf32>
    %132 = arith.index_cast %c5_i32 : i32 to index
    %c0_80 = arith.constant 0 : index
    %c0_81 = arith.constant 0 : index
    %133 = vector.load %arg7[%132, %c0_80, %c0_81] : memref<8x8x128xf32, #tpu.memory_space<vmem>>, vector<1x8x128xf32>
    %134 = vector.shape_cast %133 : vector<1x8x128xf32> to vector<8x128xf32>
    %135 = vector.shape_cast %131 : vector<8x128xf32> to vector<1x8x128xf32>
    tpu.vector_store %arg7[%132, %c0_80, %c0_81], %135 {strides = array<i32>} : memref<8x8x128xf32, #tpu.memory_space<vmem>>, vector<1x8x128xf32>,
    %c6_i32 = arith.constant 6 : i32
    %136 = arith.index_cast %c6_i32 : i32 to index
    %c0_82 = arith.constant 0 : index
    %c0_83 = arith.constant 0 : index
    %137 = vector.load %arg2[%136, %c0_82, %c0_83] : memref<8x8x8xf32, #tpu.memory_space<vmem>>, vector<1x8x8xf32>
    %138 = vector.shape_cast %137 : vector<1x8x8xf32> to vector<8x8xf32>
    %c0_84 = arith.constant 0 : index
    %c0_85 = arith.constant 0 : index
    %139 = vector.load %arg4[%c0_84, %c0_85] : memref<8x128xf32, #tpu.memory_space<vmem>>, vector<8x128xf32>
    %cst_86 = arith.constant dense<0.000000e+00> : vector<8x128xf32>
    %140 = tpu.matmul %138, %139, %cst_86 {dimension_numbers = #tpu.dot_dimension_numbers<[1], [0], [0], [1], [0, 0, 1, 1], [], []>} : vector<8x8xf32>, vector<8x128xf32>, vector<8x128xf32> -> vector<8x128xf32>
    %c0_87 = arith.constant 0 : index
    %c0_88 = arith.constant 0 : index
    %141 = vector.load %arg6[%c0_87, %c0_88] : memref<128x128xf32, #tpu.memory_space<vmem>>, vector<128x128xf32>
    %cst_89 = arith.constant dense<0.000000e+00> : vector<8x128xf32>
    %142 = tpu.matmul %131, %141, %cst_89 {dimension_numbers = #tpu.dot_dimension_numbers<[1], [0], [0], [1], [0, 0, 1, 1], [], []>} : vector<8x128xf32>, vector<128x128xf32>, vector<8x128xf32> -> vector<8x128xf32>
    %143 = arith.addf %140, %142 : vector<8x128xf32>
    %c0_90 = arith.constant 0 : index
    %c0_91 = arith.constant 0 : index
    %144 = vector.load %arg5[%c0_90, %c0_91] : memref<1x128xf32, #tpu.memory_space<vmem>>, vector<1x128xf32>
    %145 = vector.broadcast %144 : vector<1x128xf32> to vector<8x128xf32>
    %146 = arith.addf %143, %145 : vector<8x128xf32>
    %cst_92 = arith.constant 0.000000e+00 : f32
    %147 = vector.broadcast %cst_92 : f32 to vector<8x128xf32>
    %148 = arith.maximumf %146, %147 : vector<8x128xf32>
    %149 = vector.broadcast %cst : f32 to vector<8x128xf32>
    %150 = arith.mulf %131, %149 : vector<8x128xf32>
    %151 = vector.broadcast %cst_2 : f32 to vector<8x128xf32>
    %152 = arith.mulf %148, %151 : vector<8x128xf32>
    %153 = arith.addf %150, %152 : vector<8x128xf32>
    %154 = arith.index_cast %c6_i32 : i32 to index
    %c0_93 = arith.constant 0 : index
    %c0_94 = arith.constant 0 : index
    %155 = vector.load %arg7[%154, %c0_93, %c0_94] : memref<8x8x128xf32, #tpu.memory_space<vmem>>, vector<1x8x128xf32>
    %156 = vector.shape_cast %155 : vector<1x8x128xf32> to vector<8x128xf32>
    %157 = vector.shape_cast %153 : vector<8x128xf32> to vector<1x8x128xf32>
    tpu.vector_store %arg7[%154, %c0_93, %c0_94], %157 {strides = array<i32>} : memref<8x8x128xf32, #tpu.memory_space<vmem>>, vector<1x8x128xf32>,
    %c7_i32 = arith.constant 7 : i32
    %158 = arith.index_cast %c7_i32 : i32 to index
    %c0_95 = arith.constant 0 : index
    %c0_96 = arith.constant 0 : index
    %159 = vector.load %arg2[%158, %c0_95, %c0_96] : memref<8x8x8xf32, #tpu.memory_space<vmem>>, vector<1x8x8xf32>
    %160 = vector.shape_cast %159 : vector<1x8x8xf32> to vector<8x8xf32>
    %c0_97 = arith.constant 0 : index
    %c0_98 = arith.constant 0 : index
    %161 = vector.load %arg4[%c0_97, %c0_98] : memref<8x128xf32, #tpu.memory_space<vmem>>, vector<8x128xf32>
    %cst_99 = arith.constant dense<0.000000e+00> : vector<8x128xf32>
    %162 = tpu.matmul %160, %161, %cst_99 {dimension_numbers = #tpu.dot_dimension_numbers<[1], [0], [0], [1], [0, 0, 1, 1], [], []>} : vector<8x8xf32>, vector<8x128xf32>, vector<8x128xf32> -> vector<8x128xf32>
    %c0_100 = arith.constant 0 : index
    %c0_101 = arith.constant 0 : index
    %163 = vector.load %arg6[%c0_100, %c0_101] : memref<128x128xf32, #tpu.memory_space<vmem>>, vector<128x128xf32>
    %cst_102 = arith.constant dense<0.000000e+00> : vector<8x128xf32>
    %164 = tpu.matmul %153, %163, %cst_102 {dimension_numbers = #tpu.dot_dimension_numbers<[1], [0], [0], [1], [0, 0, 1, 1], [], []>} : vector<8x128xf32>, vector<128x128xf32>, vector<8x128xf32> -> vector<8x128xf32>
    %165 = arith.addf %162, %164 : vector<8x128xf32>
    %c0_103 = arith.constant 0 : index
    %c0_104 = arith.constant 0 : index
    %166 = vector.load %arg5[%c0_103, %c0_104] : memref<1x128xf32, #tpu.memory_space<vmem>>, vector<1x128xf32>
    %167 = vector.broadcast %166 : vector<1x128xf32> to vector<8x128xf32>
    %168 = arith.addf %165, %167 : vector<8x128xf32>
    %cst_105 = arith.constant 0.000000e+00 : f32
    %169 = vector.broadcast %cst_105 : f32 to vector<8x128xf32>
    %170 = arith.maximumf %168, %169 : vector<8x128xf32>
    %171 = vector.broadcast %cst : f32 to vector<8x128xf32>
    %172 = arith.mulf %153, %171 : vector<8x128xf32>
    %173 = vector.broadcast %cst_2 : f32 to vector<8x128xf32>
    %174 = arith.mulf %170, %173 : vector<8x128xf32>
    %175 = arith.addf %172, %174 : vector<8x128xf32>
    %176 = arith.index_cast %c7_i32 : i32 to index
    %c0_106 = arith.constant 0 : index
    %c0_107 = arith.constant 0 : index
    %177 = vector.load %arg7[%176, %c0_106, %c0_107] : memref<8x8x128xf32, #tpu.memory_space<vmem>>, vector<1x8x128xf32>
    %178 = vector.shape_cast %177 : vector<1x8x128xf32> to vector<8x128xf32>
    %179 = vector.shape_cast %175 : vector<8x128xf32> to vector<1x8x128xf32>
    tpu.vector_store %arg7[%176, %c0_106, %c0_107], %179 {strides = array<i32>} : memref<8x8x128xf32, #tpu.memory_space<vmem>>, vector<1x8x128xf32>,
    %c8_i32 = arith.constant 8 : i32
    %c0_108 = arith.constant 0 : index
    %c0_109 = arith.constant 0 : index
    %180 = vector.load %arg8[%c0_108, %c0_109] : memref<8x128xf32, #tpu.memory_space<vmem>>, vector<8x128xf32>
    tpu.vector_store %arg8[%c0_108, %c0_109], %175 {strides = array<i32>} : memref<8x128xf32, #tpu.memory_space<vmem>>, vector<8x128xf32>,
    return
  }
  func.func @transform_0(%arg0: i32, %arg1: i32) -> (i32, i32, i32) {
    %c0_i32 = arith.constant 0 : i32
    %c0_i32_0 = arith.constant 0 : i32
    return %arg1, %arg0, %c0_i32 : i32, i32, i32
  }
  func.func @transform_1(%arg0: i32, %arg1: i32) -> (i32, i32) {
    %c0_i32 = arith.constant 0 : i32
    %c0_i32_0 = arith.constant 0 : i32
    return %arg0, %c0_i32 : i32, i32
  }
  func.func @transform_2(%arg0: i32, %arg1: i32) -> (i32, i32) {
    %c0_i32 = arith.constant 0 : i32
    %c0_i32_0 = arith.constant 0 : i32
    %c0_i32_1 = arith.constant 0 : i32
    return %c0_i32, %c0_i32_0 : i32, i32
  }
  func.func @transform_3(%arg0: i32, %arg1: i32) -> (i32, i32) {
    %c0_i32 = arith.constant 0 : i32
    %c0_i32_0 = arith.constant 0 : i32
    %c0_i32_1 = arith.constant 0 : i32
    return %c0_i32, %c0_i32_0 : i32, i32
  }
  func.func @transform_4(%arg0: i32, %arg1: i32) -> (i32, i32) {
    %c0_i32 = arith.constant 0 : i32
    %c0_i32_0 = arith.constant 0 : i32
    %c0_i32_1 = arith.constant 0 : i32
    return %c0_i32, %c0_i32_0 : i32, i32
  }
  func.func @transform_5(%arg0: i32, %arg1: i32) -> (i32, i32, i32) {
    %c0_i32 = arith.constant 0 : i32
    %c0_i32_0 = arith.constant 0 : i32
    return %arg1, %arg0, %c0_i32 : i32, i32, i32
  }
}

module attributes {stable_mosaic.version = 11 : i64} {
  func.func @_ctrnn_kernel(%arg0: i32, %arg1: i32, %arg2: memref<8x8x8xf32, #tpu.memory_space<vmem>>, %arg3: memref<8x128xf32, #tpu.memory_space<vmem>>, %arg4: memref<8x128xf32, #tpu.memory_space<vmem>>, %arg5: memref<1x128xf32, #tpu.memory_space<vmem>>, %arg6: memref<128x128xf32, #tpu.memory_space<vmem>>, %arg7: memref<8x8x128xf32, #tpu.memory_space<vmem>>, %arg8: memref<8x128xf32, #tpu.memory_space<vmem>>) attributes {dimension_semantics = [#tpu.dimension_semantics<parallel>, #tpu.dimension_semantics<arbitrary>], iteration_bounds = array<i64: 1, 1>, scalar_prefetch = 0 : i64, scratch_operands = 1 : i64, tpu.core_type = #tpu.core_type<tc>, window_params = [{transform_indices = @transform_0, window_bounds = array<i64: 8, 8, 8>}, {transform_indices = @transform_1, window_bounds = array<i64: 8, 128>}, {pipeline_mode = #tpu.pipeline_mode<synchronous>, transform_indices = @transform_2, window_bounds = array<i64: 8, 128>}, {pipeline_mode = #tpu.pipeline_mode<synchronous>, transform_indices = @transform_3, window_bounds = array<i64: 1, 128>}, {pipeline_mode = #tpu.pipeline_mode<synchronous>, transform_indices = @transform_4, window_bounds = array<i64: 128, 128>}, {transform_indices = @transform_5, window_bounds = array<i64: 8, 8, 128>}]} {
    %c0_i32 = arith.constant 0 : i32
    %0 = arith.cmpi eq, %arg1, %c0_i32 : i32
    %1 = arith.extui %0 : i1 to i32
    %c0_i32_0 = arith.constant 0 : i32
    %2 = arith.cmpi ne, %1, %c0_i32_0 : i32
    scf.if %2 {
      %c0_110 = arith.constant 0 : index
      %c0_111 = arith.constant 0 : index
      %181 = vector.load %arg3[%c0_110, %c0_111] : memref<8x128xf32, #tpu.memory_space<vmem>>, vector<8x128xf32>
      %c0_112 = arith.constant 0 : index
      %c0_113 = arith.constant 0 : index
      %182 = vector.load %arg8[%c0_112, %c0_113] : memref<8x128xf32, #tpu.memory_space<vmem>>, vector<8x128xf32>
      tpu.vector_store %arg8[%c0_112, %c0_113], %181 {strides = array<i32>} : memref<8x128xf32, #tpu.memory_space<vmem>>, vector<8x128xf32>,
    } else {
    }
    %c0 = arith.constant 0 : index
    %c0_1 = arith.constant 0 : index
    %3 = vector.load %arg8[%c0, %c0_1] : memref<8x128xf32, #tpu.memory_space<vmem>>, vector<8x128xf32>
    %cst = arith.constant 0.899999976 : f32
    %cst_2 = arith.constant 1.000000e-01 : f32
    %c0_i32_3 = arith.constant 0 : i32
    %4 = arith.index_cast %c0_i32_3 : i32 to index
    %c0_4 = arith.constant 0 : index
    %c0_5 = arith.constant 0 : index
    %5 = vector.load %arg2[%4, %c0_4, %c0_5] : memref<8x8x8xf32, #tpu.memory_space<vmem>>, vector<1x8x8xf32>
    %6 = vector.shape_cast %5 : vector<1x8x8xf32> to vector<8x8xf32>
    %c0_6 = arith.constant 0 : index
    %c0_7 = arith.constant 0 : index
    %7 = vector.load %arg4[%c0_6, %c0_7] : memref<8x128xf32, #tpu.memory_space<vmem>>, vector<8x128xf32>
    %cst_8 = arith.constant dense<0.000000e+00> : vector<8x128xf32>
    %8 = tpu.matmul %6, %7, %cst_8 {dimension_numbers = #tpu.dot_dimension_numbers<[1], [0], [0], [1], [0, 0, 1, 1], [], []>} : vector<8x8xf32>, vector<8x128xf32>, vector<8x128xf32> -> vector<8x128xf32>
    %c0_9 = arith.constant 0 : index
    %c0_10 = arith.constant 0 : index
    %9 = vector.load %arg6[%c0_9, %c0_10] : memref<128x128xf32, #tpu.memory_space<vmem>>, vector<128x128xf32>
    %cst_11 = arith.constant dense<0.000000e+00> : vector<8x128xf32>
    %10 = tpu.matmul %3, %9, %cst_11 {dimension_numbers = #tpu.dot_dimension_numbers<[1], [0], [0], [1], [0, 0, 1, 1], [], []>} : vector<8x128xf32>, vector<128x128xf32>, vector<8x128xf32> -> vector<8x128xf32>
    %11 = arith.addf %8, %10 : vector<8x128xf32>
    %c0_12 = arith.constant 0 : index
    %c0_13 = arith.constant 0 : index
    %12 = vector.load %arg5[%c0_12, %c0_13] : memref<1x128xf32, #tpu.memory_space<vmem>>, vector<1x128xf32>
    %13 = vector.broadcast %12 : vector<1x128xf32> to vector<8x128xf32>
    %14 = arith.addf %11, %13 : vector<8x128xf32>
    %cst_14 = arith.constant 0.000000e+00 : f32
    %15 = vector.broadcast %cst_14 : f32 to vector<8x128xf32>
    %16 = arith.maximumf %14, %15 : vector<8x128xf32>
    %17 = vector.broadcast %cst : f32 to vector<8x128xf32>
    %18 = arith.mulf %3, %17 : vector<8x128xf32>
    %19 = vector.broadcast %cst_2 : f32 to vector<8x128xf32>
    %20 = arith.mulf %16, %19 : vector<8x128xf32>
    %21 = arith.addf %18, %20 : vector<8x128xf32>
    %22 = arith.index_cast %c0_i32_3 : i32 to index
    %c0_15 = arith.constant 0 : index
    %c0_16 = arith.constant 0 : index
    %23 = vector.load %arg7[%22, %c0_15, %c0_16] : memref<8x8x128xf32, #tpu.memory_space<vmem>>, vector<1x8x128xf32>
    %24 = vector.shape_cast %23 : vector<1x8x128xf32> to vector<8x128xf32>
    %25 = vector.shape_cast %21 : vector<8x128xf32> to vector<1x8x128xf32>
    tpu.vector_store %arg7[%22, %c0_15, %c0_16], %25 {strides = array<i32>} : memref<8x8x128xf32, #tpu.memory_space<vmem>>, vector<1x8x128xf32>,
    %c1_i32 = arith.constant 1 : i32
    %26 = arith.index_cast %c1_i32 : i32 to index
    %c0_17 = arith.constant 0 : index
    %c0_18 = arith.constant 0 : index
    %27 = vector.load %arg2[%26, %c0_17, %c0_18] : memref<8x8x8xf32, #tpu.memory_space<vmem>>, vector<1x8x8xf32>
    %28 = vector.shape_cast %27 : vector<1x8x8xf32> to vector<8x8xf32>
    %c0_19 = arith.constant 0 : index
    %c0_20 = arith.constant 0 : index
    %29 = vector.load %arg4[%c0_19, %c0_20] : memref<8x128xf32, #tpu.memory_space<vmem>>, vector<8x128xf32>
    %cst_21 = arith.constant dense<0.000000e+00> : vector<8x128xf32>
    %30 = tpu.matmul %28, %29, %cst_21 {dimension_numbers = #tpu.dot_dimension_numbers<[1], [0], [0], [1], [0, 0, 1, 1], [], []>} : vector<8x8xf32>, vector<8x128xf32>, vector<8x128xf32> -> vector<8x128xf32>
    %c0_22 = arith.constant 0 : index
    %c0_23 = arith.constant 0 : index
    %31 = vector.load %arg6[%c0_22, %c0_23] : memref<128x128xf32, #tpu.memory_space<vmem>>, vector<128x128xf32>
    %cst_24 = arith.constant dense<0.000000e+00> : vector<8x128xf32>
    %32 = tpu.matmul %21, %31, %cst_24 {dimension_numbers = #tpu.dot_dimension_numbers<[1], [0], [0], [1], [0, 0, 1, 1], [], []>} : vector<8x128xf32>, vector<128x128xf32>, vector<8x128xf32> -> vector<8x128xf32>
    %33 = arith.addf %30, %32 : vector<8x128xf32>
    %c0_25 = arith.constant 0 : index
    %c0_26 = arith.constant 0 : index
    %34 = vector.load %arg5[%c0_25, %c0_26] : memref<1x128xf32, #tpu.memory_space<vmem>>, vector<1x128xf32>
    %35 = vector.broadcast %34 : vector<1x128xf32> to vector<8x128xf32>
    %36 = arith.addf %33, %35 : vector<8x128xf32>
    %cst_27 = arith.constant 0.000000e+00 : f32
    %37 = vector.broadcast %cst_27 : f32 to vector<8x128xf32>
    %38 = arith.maximumf %36, %37 : vector<8x128xf32>
    %39 = vector.broadcast %cst : f32 to vector<8x128xf32>
    %40 = arith.mulf %21, %39 : vector<8x128xf32>
    %41 = vector.broadcast %cst_2 : f32 to vector<8x128xf32>
    %42 = arith.mulf %38, %41 : vector<8x128xf32>
    %43 = arith.addf %40, %42 : vector<8x128xf32>
    %44 = arith.index_cast %c1_i32 : i32 to index
    %c0_28 = arith.constant 0 : index
    %c0_29 = arith.constant 0 : index
    %45 = vector.load %arg7[%44, %c0_28, %c0_29] : memref<8x8x128xf32, #tpu.memory_space<vmem>>, vector<1x8x128xf32>
    %46 = vector.shape_cast %45 : vector<1x8x128xf32> to vector<8x128xf32>
    %47 = vector.shape_cast %43 : vector<8x128xf32> to vector<1x8x128xf32>
    tpu.vector_store %arg7[%44, %c0_28, %c0_29], %47 {strides = array<i32>} : memref<8x8x128xf32, #tpu.memory_space<vmem>>, vector<1x8x128xf32>,
    %c2_i32 = arith.constant 2 : i32
    %48 = arith.index_cast %c2_i32 : i32 to index
    %c0_30 = arith.constant 0 : index
    %c0_31 = arith.constant 0 : index
    %49 = vector.load %arg2[%48, %c0_30, %c0_31] : memref<8x8x8xf32, #tpu.memory_space<vmem>>, vector<1x8x8xf32>
    %50 = vector.shape_cast %49 : vector<1x8x8xf32> to vector<8x8xf32>
    %c0_32 = arith.constant 0 : index
    %c0_33 = arith.constant 0 : index
    %51 = vector.load %arg4[%c0_32, %c0_33] : memref<8x128xf32, #tpu.memory_space<vmem>>, vector<8x128xf32>
    %cst_34 = arith.constant dense<0.000000e+00> : vector<8x128xf32>
    %52 = tpu.matmul %50, %51, %cst_34 {dimension_numbers = #tpu.dot_dimension_numbers<[1], [0], [0], [1], [0, 0, 1, 1], [], []>} : vector<8x8xf32>, vector<8x128xf32>, vector<8x128xf32> -> vector<8x128xf32>
    %c0_35 = arith.constant 0 : index
    %c0_36 = arith.constant 0 : index
    %53 = vector.load %arg6[%c0_35, %c0_36] : memref<128x128xf32, #tpu.memory_space<vmem>>, vector<128x128xf32>
    %cst_37 = arith.constant dense<0.000000e+00> : vector<8x128xf32>
    %54 = tpu.matmul %43, %53, %cst_37 {dimension_numbers = #tpu.dot_dimension_numbers<[1], [0], [0], [1], [0, 0, 1, 1], [], []>} : vector<8x128xf32>, vector<128x128xf32>, vector<8x128xf32> -> vector<8x128xf32>
    %55 = arith.addf %52, %54 : vector<8x128xf32>
    %c0_38 = arith.constant 0 : index
    %c0_39 = arith.constant 0 : index
    %56 = vector.load %arg5[%c0_38, %c0_39] : memref<1x128xf32, #tpu.memory_space<vmem>>, vector<1x128xf32>
    %57 = vector.broadcast %56 : vector<1x128xf32> to vector<8x128xf32>
    %58 = arith.addf %55, %57 : vector<8x128xf32>
    %cst_40 = arith.constant 0.000000e+00 : f32
    %59 = vector.broadcast %cst_40 : f32 to vector<8x128xf32>
    %60 = arith.maximumf %58, %59 : vector<8x128xf32>
    %61 = vector.broadcast %cst : f32 to vector<8x128xf32>
    %62 = arith.mulf %43, %61 : vector<8x128xf32>
    %63 = vector.broadcast %cst_2 : f32 to vector<8x128xf32>
    %64 = arith.mulf %60, %63 : vector<8x128xf32>
    %65 = arith.addf %62, %64 : vector<8x128xf32>
    %66 = arith.index_cast %c2_i32 : i32 to index
    %c0_41 = arith.constant 0 : index
    %c0_42 = arith.constant 0 : index
    %67 = vector.load %arg7[%66, %c0_41, %c0_42] : memref<8x8x128xf32, #tpu.memory_space<vmem>>, vector<1x8x128xf32>
    %68 = vector.shape_cast %67 : vector<1x8x128xf32> to vector<8x128xf32>
    %69 = vector.shape_cast %65 : vector<8x128xf32> to vector<1x8x128xf32>
    tpu.vector_store %arg7[%66, %c0_41, %c0_42], %69 {strides = array<i32>} : memref<8x8x128xf32, #tpu.memory_space<vmem>>, vector<1x8x128xf32>,
    %c3_i32 = arith.constant 3 : i32
    %70 = arith.index_cast %c3_i32 : i32 to index
    %c0_43 = arith.constant 0 : index
    %c0_44 = arith.constant 0 : index
    %71 = vector.load %arg2[%70, %c0_43, %c0_44] : memref<8x8x8xf32, #tpu.memory_space<vmem>>, vector<1x8x8xf32>
    %72 = vector.shape_cast %71 : vector<1x8x8xf32> to vector<8x8xf32>
    %c0_45 = arith.constant 0 : index
    %c0_46 = arith.constant 0 : index
    %73 = vector.load %arg4[%c0_45, %c0_46] : memref<8x128xf32, #tpu.memory_space<vmem>>, vector<8x128xf32>
    %cst_47 = arith.constant dense<0.000000e+00> : vector<8x128xf32>
    %74 = tpu.matmul %72, %73, %cst_47 {dimension_numbers = #tpu.dot_dimension_numbers<[1], [0], [0], [1], [0, 0, 1, 1], [], []>} : vector<8x8xf32>, vector<8x128xf32>, vector<8x128xf32> -> vector<8x128xf32>
    %c0_48 = arith.constant 0 : index
    %c0_49 = arith.constant 0 : index
    %75 = vector.load %arg6[%c0_48, %c0_49] : memref<128x128xf32, #tpu.memory_space<vmem>>, vector<128x128xf32>
    %cst_50 = arith.constant dense<0.000000e+00> : vector<8x128xf32>
    %76 = tpu.matmul %65, %75, %cst_50 {dimension_numbers = #tpu.dot_dimension_numbers<[1], [0], [0], [1], [0, 0, 1, 1], [], []>} : vector<8x128xf32>, vector<128x128xf32>, vector<8x128xf32> -> vector<8x128xf32>
    %77 = arith.addf %74, %76 : vector<8x128xf32>
    %c0_51 = arith.constant 0 : index
    %c0_52 = arith.constant 0 : index
    %78 = vector.load %arg5[%c0_51, %c0_52] : memref<1x128xf32, #tpu.memory_space<vmem>>, vector<1x128xf32>
    %79 = vector.broadcast %78 : vector<1x128xf32> to vector<8x128xf32>
    %80 = arith.addf %77, %79 : vector<8x128xf32>
    %cst_53 = arith.constant 0.000000e+00 : f32
    %81 = vector.broadcast %cst_53 : f32 to vector<8x128xf32>
    %82 = arith.maximumf %80, %81 : vector<8x128xf32>
    %83 = vector.broadcast %cst : f32 to vector<8x128xf32>
    %84 = arith.mulf %65, %83 : vector<8x128xf32>
    %85 = vector.broadcast %cst_2 : f32 to vector<8x128xf32>
    %86 = arith.mulf %82, %85 : vector<8x128xf32>
    %87 = arith.addf %84, %86 : vector<8x128xf32>
    %88 = arith.index_cast %c3_i32 : i32 to index
    %c0_54 = arith.constant 0 : index
    %c0_55 = arith.constant 0 : index
    %89 = vector.load %arg7[%88, %c0_54, %c0_55] : memref<8x8x128xf32, #tpu.memory_space<vmem>>, vector<1x8x128xf32>
    %90 = vector.shape_cast %89 : vector<1x8x128xf32> to vector<8x128xf32>
    %91 = vector.shape_cast %87 : vector<8x128xf32> to vector<1x8x128xf32>
    tpu.vector_store %arg7[%88, %c0_54, %c0_55], %91 {strides = array<i32>} : memref<8x8x128xf32, #tpu.memory_space<vmem>>, vector<1x8x128xf32>,
    %c4_i32 = arith.constant 4 : i32
    %92 = arith.index_cast %c4_i32 : i32 to index
    %c0_56 = arith.constant 0 : index
    %c0_57 = arith.constant 0 : index
    %93 = vector.load %arg2[%92, %c0_56, %c0_57] : memref<8x8x8xf32, #tpu.memory_space<vmem>>, vector<1x8x8xf32>
    %94 = vector.shape_cast %93 : vector<1x8x8xf32> to vector<8x8xf32>
    %c0_58 = arith.constant 0 : index
    %c0_59 = arith.constant 0 : index
    %95 = vector.load %arg4[%c0_58, %c0_59] : memref<8x128xf32, #tpu.memory_space<vmem>>, vector<8x128xf32>
    %cst_60 = arith.constant dense<0.000000e+00> : vector<8x128xf32>
    %96 = tpu.matmul %94, %95, %cst_60 {dimension_numbers = #tpu.dot_dimension_numbers<[1], [0], [0], [1], [0, 0, 1, 1], [], []>} : vector<8x8xf32>, vector<8x128xf32>, vector<8x128xf32> -> vector<8x128xf32>
    %c0_61 = arith.constant 0 : index
    %c0_62 = arith.constant 0 : index
    %97 = vector.load %arg6[%c0_61, %c0_62] : memref<128x128xf32, #tpu.memory_space<vmem>>, vector<128x128xf32>
    %cst_63 = arith.constant dense<0.000000e+00> : vector<8x128xf32>
    %98 = tpu.matmul %87, %97, %cst_63 {dimension_numbers = #tpu.dot_dimension_numbers<[1], [0], [0], [1], [0, 0, 1, 1], [], []>} : vector<8x128xf32>, vector<128x128xf32>, vector<8x128xf32> -> vector<8x128xf32>
    %99 = arith.addf %96, %98 : vector<8x128xf32>
    %c0_64 = arith.constant 0 : index
    %c0_65 = arith.constant 0 : index
    %100 = vector.load %arg5[%c0_64, %c0_65] : memref<1x128xf32, #tpu.memory_space<vmem>>, vector<1x128xf32>
    %101 = vector.broadcast %100 : vector<1x128xf32> to vector<8x128xf32>
    %102 = arith.addf %99, %101 : vector<8x128xf32>
    %cst_66 = arith.constant 0.000000e+00 : f32
    %103 = vector.broadcast %cst_66 : f32 to vector<8x128xf32>
    %104 = arith.maximumf %102, %103 : vector<8x128xf32>
    %105 = vector.broadcast %cst : f32 to vector<8x128xf32>
    %106 = arith.mulf %87, %105 : vector<8x128xf32>
    %107 = vector.broadcast %cst_2 : f32 to vector<8x128xf32>
    %108 = arith.mulf %104, %107 : vector<8x128xf32>
    %109 = arith.addf %106, %108 : vector<8x128xf32>
    %110 = arith.index_cast %c4_i32 : i32 to index
    %c0_67 = arith.constant 0 : index
    %c0_68 = arith.constant 0 : index
    %111 = vector.load %arg7[%110, %c0_67, %c0_68] : memref<8x8x128xf32, #tpu.memory_space<vmem>>, vector<1x8x128xf32>
    %112 = vector.shape_cast %111 : vector<1x8x128xf32> to vector<8x128xf32>
    %113 = vector.shape_cast %109 : vector<8x128xf32> to vector<1x8x128xf32>
    tpu.vector_store %arg7[%110, %c0_67, %c0_68], %113 {strides = array<i32>} : memref<8x8x128xf32, #tpu.memory_space<vmem>>, vector<1x8x128xf32>,
    %c5_i32 = arith.constant 5 : i32
    %114 = arith.index_cast %c5_i32 : i32 to index
    %c0_69 = arith.constant 0 : index
    %c0_70 = arith.constant 0 : index
    %115 = vector.load %arg2[%114, %c0_69, %c0_70] : memref<8x8x8xf32, #tpu.memory_space<vmem>>, vector<1x8x8xf32>
    %116 = vector.shape_cast %115 : vector<1x8x8xf32> to vector<8x8xf32>
    %c0_71 = arith.constant 0 : index
    %c0_72 = arith.constant 0 : index
    %117 = vector.load %arg4[%c0_71, %c0_72] : memref<8x128xf32, #tpu.memory_space<vmem>>, vector<8x128xf32>
    %cst_73 = arith.constant dense<0.000000e+00> : vector<8x128xf32>
    %118 = tpu.matmul %116, %117, %cst_73 {dimension_numbers = #tpu.dot_dimension_numbers<[1], [0], [0], [1], [0, 0, 1, 1], [], []>} : vector<8x8xf32>, vector<8x128xf32>, vector<8x128xf32> -> vector<8x128xf32>
    %c0_74 = arith.constant 0 : index
    %c0_75 = arith.constant 0 : index
    %119 = vector.load %arg6[%c0_74, %c0_75] : memref<128x128xf32, #tpu.memory_space<vmem>>, vector<128x128xf32>
    %cst_76 = arith.constant dense<0.000000e+00> : vector<8x128xf32>
    %120 = tpu.matmul %109, %119, %cst_76 {dimension_numbers = #tpu.dot_dimension_numbers<[1], [0], [0], [1], [0, 0, 1, 1], [], []>} : vector<8x128xf32>, vector<128x128xf32>, vector<8x128xf32> -> vector<8x128xf32>
    %121 = arith.addf %118, %120 : vector<8x128xf32>
    %c0_77 = arith.constant 0 : index
    %c0_78 = arith.constant 0 : index
    %122 = vector.load %arg5[%c0_77, %c0_78] : memref<1x128xf32, #tpu.memory_space<vmem>>, vector<1x128xf32>
    %123 = vector.broadcast %122 : vector<1x128xf32> to vector<8x128xf32>
    %124 = arith.addf %121, %123 : vector<8x128xf32>
    %cst_79 = arith.constant 0.000000e+00 : f32
    %125 = vector.broadcast %cst_79 : f32 to vector<8x128xf32>
    %126 = arith.maximumf %124, %125 : vector<8x128xf32>
    %127 = vector.broadcast %cst : f32 to vector<8x128xf32>
    %128 = arith.mulf %109, %127 : vector<8x128xf32>
    %129 = vector.broadcast %cst_2 : f32 to vector<8x128xf32>
    %130 = arith.mulf %126, %129 : vector<8x128xf32>
    %131 = arith.addf %128, %130 : vector<8x128xf32>
    %132 = arith.index_cast %c5_i32 : i32 to index
    %c0_80 = arith.constant 0 : index
    %c0_81 = arith.constant 0 : index
    %133 = vector.load %arg7[%132, %c0_80, %c0_81] : memref<8x8x128xf32, #tpu.memory_space<vmem>>, vector<1x8x128xf32>
    %134 = vector.shape_cast %133 : vector<1x8x128xf32> to vector<8x128xf32>
    %135 = vector.shape_cast %131 : vector<8x128xf32> to vector<1x8x128xf32>
    tpu.vector_store %arg7[%132, %c0_80, %c0_81], %135 {strides = array<i32>} : memref<8x8x128xf32, #tpu.memory_space<vmem>>, vector<1x8x128xf32>,
    %c6_i32 = arith.constant 6 : i32
    %136 = arith.index_cast %c6_i32 : i32 to index
    %c0_82 = arith.constant 0 : index
    %c0_83 = arith.constant 0 : index
    %137 = vector.load %arg2[%136, %c0_82, %c0_83] : memref<8x8x8xf32, #tpu.memory_space<vmem>>, vector<1x8x8xf32>
    %138 = vector.shape_cast %137 : vector<1x8x8xf32> to vector<8x8xf32>
    %c0_84 = arith.constant 0 : index
    %c0_85 = arith.constant 0 : index
    %139 = vector.load %arg4[%c0_84, %c0_85] : memref<8x128xf32, #tpu.memory_space<vmem>>, vector<8x128xf32>
    %cst_86 = arith.constant dense<0.000000e+00> : vector<8x128xf32>
    %140 = tpu.matmul %138, %139, %cst_86 {dimension_numbers = #tpu.dot_dimension_numbers<[1], [0], [0], [1], [0, 0, 1, 1], [], []>} : vector<8x8xf32>, vector<8x128xf32>, vector<8x128xf32> -> vector<8x128xf32>
    %c0_87 = arith.constant 0 : index
    %c0_88 = arith.constant 0 : index
    %141 = vector.load %arg6[%c0_87, %c0_88] : memref<128x128xf32, #tpu.memory_space<vmem>>, vector<128x128xf32>
    %cst_89 = arith.constant dense<0.000000e+00> : vector<8x128xf32>
    %142 = tpu.matmul %131, %141, %cst_89 {dimension_numbers = #tpu.dot_dimension_numbers<[1], [0], [0], [1], [0, 0, 1, 1], [], []>} : vector<8x128xf32>, vector<128x128xf32>, vector<8x128xf32> -> vector<8x128xf32>
    %143 = arith.addf %140, %142 : vector<8x128xf32>
    %c0_90 = arith.constant 0 : index
    %c0_91 = arith.constant 0 : index
    %144 = vector.load %arg5[%c0_90, %c0_91] : memref<1x128xf32, #tpu.memory_space<vmem>>, vector<1x128xf32>
    %145 = vector.broadcast %144 : vector<1x128xf32> to vector<8x128xf32>
    %146 = arith.addf %143, %145 : vector<8x128xf32>
    %cst_92 = arith.constant 0.000000e+00 : f32
    %147 = vector.broadcast %cst_92 : f32 to vector<8x128xf32>
    %148 = arith.maximumf %146, %147 : vector<8x128xf32>
    %149 = vector.broadcast %cst : f32 to vector<8x128xf32>
    %150 = arith.mulf %131, %149 : vector<8x128xf32>
    %151 = vector.broadcast %cst_2 : f32 to vector<8x128xf32>
    %152 = arith.mulf %148, %151 : vector<8x128xf32>
    %153 = arith.addf %150, %152 : vector<8x128xf32>
    %154 = arith.index_cast %c6_i32 : i32 to index
    %c0_93 = arith.constant 0 : index
    %c0_94 = arith.constant 0 : index
    %155 = vector.load %arg7[%154, %c0_93, %c0_94] : memref<8x8x128xf32, #tpu.memory_space<vmem>>, vector<1x8x128xf32>
    %156 = vector.shape_cast %155 : vector<1x8x128xf32> to vector<8x128xf32>
    %157 = vector.shape_cast %153 : vector<8x128xf32> to vector<1x8x128xf32>
    tpu.vector_store %arg7[%154, %c0_93, %c0_94], %157 {strides = array<i32>} : memref<8x8x128xf32, #tpu.memory_space<vmem>>, vector<1x8x128xf32>,
    %c7_i32 = arith.constant 7 : i32
    %158 = arith.index_cast %c7_i32 : i32 to index
    %c0_95 = arith.constant 0 : index
    %c0_96 = arith.constant 0 : index
    %159 = vector.load %arg2[%158, %c0_95, %c0_96] : memref<8x8x8xf32, #tpu.memory_space<vmem>>, vector<1x8x8xf32>
    %160 = vector.shape_cast %159 : vector<1x8x8xf32> to vector<8x8xf32>
    %c0_97 = arith.constant 0 : index
    %c0_98 = arith.constant 0 : index
    %161 = vector.load %arg4[%c0_97, %c0_98] : memref<8x128xf32, #tpu.memory_space<vmem>>, vector<8x128xf32>
    %cst_99 = arith.constant dense<0.000000e+00> : vector<8x128xf32>
    %162 = tpu.matmul %160, %161, %cst_99 {dimension_numbers = #tpu.dot_dimension_numbers<[1], [0], [0], [1], [0, 0, 1, 1], [], []>} : vector<8x8xf32>, vector<8x128xf32>, vector<8x128xf32> -> vector<8x128xf32>
    %c0_100 = arith.constant 0 : index
    %c0_101 = arith.constant 0 : index
    %163 = vector.load %arg6[%c0_100, %c0_101] : memref<128x128xf32, #tpu.memory_space<vmem>>, vector<128x128xf32>
    %cst_102 = arith.constant dense<0.000000e+00> : vector<8x128xf32>
    %164 = tpu.matmul %153, %163, %cst_102 {dimension_numbers = #tpu.dot_dimension_numbers<[1], [0], [0], [1], [0, 0, 1, 1], [], []>} : vector<8x128xf32>, vector<128x128xf32>, vector<8x128xf32> -> vector<8x128xf32>
    %165 = arith.addf %162, %164 : vector<8x128xf32>
    %c0_103 = arith.constant 0 : index
    %c0_104 = arith.constant 0 : index
    %166 = vector.load %arg5[%c0_103, %c0_104] : memref<1x128xf32, #tpu.memory_space<vmem>>, vector<1x128xf32>
    %167 = vector.broadcast %166 : vector<1x128xf32> to vector<8x128xf32>
    %168 = arith.addf %165, %167 : vector<8x128xf32>
    %cst_105 = arith.constant 0.000000e+00 : f32
    %169 = vector.broadcast %cst_105 : f32 to vector<8x128xf32>
    %170 = arith.maximumf %168, %169 : vector<8x128xf32>
    %171 = vector.broadcast %cst : f32 to vector<8x128xf32>
    %172 = arith.mulf %153, %171 : vector<8x128xf32>
    %173 = vector.broadcast %cst_2 : f32 to vector<8x128xf32>
    %174 = arith.mulf %170, %173 : vector<8x128xf32>
    %175 = arith.addf %172, %174 : vector<8x128xf32>
    %176 = arith.index_cast %c7_i32 : i32 to index
    %c0_106 = arith.constant 0 : index
    %c0_107 = arith.constant 0 : index
    %177 = vector.load %arg7[%176, %c0_106, %c0_107] : memref<8x8x128xf32, #tpu.memory_space<vmem>>, vector<1x8x128xf32>
    %178 = vector.shape_cast %177 : vector<1x8x128xf32> to vector<8x128xf32>
    %179 = vector.shape_cast %175 : vector<8x128xf32> to vector<1x8x128xf32>
    tpu.vector_store %arg7[%176, %c0_106, %c0_107], %179 {strides = array<i32>} : memref<8x8x128xf32, #tpu.memory_space<vmem>>, vector<1x8x128xf32>,
    %c8_i32 = arith.constant 8 : i32
    %c0_108 = arith.constant 0 : index
    %c0_109 = arith.constant 0 : index
    %180 = vector.load %arg8[%c0_108, %c0_109] : memref<8x128xf32, #tpu.memory_space<vmem>>, vector<8x128xf32>
    tpu.vector_store %arg8[%c0_108, %c0_109], %175 {strides = array<i32>} : memref<8x128xf32, #tpu.memory_space<vmem>>, vector<8x128xf32>,
    return
  }
  func.func @transform_0(%arg0: i32, %arg1: i32) -> (i32, i32, i32) {
    %c0_i32 = arith.constant 0 : i32
    %c0_i32_0 = arith.constant 0 : i32
    return %arg1, %arg0, %c0_i32 : i32, i32, i32
  }
  func.func @transform_1(%arg0: i32, %arg1: i32) -> (i32, i32) {
    %c0_i32 = arith.constant 0 : i32
    %c0_i32_0 = arith.constant 0 : i32
    return %arg0, %c0_i32 : i32, i32
  }
  func.func @transform_2(%arg0: i32, %arg1: i32) -> (i32, i32) {
    %c0_i32 = arith.constant 0 : i32
    %c0_i32_0 = arith.constant 0 : i32
    %c0_i32_1 = arith.constant 0 : i32
    return %c0_i32, %c0_i32_0 : i32, i32
  }
  func.func @transform_3(%arg0: i32, %arg1: i32) -> (i32, i32) {
    %c0_i32 = arith.constant 0 : i32
    %c0_i32_0 = arith.constant 0 : i32
    %c0_i32_1 = arith.constant 0 : i32
    return %c0_i32, %c0_i32_0 : i32, i32
  }
  func.func @transform_4(%arg0: i32, %arg1: i32) -> (i32, i32) {
    %c0_i32 = arith.constant 0 : i32
    %c0_i32_0 = arith.constant 0 : i32
    %c0_i32_1 = arith.constant 0 : i32
    return %c0_i32, %c0_i32_0 : i32, i32
  }
  func.func @transform_5(%arg0: i32, %arg1: i32) -> (i32, i32, i32) {
    %c0_i32 = arith.constant 0 : i32
    %c0_i32_0 = arith.constant 0 : i32
    return %arg1, %arg0, %c0_i32 : i32, i32, i32
  }
}

</mosaic_0001>

<llo_original>
// kernel: tpu_custom_call.1
$region0: #{tpu_custom_call.1}
  #allocation0 [shape = 'u32[]', space=smem, size = 0x4, offset = 0x4, fixed_abs, tag = 'smem constant byte address 0x4 - core index']
  #allocation1 [shape = 'u32[144,128]{1,0:T(1,128)}', space=vmem, size = 0x12000, scoped, tag = 'internal scratch']
  #allocation2 [shape = 'f32[8,128]{1,0:T(8,128)}', space=vmem, size = 0x1000, scoped, tag = 'scratch operand']
  %s0 = inlined_call_operand.hbm [shape: f32[8,8,8], index: 0, kind: input, shape index: {}]
  %s1 = inlined_call_operand.hbm [shape: f32[8,128], index: 1, kind: input, shape index: {}]
  %s2 = inlined_call_operand.hbm [shape: f32[8,128], index: 2, kind: input, shape index: {}]
  %s3 = inlined_call_operand.vmem [shape: f32[1,128], index: 3, kind: input, shape index: {}]
  %s4 = inlined_call_operand.hbm [shape: f32[128,128], index: 4, kind: input, shape index: {}]
  %s5 = inlined_call_operand.hbm [shape: f32[8,8,128], index: 5, kind: output, shape index: {}]
  %s6 = sld [smem:[#allocation0]]
  $region50: #{tpu_custom_call.1} parent=0
    _
  %s8 = ssub.s32 1, %s6
  %s9 = scalar_select 0, %s8, %s6
  $region1: #{tpu_custom_call.1} parent=0
    #allocation3 [shape = 'u8[32768]{0}', space=vmem, size = 0x8000, scoped, tag = 'input window, operand 0, single buffered']
    #allocation4 [shape = 's32[1]{0}', space=sflag, size = 0x4, scoped, tag = 'scoped memory for tpu_custom_call.1']
    #allocation5 [shape = 's32[1]{0}', space=sflag, size = 0x4, scoped, tag = 'scoped memory for tpu_custom_call.1']
    #allocation6 [shape = 'u8[4096]{0}', space=vmem, size = 0x1000, scoped, tag = 'input window, operand 1, single buffered']
    #allocation7 [shape = 's32[1]{0}', space=sflag, size = 0x4, scoped, tag = 'scoped memory for tpu_custom_call.1']
    #allocation8 [shape = 'u8[4096]{0}', space=vmem, size = 0x1000, scoped, tag = 'input window, operand 2, single buffered']
    #allocation9 [shape = 'u8[65536]{0}', space=vmem, size = 0x10000, scoped, tag = 'input window, operand 4, single buffered']
    #allocation10 [shape = 's32[1]{0}', space=sflag, size = 0x4, scoped, tag = 'scoped memory for tpu_custom_call.1']
    #allocation11 [shape = 'u8[32768]{0}', space=vmem, size = 0x8000, scoped, tag = 'output window, operand 0, single buffered']
    %10 = vsyncpa [#allocation4], 0
    %11 = vsyncpa [#allocation7], 0
    %12 = vsyncpa [#allocation10], 0
    %13 = vsyncpa [#allocation5], 0
    // Predicated region
    $region2: #{tpu_custom_call.1} parent=1 // pred_check
      _
    $region3: #{tpu_custom_call.1} parent=1 // pred_check_branch
      %15 = sbr.rel (0) target = $region5
    $region4: #{tpu_custom_call.1} parent=1 // pred_region
      %s17 = ssub.s32 1024, 1024
      %18 = vsyncadd [#allocation4], %s17
      %s19 = sshll.u32 [#allocation3], 4
      %s20 = int_to_ptr.vmem [resolvable:$true] %s19
      %25 = dma.hbm_to_vmem [thread:$0]  %s0, 1024, %s20, [#allocation4], 128, 128, 8
    $region5: #{tpu_custom_call.1} parent=1 // pred_fallthru
      _
    // Predicated region
    $region6: #{tpu_custom_call.1} parent=1 // pred_check
      _
    $region7: #{tpu_custom_call.1} parent=1 // pred_check_branch
      %27 = sbr.rel (0) target = $region9
    $region8: #{tpu_custom_call.1} parent=1 // pred_region
      %s29 = ssub.s32 128, 128
      %30 = vsyncadd [#allocation7], %s29
      %s32 = sshll.u32 [#allocation6], 4
      %s33 = int_to_ptr.vmem [resolvable:$true] %s32
      %35 = dma.hbm_to_vmem [thread:$0]  %s1, 128, %s33, [#allocation7]
    $region9: #{tpu_custom_call.1} parent=1 // pred_fallthru
      _
    // Predicated region
    $region10: #{tpu_custom_call.1} parent=1 // pred_check
      _
    $region11: #{tpu_custom_call.1} parent=1 // pred_check_branch
      %37 = sbr.rel (0) target = $region13
    $region12: #{tpu_custom_call.1} parent=1 // pred_region
      %s39 = ssub.s32 128, 128
      %40 = vsyncadd [#allocation7], %s39
      %s42 = sshll.u32 [#allocation8], 4
      %s43 = int_to_ptr.vmem [resolvable:$true] %s42
      %45 = dma.hbm_to_vmem [thread:$0]  %s2, 128, %s43, [#allocation7]
    $region13: #{tpu_custom_call.1} parent=1 // pred_fallthru
      _
    // Predicated region
    $region14: #{tpu_custom_call.1} parent=1 // pred_check
      _
    $region15: #{tpu_custom_call.1} parent=1 // pred_check_branch
      %47 = sbr.rel (0) target = $region17
    $region16: #{tpu_custom_call.1} parent=1 // pred_region
      _
    $region17: #{tpu_custom_call.1} parent=1 // pred_fallthru
      _
    // Predicated region
    $region18: #{tpu_custom_call.1} parent=1 // pred_check
      _
    $region19: #{tpu_custom_call.1} parent=1 // pred_check_branch
      %49 = sbr.rel (0) target = $region21
    $region20: #{tpu_custom_call.1} parent=1 // pred_region
      %s51 = ssub.s32 2048, 2048
      %52 = vsyncadd [#allocation10], %s51
      %s53 = sshll.u32 [#allocation9], 4
      %s54 = int_to_ptr.vmem [resolvable:$true] %s53
      %59 = dma.hbm_to_vmem [thread:$0]  %s4, 2048, %s54, [#allocation10], 128, 128, 8
    $region21: #{tpu_custom_call.1} parent=1 // pred_fallthru
      _
    // Predicated region
    $region22: #{tpu_custom_call.1} parent=1 // pred_check
      _
    $region23: #{tpu_custom_call.1} parent=1 // pred_check_branch
      %61 = sbr.rel (0) target = $region25
    $region24: #{tpu_custom_call.1} parent=1 // pred_region
      %62 = dma.done [#allocation4], 1024
    $region25: #{tpu_custom_call.1} parent=1 // pred_fallthru
      _
    // Predicated region
    $region26: #{tpu_custom_call.1} parent=1 // pred_check
      _
    $region27: #{tpu_custom_call.1} parent=1 // pred_check_branch
      %64 = sbr.rel (0) target = $region29
    $region28: #{tpu_custom_call.1} parent=1 // pred_region
      %65 = dma.done [#allocation7], 128
    $region29: #{tpu_custom_call.1} parent=1 // pred_fallthru
      _
    // Predicated region
    $region30: #{tpu_custom_call.1} parent=1 // pred_check
      _
    $region31: #{tpu_custom_call.1} parent=1 // pred_check_branch
      %67 = sbr.rel (0) target = $region33
    $region32: #{tpu_custom_call.1} parent=1 // pred_region
      %68 = dma.done [#allocation7], 128
    $region33: #{tpu_custom_call.1} parent=1 // pred_fallthru
      _
    // Predicated region
    $region34: #{tpu_custom_call.1} parent=1 // pred_check
      _
    $region35: #{tpu_custom_call.1} parent=1 // pred_check_branch
      %70 = sbr.rel (0) target = $region37
    $region36: #{tpu_custom_call.1} parent=1 // pred_region
      %71 = dma.done [#allocation10], 2048
    $region37: #{tpu_custom_call.1} parent=1 // pred_fallthru
      _
    %p72 = scmp.eq.s32.totalorder 0, 0
    // Predicated region
    $region38: #{tpu_custom_call.1} parent=1 // pred_check
      %p73 = pneg %p72
    $region39: #{tpu_custom_call.1} parent=1 // pred_check_branch
      %75 = sbr.rel (%p73) target = $region41
    $region40: #{tpu_custom_call.1} parent=1 // pred_region
      %v76 = vld [vmem:[#allocation6] sm:$0xff]
      %77 = vst [vmem:[#allocation2] sm:$0xff] %v76
    $region41: #{tpu_custom_call.1} parent=1 // pred_fallthru
      _
    %v78 = vld [vmem:[#allocation2] sm:$0xff]
    %v79 = vld [vmem:[#allocation3] sm:$0xff]
    %v80 = vld [vmem:[#allocation8] sm:$0xff]
    %v81 = vld [vmem:[#allocation9] sm:$0xff]
    %v82 = vld [vmem:[#allocation9 + $0x8] sm:$0xff]
    %v83 = vld [vmem:[#allocation9 + $0x10] sm:$0xff]
    %v84 = vld [vmem:[#allocation9 + $0x18] sm:$0xff]
    %v85 = vld [vmem:[#allocation9 + $0x20] sm:$0xff]
    %v86 = vld [vmem:[#allocation9 + $0x28] sm:$0xff]
    %v87 = vld [vmem:[#allocation9 + $0x30] sm:$0xff]
    %v88 = vld [vmem:[#allocation9 + $0x38] sm:$0xff]
    %v89 = vld [vmem:[#allocation9 + $0x40] sm:$0xff]
    %v90 = vld [vmem:[#allocation9 + $0x48] sm:$0xff]
    %v91 = vld [vmem:[#allocation9 + $0x50] sm:$0xff]
    %v92 = vld [vmem:[#allocation9 + $0x58] sm:$0xff]
    %v93 = vld [vmem:[#allocation9 + $0x60] sm:$0xff]
    %v94 = vld [vmem:[#allocation9 + $0x68] sm:$0xff]
    %v95 = vld [vmem:[#allocation9 + $0x70] sm:$0xff]
    %v96 = vld [vmem:[#allocation9 + $0x78] sm:$0xff]
    %97 = vmatprep.subr.mxu0 0.0
    %98 = vmatpush1.msra.mxu0 %v96
    %99 = vmatprep.subr.mxu0 0.0
    %100 = vmatpush1.msra.mxu0 %v95
    %101 = vmatprep.subr.mxu0 0.0
    %102 = vmatpush1.msra.mxu0 %v94
    %103 = vmatprep.subr.mxu0 0.0
    %104 = vmatpush1.msra.mxu0 %v93
    %105 = vmatprep.subr.mxu0 0.0
    %106 = vmatpush1.msra.mxu0 %v92
    %107 = vmatprep.subr.mxu0 0.0
    %108 = vmatpush1.msra.mxu0 %v91
    %109 = vmatprep.subr.mxu0 0.0
    %110 = vmatpush1.msra.mxu0 %v90
    %111 = vmatprep.subr.mxu0 0.0
    %112 = vmatpush1.msra.mxu0 %v89
    %113 = vmatprep.subr.mxu0 0.0
    %114 = vmatpush1.msra.mxu0 %v88
    %115 = vmatprep.subr.mxu0 0.0
    %116 = vmatpush1.msra.mxu0 %v87
    %117 = vmatprep.subr.mxu0 0.0
    %118 = vmatpush1.msra.mxu0 %v86
    %119 = vmatprep.subr.mxu0 0.0
    %120 = vmatpush1.msra.mxu0 %v85
    %121 = vmatprep.subr.mxu0 0.0
    %122 = vmatpush1.msra.mxu0 %v84
    %123 = vmatprep.subr.mxu0 0.0
    %124 = vmatpush1.msra.mxu0 %v83
    %125 = vmatprep.subr.mxu0 0.0
    %126 = vmatpush1.msra.mxu0 %v82
    %127 = vmatprep.subr.mxu0 0.0
    %128 = vmatpush1.msra.mxu0 %v81
    %129 = vmatprep.subr.mxu0 0.0
    %130 = vmatpush2.msra.mxu0 0.0
    %131 = vmatprep.subr.mxu0 0.0
    %132 = vmatpush2.msra.mxu0 0.0
    %133 = vmatprep.subr.mxu0 0.0
    %134 = vmatpush2.msra.mxu0 0.0
    %135 = vmatprep.subr.mxu0 0.0
    %136 = vmatpush2.msra.mxu0 0.0
    %137 = vmatprep.subr.mxu0 0.0
    %138 = vmatpush2.msra.mxu0 0.0
    %139 = vmatprep.subr.mxu0 0.0
    %140 = vmatpush2.msra.mxu0 0.0
    %141 = vmatprep.subr.mxu0 0.0
    %142 = vmatpush2.msra.mxu0 0.0
    %143 = vmatprep.subr.mxu0 0.0
    %144 = vmatpush2.msra.mxu0 0.0
    %145 = vmatprep.subr.mxu0 0.0
    %146 = vmatpush2.msra.mxu0 0.0
    %147 = vmatprep.subr.mxu0 0.0
    %148 = vmatpush2.msra.mxu0 0.0
    %149 = vmatprep.subr.mxu0 0.0
    %150 = vmatpush2.msra.mxu0 0.0
    %151 = vmatprep.subr.mxu0 0.0
    %152 = vmatpush2.msra.mxu0 0.0
    %153 = vmatprep.subr.mxu0 0.0
    %154 = vmatpush2.msra.mxu0 0.0
    %155 = vmatprep.subr.mxu0 0.0
    %156 = vmatpush2.msra.mxu0 0.0
    %157 = vmatprep.subr.mxu0 0.0
    %158 = vmatpush2.msra.mxu0 0.0
    %159 = vmatprep.subr.mxu0 0.0
    %160 = vmatpush2.msra.mxu0 0.0
    %161 = vmatprep.mubr.f32.mxu0 0.0
    %162 = vmatmul.mubr.f32.gmra.mxu0 %v78
    %v163 = vpop.f32.mrf.mxu0
    %v164 = vadd.f32 0.0, %v163
    %v165 = vpop.f32.mrf.mxu0
    %166 = vdwg.mxu0
    %vm167 = vcmask 64512
    %v169 = vsel %vm167, %v79, 0
    %171 = vmatprep.subr.mxu0 0.0
    %172 = vmatpush1.msra.mxu0 0.0
    %173 = vmatprep.subr.mxu0 0.0
    %174 = vmatpush1.msra.mxu0 0.0
    %175 = vmatprep.subr.mxu0 0.0
    %176 = vmatpush1.msra.mxu0 0.0
    %177 = vmatprep.subr.mxu0 0.0
    %178 = vmatpush1.msra.mxu0 0.0
    %179 = vmatprep.subr.mxu0 0.0
    %180 = vmatpush1.msra.mxu0 0.0
    %181 = vmatprep.subr.mxu0 0.0
    %182 = vmatpush1.msra.mxu0 0.0
    %183 = vmatprep.subr.mxu0 0.0
    %184 = vmatpush1.msra.mxu0 0.0
    %185 = vmatprep.subr.mxu0 0.0
    %186 = vmatpush1.msra.mxu0 0.0
    %187 = vmatprep.subr.mxu0 0.0
    %188 = vmatpush1.msra.mxu0 0.0
    %189 = vmatprep.subr.mxu0 0.0
    %190 = vmatpush1.msra.mxu0 0.0
    %191 = vmatprep.subr.mxu0 0.0
    %192 = vmatpush1.msra.mxu0 0.0
    %193 = vmatprep.subr.mxu0 0.0
    %194 = vmatpush1.msra.mxu0 0.0
    %195 = vmatprep.subr.mxu0 0.0
    %196 = vmatpush1.msra.mxu0 0.0
    %197 = vmatprep.subr.mxu0 0.0
    %198 = vmatpush1.msra.mxu0 0.0
    %199 = vmatprep.subr.mxu0 0.0
    %200 = vmatpush1.msra.mxu0 0.0
    %201 = vmatprep.subr.mxu0 0.0
    %202 = vmatpush1.msra.mxu0 %v80
    %203 = vmatprep.subr.mxu0 0.0
    %204 = vmatpush2.msra.mxu0 0.0
    %205 = vmatprep.subr.mxu0 0.0
    %206 = vmatpush2.msra.mxu0 0.0
    %207 = vmatprep.subr.mxu0 0.0
    %208 = vmatpush2.msra.mxu0 0.0
    %209 = vmatprep.subr.mxu0 0.0
    %210 = vmatpush2.msra.mxu0 0.0
    %211 = vmatprep.subr.mxu0 0.0
    %212 = vmatpush2.msra.mxu0 0.0
    %213 = vmatprep.subr.mxu0 0.0
    %214 = vmatpush2.msra.mxu0 0.0
    %215 = vmatprep.subr.mxu0 0.0
    %216 = vmatpush2.msra.mxu0 0.0
    %217 = vmatprep.subr.mxu0 0.0
    %218 = vmatpush2.msra.mxu0 0.0
    %219 = vmatprep.subr.mxu0 0.0
    %220 = vmatpush2.msra.mxu0 0.0
    %221 = vmatprep.subr.mxu0 0.0
    %222 = vmatpush2.msra.mxu0 0.0
    %223 = vmatprep.subr.mxu0 0.0
    %224 = vmatpush2.msra.mxu0 0.0
    %225 = vmatprep.subr.mxu0 0.0
    %226 = vmatpush2.msra.mxu0 0.0
    %227 = vmatprep.subr.mxu0 0.0
    %228 = vmatpush2.msra.mxu0 0.0
    %229 = vmatprep.subr.mxu0 0.0
    %230 = vmatpush2.msra.mxu0 0.0
    %231 = vmatprep.subr.mxu0 0.0
    %232 = vmatpush2.msra.mxu0 0.0
    %233 = vmatprep.subr.mxu0 0.0
    %234 = vmatpush2.msra.mxu0 0.0
    %235 = vmatprep.mubr.f32.mxu0 0.0
    %236 = vmatmul.mubr.f32.gmra.mxu0 %v169
    %v237 = vpop.f32.mrf.mxu0
    %v238 = vadd.f32 %v164, %v237
    %v239 = vpop.f32.mrf.mxu0
    %240 = vdwg.mxu0
    %v241 = vld [vmem:[%s3] sm:$0x1]
    %v243 = vlaneseq
    %v244 = vshrl.u32 %v243, 7
    %v245 = vsub.s32 0, %v244
    %v246 = vrot.slane %v241, %v245
    %v248 = vadd.f32 %v238, %v246
    %v249 = vmax.f32 %v248, 0.0
    %v250 = vmul.f32 %v78, 0.9
    %v251 = vmul.f32 %v249, 0.1
    %v252 = vadd.f32 %v250, %v251
    %253 = vst [vmem:[#allocation11] sm:$0xff] %v252
    %s254 = scalar_lea.vmem [#allocation3], 8
    %v255 = vld [vmem:[%s254] sm:$0xff]
    %v256 = vld [vmem:[#allocation8] sm:$0xff]
    %v257 = vld [vmem:[#allocation9] sm:$0xff]
    %v258 = vld [vmem:[#allocation9 + $0x8] sm:$0xff]
    %v259 = vld [vmem:[#allocation9 + $0x10] sm:$0xff]
    %v260 = vld [vmem:[#allocation9 + $0x18] sm:$0xff]
    %v261 = vld [vmem:[#allocation9 + $0x20] sm:$0xff]
    %v262 = vld [vmem:[#allocation9 + $0x28] sm:$0xff]
    %v263 = vld [vmem:[#allocation9 + $0x30] sm:$0xff]
    %v264 = vld [vmem:[#allocation9 + $0x38] sm:$0xff]
    %v265 = vld [vmem:[#allocation9 + $0x40] sm:$0xff]
    %v266 = vld [vmem:[#allocation9 + $0x48] sm:$0xff]
    %v267 = vld [vmem:[#allocation9 + $0x50] sm:$0xff]
    %v268 = vld [vmem:[#allocation9 + $0x58] sm:$0xff]
    %v269 = vld [vmem:[#allocation9 + $0x60] sm:$0xff]
    %v270 = vld [vmem:[#allocation9 + $0x68] sm:$0xff]
    %v271 = vld [vmem:[#allocation9 + $0x70] sm:$0xff]
    %v272 = vld [vmem:[#allocation9 + $0x78] sm:$0xff]
    %273 = vmatprep.subr.mxu0 0.0
    %274 = vmatpush1.msra.mxu0 %v272
    %275 = vmatprep.subr.mxu0 0.0
    %276 = vmatpush1.msra.mxu0 %v271
    %277 = vmatprep.subr.mxu0 0.0
    %278 = vmatpush1.msra.mxu0 %v270
    %279 = vmatprep.subr.mxu0 0.0
    %280 = vmatpush1.msra.mxu0 %v269
    %281 = vmatprep.subr.mxu0 0.0
    %282 = vmatpush1.msra.mxu0 %v268
    %283 = vmatprep.subr.mxu0 0.0
    %284 = vmatpush1.msra.mxu0 %v267
    %285 = vmatprep.subr.mxu0 0.0
    %286 = vmatpush1.msra.mxu0 %v266
    %287 = vmatprep.subr.mxu0 0.0
    %288 = vmatpush1.msra.mxu0 %v265
    %289 = vmatprep.subr.mxu0 0.0
    %290 = vmatpush1.msra.mxu0 %v264
    %291 = vmatprep.subr.mxu0 0.0
    %292 = vmatpush1.msra.mxu0 %v263
    %293 = vmatprep.subr.mxu0 0.0
    %294 = vmatpush1.msra.mxu0 %v262
    %295 = vmatprep.subr.mxu0 0.0
    %296 = vmatpush1.msra.mxu0 %v261
    %297 = vmatprep.subr.mxu0 0.0
    %298 = vmatpush1.msra.mxu0 %v260
    %299 = vmatprep.subr.mxu0 0.0
    %300 = vmatpush1.msra.mxu0 %v259
    %301 = vmatprep.subr.mxu0 0.0
    %302 = vmatpush1.msra.mxu0 %v258
    %303 = vmatprep.subr.mxu0 0.0
    %304 = vmatpush1.msra.mxu0 %v257
    %305 = vmatprep.subr.mxu0 0.0
    %306 = vmatpush2.msra.mxu0 0.0
    %307 = vmatprep.subr.mxu0 0.0
    %308 = vmatpush2.msra.mxu0 0.0
    %309 = vmatprep.subr.mxu0 0.0
    %310 = vmatpush2.msra.mxu0 0.0
    %311 = vmatprep.subr.mxu0 0.0
    %312 = vmatpush2.msra.mxu0 0.0
    %313 = vmatprep.subr.mxu0 0.0
    %314 = vmatpush2.msra.mxu0 0.0
    %315 = vmatprep.subr.mxu0 0.0
    %316 = vmatpush2.msra.mxu0 0.0
    %317 = vmatprep.subr.mxu0 0.0
    %318 = vmatpush2.msra.mxu0 0.0
    %319 = vmatprep.subr.mxu0 0.0
    %320 = vmatpush2.msra.mxu0 0.0
    %321 = vmatprep.subr.mxu0 0.0
    %322 = vmatpush2.msra.mxu0 0.0
    %323 = vmatprep.subr.mxu0 0.0
    %324 = vmatpush2.msra.mxu0 0.0
    %325 = vmatprep.subr.mxu0 0.0
    %326 = vmatpush2.msra.mxu0 0.0
    %327 = vmatprep.subr.mxu0 0.0
    %328 = vmatpush2.msra.mxu0 0.0
    %329 = vmatprep.subr.mxu0 0.0
    %330 = vmatpush2.msra.mxu0 0.0
    %331 = vmatprep.subr.mxu0 0.0
    %332 = vmatpush2.msra.mxu0 0.0
    %333 = vmatprep.subr.mxu0 0.0
    %334 = vmatpush2.msra.mxu0 0.0
    %335 = vmatprep.subr.mxu0 0.0
    %336 = vmatpush2.msra.mxu0 0.0
    %337 = vmatprep.mubr.f32.mxu0 0.0
    %338 = vmatmul.mubr.f32.gmra.mxu0 %v252
    %v339 = vpop.f32.mrf.mxu0
    %v340 = vadd.f32 0.0, %v339
    %v341 = vpop.f32.mrf.mxu0
    %342 = vdwg.mxu0
    %v344 = vsel %vm167, %v255, 0
    %346 = vmatprep.subr.mxu0 0.0
    %347 = vmatpush1.msra.mxu0 0.0
    %348 = vmatprep.subr.mxu0 0.0
    %349 = vmatpush1.msra.mxu0 0.0
    %350 = vmatprep.subr.mxu0 0.0
    %351 = vmatpush1.msra.mxu0 0.0
    %352 = vmatprep.subr.mxu0 0.0
    %353 = vmatpush1.msra.mxu0 0.0
    %354 = vmatprep.subr.mxu0 0.0
    %355 = vmatpush1.msra.mxu0 0.0
    %356 = vmatprep.subr.mxu0 0.0
    %357 = vmatpush1.msra.mxu0 0.0
    %358 = vmatprep.subr.mxu0 0.0
    %359 = vmatpush1.msra.mxu0 0.0
    %360 = vmatprep.subr.mxu0 0.0
    %361 = vmatpush1.msra.mxu0 0.0
    %362 = vmatprep.subr.mxu0 0.0
    %363 = vmatpush1.msra.mxu0 0.0
    %364 = vmatprep.subr.mxu0 0.0
    %365 = vmatpush1.msra.mxu0 0.0
    %366 = vmatprep.subr.mxu0 0.0
    %367 = vmatpush1.msra.mxu0 0.0
    %368 = vmatprep.subr.mxu0 0.0
    %369 = vmatpush1.msra.mxu0 0.0
    %370 = vmatprep.subr.mxu0 0.0
    %371 = vmatpush1.msra.mxu0 0.0
    %372 = vmatprep.subr.mxu0 0.0
    %373 = vmatpush1.msra.mxu0 0.0
    %374 = vmatprep.subr.mxu0 0.0
    %375 = vmatpush1.msra.mxu0 0.0
    %376 = vmatprep.subr.mxu0 0.0
    %377 = vmatpush1.msra.mxu0 %v256
    %378 = vmatprep.subr.mxu0 0.0
    %379 = vmatpush2.msra.mxu0 0.0
    %380 = vmatprep.subr.mxu0 0.0
    %381 = vmatpush2.msra.mxu0 0.0
    %382 = vmatprep.subr.mxu0 0.0
    %383 = vmatpush2.msra.mxu0 0.0
    %384 = vmatprep.subr.mxu0 0.0
    %385 = vmatpush2.msra.mxu0 0.0
    %386 = vmatprep.subr.mxu0 0.0
    %387 = vmatpush2.msra.mxu0 0.0
    %388 = vmatprep.subr.mxu0 0.0
    %389 = vmatpush2.msra.mxu0 0.0
    %390 = vmatprep.subr.mxu0 0.0
    %391 = vmatpush2.msra.mxu0 0.0
    %392 = vmatprep.subr.mxu0 0.0
    %393 = vmatpush2.msra.mxu0 0.0
    %394 = vmatprep.subr.mxu0 0.0
    %395 = vmatpush2.msra.mxu0 0.0
    %396 = vmatprep.subr.mxu0 0.0
    %397 = vmatpush2.msra.mxu0 0.0
    %398 = vmatprep.subr.mxu0 0.0
    %399 = vmatpush2.msra.mxu0 0.0
    %400 = vmatprep.subr.mxu0 0.0
    %401 = vmatpush2.msra.mxu0 0.0
    %402 = vmatprep.subr.mxu0 0.0
    %403 = vmatpush2.msra.mxu0 0.0
    %404 = vmatprep.subr.mxu0 0.0
    %405 = vmatpush2.msra.mxu0 0.0
    %406 = vmatprep.subr.mxu0 0.0
    %407 = vmatpush2.msra.mxu0 0.0
    %408 = vmatprep.subr.mxu0 0.0
    %409 = vmatpush2.msra.mxu0 0.0
    %410 = vmatprep.mubr.f32.mxu0 0.0
    %411 = vmatmul.mubr.f32.gmra.mxu0 %v344
    %v412 = vpop.f32.mrf.mxu0
    %v413 = vadd.f32 %v340, %v412
    %v414 = vpop.f32.mrf.mxu0
    %415 = vdwg.mxu0
    %v416 = vld [vmem:[%s3] sm:$0x1]
    %v418 = vlaneseq
    %v419 = vshrl.u32 %v418, 7
    %v420 = vsub.s32 0, %v419
    %v421 = vrot.slane %v416, %v420
    %v423 = vadd.f32 %v413, %v421
    %v424 = vmax.f32 %v423, 0.0
    %v425 = vmul.f32 %v252, 0.9
    %v426 = vmul.f32 %v424, 0.1
    %v427 = vadd.f32 %v425, %v426
    %s428 = scalar_lea.vmem [#allocation11], 8
    %429 = vst [vmem:[%s428] sm:$0xff] %v427
    %s430 = scalar_lea.vmem [#allocation3], 16
    %v431 = vld [vmem:[%s430] sm:$0xff]
    %v432 = vld [vmem:[#allocation8] sm:$0xff]
    %v433 = vld [vmem:[#allocation9] sm:$0xff]
    %v434 = vld [vmem:[#allocation9 + $0x8] sm:$0xff]
    %v435 = vld [vmem:[#allocation9 + $0x10] sm:$0xff]
    %v436 = vld [vmem:[#allocation9 + $0x18] sm:$0xff]
    %v437 = vld [vmem:[#allocation9 + $0x20] sm:$0xff]
    %v438 = vld [vmem:[#allocation9 + $0x28] sm:$0xff]
    %v439 = vld [vmem:[#allocation9 + $0x30] sm:$0xff]
    %v440 = vld [vmem:[#allocation9 + $0x38] sm:$0xff]
    %v441 = vld [vmem:[#allocation9 + $0x40] sm:$0xff]
    %v442 = vld [vmem:[#allocation9 + $0x48] sm:$0xff]
    %v443 = vld [vmem:[#allocation9 + $0x50] sm:$0xff]
    %v444 = vld [vmem:[#allocation9 + $0x58] sm:$0xff]
    %v445 = vld [vmem:[#allocation9 + $0x60] sm:$0xff]
    %v446 = vld [vmem:[#allocation9 + $0x68] sm:$0xff]
    %v447 = vld [vmem:[#allocation9 + $0x70] sm:$0xff]
    %v448 = vld [vmem:[#allocation9 + $0x78] sm:$0xff]
    %449 = vmatprep.subr.mxu0 0.0
    %450 = vmatpush1.msra.mxu0 %v448
    %451 = vmatprep.subr.mxu0 0.0
    %452 = vmatpush1.msra.mxu0 %v447
    %453 = vmatprep.subr.mxu0 0.0
    %454 = vmatpush1.msra.mxu0 %v446
    %455 = vmatprep.subr.mxu0 0.0
    %456 = vmatpush1.msra.mxu0 %v445
    %457 = vmatprep.subr.mxu0 0.0
    %458 = vmatpush1.msra.mxu0 %v444
    %459 = vmatprep.subr.mxu0 0.0
    %460 = vmatpush1.msra.mxu0 %v443
    %461 = vmatprep.subr.mxu0 0.0
    %462 = vmatpush1.msra.mxu0 %v442
    %463 = vmatprep.subr.mxu0 0.0
    %464 = vmatpush1.msra.mxu0 %v441
    %465 = vmatprep.subr.mxu0 0.0
    %466 = vmatpush1.msra.mxu0 %v440
    %467 = vmatprep.subr.mxu0 0.0
    %468 = vmatpush1.msra.mxu0 %v439
    %469 = vmatprep.subr.mxu0 0.0
    %470 = vmatpush1.msra.mxu0 %v438
    %471 = vmatprep.subr.mxu0 0.0
    %472 = vmatpush1.msra.mxu0 %v437
    %473 = vmatprep.subr.mxu0 0.0
    %474 = vmatpush1.msra.mxu0 %v436
    %475 = vmatprep.subr.mxu0 0.0
    %476 = vmatpush1.msra.mxu0 %v435
    %477 = vmatprep.subr.mxu0 0.0
    %478 = vmatpush1.msra.mxu0 %v434
    %479 = vmatprep.subr.mxu0 0.0
    %480 = vmatpush1.msra.mxu0 %v433
    %481 = vmatprep.subr.mxu0 0.0
    %482 = vmatpush2.msra.mxu0 0.0
    %483 = vmatprep.subr.mxu0 0.0
    %484 = vmatpush2.msra.mxu0 0.0
    %485 = vmatprep.subr.mxu0 0.0
    %486 = vmatpush2.msra.mxu0 0.0
    %487 = vmatprep.subr.mxu0 0.0
    %488 = vmatpush2.msra.mxu0 0.0
    %489 = vmatprep.subr.mxu0 0.0
    %490 = vmatpush2.msra.mxu0 0.0
    %491 = vmatprep.subr.mxu0 0.0
    %492 = vmatpush2.msra.mxu0 0.0
    %493 = vmatprep.subr.mxu0 0.0
    %494 = vmatpush2.msra.mxu0 0.0
    %495 = vmatprep.subr.mxu0 0.0
    %496 = vmatpush2.msra.mxu0 0.0
    %497 = vmatprep.subr.mxu0 0.0
    %498 = vmatpush2.msra.mxu0 0.0
    %499 = vmatprep.subr.mxu0 0.0
    %500 = vmatpush2.msra.mxu0 0.0
    %501 = vmatprep.subr.mxu0 0.0
    %502 = vmatpush2.msra.mxu0 0.0
    %503 = vmatprep.subr.mxu0 0.0
    %504 = vmatpush2.msra.mxu0 0.0
    %505 = vmatprep.subr.mxu0 0.0
    %506 = vmatpush2.msra.mxu0 0.0
    %507 = vmatprep.subr.mxu0 0.0
    %508 = vmatpush2.msra.mxu0 0.0
    %509 = vmatprep.subr.mxu0 0.0
    %510 = vmatpush2.msra.mxu0 0.0
    %511 = vmatprep.subr.mxu0 0.0
    %512 = vmatpush2.msra.mxu0 0.0
    %513 = vmatprep.mubr.f32.mxu0 0.0
    %514 = vmatmul.mubr.f32.gmra.mxu0 %v427
    %v515 = vpop.f32.mrf.mxu0
    %v516 = vadd.f32 0.0, %v515
    %v517 = vpop.f32.mrf.mxu0
    %518 = vdwg.mxu0
    %v520 = vsel %vm167, %v431, 0
    %522 = vmatprep.subr.mxu0 0.0
    %523 = vmatpush1.msra.mxu0 0.0
    %524 = vmatprep.subr.mxu0 0.0
    %525 = vmatpush1.msra.mxu0 0.0
    %526 = vmatprep.subr.mxu0 0.0
    %527 = vmatpush1.msra.mxu0 0.0
    %528 = vmatprep.subr.mxu0 0.0
    %529 = vmatpush1.msra.mxu0 0.0
    %530 = vmatprep.subr.mxu0 0.0
    %531 = vmatpush1.msra.mxu0 0.0
    %532 = vmatprep.subr.mxu0 0.0
    %533 = vmatpush1.msra.mxu0 0.0
    %534 = vmatprep.subr.mxu0 0.0
    %535 = vmatpush1.msra.mxu0 0.0
    %536 = vmatprep.subr.mxu0 0.0
    %537 = vmatpush1.msra.mxu0 0.0
    %538 = vmatprep.subr.mxu0 0.0
    %539 = vmatpush1.msra.mxu0 0.0
    %540 = vmatprep.subr.mxu0 0.0
    %541 = vmatpush1.msra.mxu0 0.0
    %542 = vmatprep.subr.mxu0 0.0
    %543 = vmatpush1.msra.mxu0 0.0
    %544 = vmatprep.subr.mxu0 0.0
    %545 = vmatpush1.msra.mxu0 0.0
    %546 = vmatprep.subr.mxu0 0.0
    %547 = vmatpush1.msra.mxu0 0.0
    %548 = vmatprep.subr.mxu0 0.0
    %549 = vmatpush1.msra.mxu0 0.0
    %550 = vmatprep.subr.mxu0 0.0
    %551 = vmatpush1.msra.mxu0 0.0
    %552 = vmatprep.subr.mxu0 0.0
    %553 = vmatpush1.msra.mxu0 %v432
    %554 = vmatprep.subr.mxu0 0.0
    %555 = vmatpush2.msra.mxu0 0.0
    %556 = vmatprep.subr.mxu0 0.0
    %557 = vmatpush2.msra.mxu0 0.0
    %558 = vmatprep.subr.mxu0 0.0
    %559 = vmatpush2.msra.mxu0 0.0
    %560 = vmatprep.subr.mxu0 0.0
    %561 = vmatpush2.msra.mxu0 0.0
    %562 = vmatprep.subr.mxu0 0.0
    %563 = vmatpush2.msra.mxu0 0.0
    %564 = vmatprep.subr.mxu0 0.0
    %565 = vmatpush2.msra.mxu0 0.0
    %566 = vmatprep.subr.mxu0 0.0
    %567 = vmatpush2.msra.mxu0 0.0
    %568 = vmatprep.subr.mxu0 0.0
    %569 = vmatpush2.msra.mxu0 0.0
    %570 = vmatprep.subr.mxu0 0.0
    %571 = vmatpush2.msra.mxu0 0.0
    %572 = vmatprep.subr.mxu0 0.0
    %573 = vmatpush2.msra.mxu0 0.0
    %574 = vmatprep.subr.mxu0 0.0
    %575 = vmatpush2.msra.mxu0 0.0
    %576 = vmatprep.subr.mxu0 0.0
    %577 = vmatpush2.msra.mxu0 0.0
    %578 = vmatprep.subr.mxu0 0.0
    %579 = vmatpush2.msra.mxu0 0.0
    %580 = vmatprep.subr.mxu0 0.0
    %581 = vmatpush2.msra.mxu0 0.0
    %582 = vmatprep.subr.mxu0 0.0
    %583 = vmatpush2.msra.mxu0 0.0
    %584 = vmatprep.subr.mxu0 0.0
    %585 = vmatpush2.msra.mxu0 0.0
    %586 = vmatprep.mubr.f32.mxu0 0.0
    %587 = vmatmul.mubr.f32.gmra.mxu0 %v520
    %v588 = vpop.f32.mrf.mxu0
    %v589 = vadd.f32 %v516, %v588
    %v590 = vpop.f32.mrf.mxu0
    %591 = vdwg.mxu0
    %v592 = vld [vmem:[%s3] sm:$0x1]
    %v594 = vlaneseq
    %v595 = vshrl.u32 %v594, 7
    %v596 = vsub.s32 0, %v595
    %v597 = vrot.slane %v592, %v596
    %v599 = vadd.f32 %v589, %v597
    %v600 = vmax.f32 %v599, 0.0
    %v601 = vmul.f32 %v427, 0.9
    %v602 = vmul.f32 %v600, 0.1
    %v603 = vadd.f32 %v601, %v602
    %s604 = scalar_lea.vmem [#allocation11], 16
    %605 = vst [vmem:[%s604] sm:$0xff] %v603
    %s606 = scalar_lea.vmem [#allocation3], 24
    %v607 = vld [vmem:[%s606] sm:$0xff]
    %v608 = vld [vmem:[#allocation8] sm:$0xff]
    %v609 = vld [vmem:[#allocation9] sm:$0xff]
    %v610 = vld [vmem:[#allocation9 + $0x8] sm:$0xff]
    %v611 = vld [vmem:[#allocation9 + $0x10] sm:$0xff]
    %v612 = vld [vmem:[#allocation9 + $0x18] sm:$0xff]
    %v613 = vld [vmem:[#allocation9 + $0x20] sm:$0xff]
    %v614 = vld [vmem:[#allocation9 + $0x28] sm:$0xff]
    %v615 = vld [vmem:[#allocation9 + $0x30] sm:$0xff]
    %v616 = vld [vmem:[#allocation9 + $0x38] sm:$0xff]
    %v617 = vld [vmem:[#allocation9 + $0x40] sm:$0xff]
    %v618 = vld [vmem:[#allocation9 + $0x48] sm:$0xff]
    %v619 = vld [vmem:[#allocation9 + $0x50] sm:$0xff]
    %v620 = vld [vmem:[#allocation9 + $0x58] sm:$0xff]
    %v621 = vld [vmem:[#allocation9 + $0x60] sm:$0xff]
    %v622 = vld [vmem:[#allocation9 + $0x68] sm:$0xff]
    %v623 = vld [vmem:[#allocation9 + $0x70] sm:$0xff]
    %v624 = vld [vmem:[#allocation9 + $0x78] sm:$0xff]
    %625 = vmatprep.subr.mxu0 0.0
    %626 = vmatpush1.msra.mxu0 %v624
    %627 = vmatprep.subr.mxu0 0.0
    %628 = vmatpush1.msra.mxu0 %v623
    %629 = vmatprep.subr.mxu0 0.0
    %630 = vmatpush1.msra.mxu0 %v622
    %631 = vmatprep.subr.mxu0 0.0
    %632 = vmatpush1.msra.mxu0 %v621
    %633 = vmatprep.subr.mxu0 0.0
    %634 = vmatpush1.msra.mxu0 %v620
    %635 = vmatprep.subr.mxu0 0.0
    %636 = vmatpush1.msra.mxu0 %v619
    %637 = vmatprep.subr.mxu0 0.0
    %638 = vmatpush1.msra.mxu0 %v618
    %639 = vmatprep.subr.mxu0 0.0
    %640 = vmatpush1.msra.mxu0 %v617
    %641 = vmatprep.subr.mxu0 0.0
    %642 = vmatpush1.msra.mxu0 %v616
    %643 = vmatprep.subr.mxu0 0.0
    %644 = vmatpush1.msra.mxu0 %v615
    %645 = vmatprep.subr.mxu0 0.0
    %646 = vmatpush1.msra.mxu0 %v614
    %647 = vmatprep.subr.mxu0 0.0
    %648 = vmatpush1.msra.mxu0 %v613
    %649 = vmatprep.subr.mxu0 0.0
    %650 = vmatpush1.msra.mxu0 %v612
    %651 = vmatprep.subr.mxu0 0.0
    %652 = vmatpush1.msra.mxu0 %v611
    %653 = vmatprep.subr.mxu0 0.0
    %654 = vmatpush1.msra.mxu0 %v610
    %655 = vmatprep.subr.mxu0 0.0
    %656 = vmatpush1.msra.mxu0 %v609
    %657 = vmatprep.subr.mxu0 0.0
    %658 = vmatpush2.msra.mxu0 0.0
    %659 = vmatprep.subr.mxu0 0.0
    %660 = vmatpush2.msra.mxu0 0.0
    %661 = vmatprep.subr.mxu0 0.0
    %662 = vmatpush2.msra.mxu0 0.0
    %663 = vmatprep.subr.mxu0 0.0
    %664 = vmatpush2.msra.mxu0 0.0
    %665 = vmatprep.subr.mxu0 0.0
    %666 = vmatpush2.msra.mxu0 0.0
    %667 = vmatprep.subr.mxu0 0.0
    %668 = vmatpush2.msra.mxu0 0.0
    %669 = vmatprep.subr.mxu0 0.0
    %670 = vmatpush2.msra.mxu0 0.0
    %671 = vmatprep.subr.mxu0 0.0
    %672 = vmatpush2.msra.mxu0 0.0
    %673 = vmatprep.subr.mxu0 0.0
    %674 = vmatpush2.msra.mxu0 0.0
    %675 = vmatprep.subr.mxu0 0.0
    %676 = vmatpush2.msra.mxu0 0.0
    %677 = vmatprep.subr.mxu0 0.0
    %678 = vmatpush2.msra.mxu0 0.0
    %679 = vmatprep.subr.mxu0 0.0
    %680 = vmatpush2.msra.mxu0 0.0
    %681 = vmatprep.subr.mxu0 0.0
    %682 = vmatpush2.msra.mxu0 0.0
    %683 = vmatprep.subr.mxu0 0.0
    %684 = vmatpush2.msra.mxu0 0.0
    %685 = vmatprep.subr.mxu0 0.0
    %686 = vmatpush2.msra.mxu0 0.0
    %687 = vmatprep.subr.mxu0 0.0
    %688 = vmatpush2.msra.mxu0 0.0
    %689 = vmatprep.mubr.f32.mxu0 0.0
    %690 = vmatmul.mubr.f32.gmra.mxu0 %v603
    %v691 = vpop.f32.mrf.mxu0
    %v692 = vadd.f32 0.0, %v691
    %v693 = vpop.f32.mrf.mxu0
    %694 = vdwg.mxu0
    %v696 = vsel %vm167, %v607, 0
    %698 = vmatprep.subr.mxu0 0.0
    %699 = vmatpush1.msra.mxu0 0.0
    %700 = vmatprep.subr.mxu0 0.0
    %701 = vmatpush1.msra.mxu0 0.0
    %702 = vmatprep.subr.mxu0 0.0
    %703 = vmatpush1.msra.mxu0 0.0
    %704 = vmatprep.subr.mxu0 0.0
    %705 = vmatpush1.msra.mxu0 0.0
    %706 = vmatprep.subr.mxu0 0.0
    %707 = vmatpush1.msra.mxu0 0.0
    %708 = vmatprep.subr.mxu0 0.0
    %709 = vmatpush1.msra.mxu0 0.0
    %710 = vmatprep.subr.mxu0 0.0
    %711 = vmatpush1.msra.mxu0 0.0
    %712 = vmatprep.subr.mxu0 0.0
    %713 = vmatpush1.msra.mxu0 0.0
    %714 = vmatprep.subr.mxu0 0.0
    %715 = vmatpush1.msra.mxu0 0.0
    %716 = vmatprep.subr.mxu0 0.0
    %717 = vmatpush1.msra.mxu0 0.0
    %718 = vmatprep.subr.mxu0 0.0
    %719 = vmatpush1.msra.mxu0 0.0
    %720 = vmatprep.subr.mxu0 0.0
    %721 = vmatpush1.msra.mxu0 0.0
    %722 = vmatprep.subr.mxu0 0.0
    %723 = vmatpush1.msra.mxu0 0.0
    %724 = vmatprep.subr.mxu0 0.0
    %725 = vmatpush1.msra.mxu0 0.0
    %726 = vmatprep.subr.mxu0 0.0
    %727 = vmatpush1.msra.mxu0 0.0
    %728 = vmatprep.subr.mxu0 0.0
    %729 = vmatpush1.msra.mxu0 %v608
    %730 = vmatprep.subr.mxu0 0.0
    %731 = vmatpush2.msra.mxu0 0.0
    %732 = vmatprep.subr.mxu0 0.0
    %733 = vmatpush2.msra.mxu0 0.0
    %734 = vmatprep.subr.mxu0 0.0
    %735 = vmatpush2.msra.mxu0 0.0
    %736 = vmatprep.subr.mxu0 0.0
    %737 = vmatpush2.msra.mxu0 0.0
    %738 = vmatprep.subr.mxu0 0.0
    %739 = vmatpush2.msra.mxu0 0.0
    %740 = vmatprep.subr.mxu0 0.0
    %741 = vmatpush2.msra.mxu0 0.0
    %742 = vmatprep.subr.mxu0 0.0
    %743 = vmatpush2.msra.mxu0 0.0
    %744 = vmatprep.subr.mxu0 0.0
    %745 = vmatpush2.msra.mxu0 0.0
    %746 = vmatprep.subr.mxu0 0.0
    %747 = vmatpush2.msra.mxu0 0.0
    %748 = vmatprep.subr.mxu0 0.0
    %749 = vmatpush2.msra.mxu0 0.0
    %750 = vmatprep.subr.mxu0 0.0
    %751 = vmatpush2.msra.mxu0 0.0
    %752 = vmatprep.subr.mxu0 0.0
    %753 = vmatpush2.msra.mxu0 0.0
    %754 = vmatprep.subr.mxu0 0.0
    %755 = vmatpush2.msra.mxu0 0.0
    %756 = vmatprep.subr.mxu0 0.0
    %757 = vmatpush2.msra.mxu0 0.0
    %758 = vmatprep.subr.mxu0 0.0
    %759 = vmatpush2.msra.mxu0 0.0
    %760 = vmatprep.subr.mxu0 0.0
    %761 = vmatpush2.msra.mxu0 0.0
    %762 = vmatprep.mubr.f32.mxu0 0.0
    %763 = vmatmul.mubr.f32.gmra.mxu0 %v696
    %v764 = vpop.f32.mrf.mxu0
    %v765 = vadd.f32 %v692, %v764
    %v766 = vpop.f32.mrf.mxu0
    %767 = vdwg.mxu0
    %v768 = vld [vmem:[%s3] sm:$0x1]
    %v770 = vlaneseq
    %v771 = vshrl.u32 %v770, 7
    %v772 = vsub.s32 0, %v771
    %v773 = vrot.slane %v768, %v772
    %v775 = vadd.f32 %v765, %v773
    %v776 = vmax.f32 %v775, 0.0
    %v777 = vmul.f32 %v603, 0.9
    %v778 = vmul.f32 %v776, 0.1
    %v779 = vadd.f32 %v777, %v778
    %s780 = scalar_lea.vmem [#allocation11], 24
    %781 = vst [vmem:[%s780] sm:$0xff] %v779
    %s782 = scalar_lea.vmem [#allocation3], 32
    %v783 = vld [vmem:[%s782] sm:$0xff]
    %v784 = vld [vmem:[#allocation8] sm:$0xff]
    %v785 = vld [vmem:[#allocation9] sm:$0xff]
    %v786 = vld [vmem:[#allocation9 + $0x8] sm:$0xff]
    %v787 = vld [vmem:[#allocation9 + $0x10] sm:$0xff]
    %v788 = vld [vmem:[#allocation9 + $0x18] sm:$0xff]
    %v789 = vld [vmem:[#allocation9 + $0x20] sm:$0xff]
    %v790 = vld [vmem:[#allocation9 + $0x28] sm:$0xff]
    %v791 = vld [vmem:[#allocation9 + $0x30] sm:$0xff]
    %v792 = vld [vmem:[#allocation9 + $0x38] sm:$0xff]
    %v793 = vld [vmem:[#allocation9 + $0x40] sm:$0xff]
    %v794 = vld [vmem:[#allocation9 + $0x48] sm:$0xff]
    %v795 = vld [vmem:[#allocation9 + $0x50] sm:$0xff]
    %v796 = vld [vmem:[#allocation9 + $0x58] sm:$0xff]
    %v797 = vld [vmem:[#allocation9 + $0x60] sm:$0xff]
    %v798 = vld [vmem:[#allocation9 + $0x68] sm:$0xff]
    %v799 = vld [vmem:[#allocation9 + $0x70] sm:$0xff]
    %v800 = vld [vmem:[#allocation9 + $0x78] sm:$0xff]
    %801 = vmatprep.subr.mxu0 0.0
    %802 = vmatpush1.msra.mxu0 %v800
    %803 = vmatprep.subr.mxu0 0.0
    %804 = vmatpush1.msra.mxu0 %v799
    %805 = vmatprep.subr.mxu0 0.0
    %806 = vmatpush1.msra.mxu0 %v798
    %807 = vmatprep.subr.mxu0 0.0
    %808 = vmatpush1.msra.mxu0 %v797
    %809 = vmatprep.subr.mxu0 0.0
    %810 = vmatpush1.msra.mxu0 %v796
    %811 = vmatprep.subr.mxu0 0.0
    %812 = vmatpush1.msra.mxu0 %v795
    %813 = vmatprep.subr.mxu0 0.0
    %814 = vmatpush1.msra.mxu0 %v794
    %815 = vmatprep.subr.mxu0 0.0
    %816 = vmatpush1.msra.mxu0 %v793
    %817 = vmatprep.subr.mxu0 0.0
    %818 = vmatpush1.msra.mxu0 %v792
    %819 = vmatprep.subr.mxu0 0.0
    %820 = vmatpush1.msra.mxu0 %v791
    %821 = vmatprep.subr.mxu0 0.0
    %822 = vmatpush1.msra.mxu0 %v790
    %823 = vmatprep.subr.mxu0 0.0
    %824 = vmatpush1.msra.mxu0 %v789
    %825 = vmatprep.subr.mxu0 0.0
    %826 = vmatpush1.msra.mxu0 %v788
    %827 = vmatprep.subr.mxu0 0.0
    %828 = vmatpush1.msra.mxu0 %v787
    %829 = vmatprep.subr.mxu0 0.0
    %830 = vmatpush1.msra.mxu0 %v786
    %831 = vmatprep.subr.mxu0 0.0
    %832 = vmatpush1.msra.mxu0 %v785
    %833 = vmatprep.subr.mxu0 0.0
    %834 = vmatpush2.msra.mxu0 0.0
    %835 = vmatprep.subr.mxu0 0.0
    %836 = vmatpush2.msra.mxu0 0.0
    %837 = vmatprep.subr.mxu0 0.0
    %838 = vmatpush2.msra.mxu0 0.0
    %839 = vmatprep.subr.mxu0 0.0
    %840 = vmatpush2.msra.mxu0 0.0
    %841 = vmatprep.subr.mxu0 0.0
    %842 = vmatpush2.msra.mxu0 0.0
    %843 = vmatprep.subr.mxu0 0.0
    %844 = vmatpush2.msra.mxu0 0.0
    %845 = vmatprep.subr.mxu0 0.0
    %846 = vmatpush2.msra.mxu0 0.0
    %847 = vmatprep.subr.mxu0 0.0
    %848 = vmatpush2.msra.mxu0 0.0
    %849 = vmatprep.subr.mxu0 0.0
    %850 = vmatpush2.msra.mxu0 0.0
    %851 = vmatprep.subr.mxu0 0.0
    %852 = vmatpush2.msra.mxu0 0.0
    %853 = vmatprep.subr.mxu0 0.0
    %854 = vmatpush2.msra.mxu0 0.0
    %855 = vmatprep.subr.mxu0 0.0
    %856 = vmatpush2.msra.mxu0 0.0
    %857 = vmatprep.subr.mxu0 0.0
    %858 = vmatpush2.msra.mxu0 0.0
    %859 = vmatprep.subr.mxu0 0.0
    %860 = vmatpush2.msra.mxu0 0.0
    %861 = vmatprep.subr.mxu0 0.0
    %862 = vmatpush2.msra.mxu0 0.0
    %863 = vmatprep.subr.mxu0 0.0
    %864 = vmatpush2.msra.mxu0 0.0
    %865 = vmatprep.mubr.f32.mxu0 0.0
    %866 = vmatmul.mubr.f32.gmra.mxu0 %v779
    %v867 = vpop.f32.mrf.mxu0
    %v868 = vadd.f32 0.0, %v867
    %v869 = vpop.f32.mrf.mxu0
    %870 = vdwg.mxu0
    %v872 = vsel %vm167, %v783, 0
    %874 = vmatprep.subr.mxu0 0.0
    %875 = vmatpush1.msra.mxu0 0.0
    %876 = vmatprep.subr.mxu0 0.0
    %877 = vmatpush1.msra.mxu0 0.0
    %878 = vmatprep.subr.mxu0 0.0
    %879 = vmatpush1.msra.mxu0 0.0
    %880 = vmatprep.subr.mxu0 0.0
    %881 = vmatpush1.msra.mxu0 0.0
    %882 = vmatprep.subr.mxu0 0.0
    %883 = vmatpush1.msra.mxu0 0.0
    %884 = vmatprep.subr.mxu0 0.0
    %885 = vmatpush1.msra.mxu0 0.0
    %886 = vmatprep.subr.mxu0 0.0
    %887 = vmatpush1.msra.mxu0 0.0
    %888 = vmatprep.subr.mxu0 0.0
    %889 = vmatpush1.msra.mxu0 0.0
    %890 = vmatprep.subr.mxu0 0.0
    %891 = vmatpush1.msra.mxu0 0.0
    %892 = vmatprep.subr.mxu0 0.0
    %893 = vmatpush1.msra.mxu0 0.0
    %894 = vmatprep.subr.mxu0 0.0
    %895 = vmatpush1.msra.mxu0 0.0
    %896 = vmatprep.subr.mxu0 0.0
    %897 = vmatpush1.msra.mxu0 0.0
    %898 = vmatprep.subr.mxu0 0.0
    %899 = vmatpush1.msra.mxu0 0.0
    %900 = vmatprep.subr.mxu0 0.0
    %901 = vmatpush1.msra.mxu0 0.0
    %902 = vmatprep.subr.mxu0 0.0
    %903 = vmatpush1.msra.mxu0 0.0
    %904 = vmatprep.subr.mxu0 0.0
    %905 = vmatpush1.msra.mxu0 %v784
    %906 = vmatprep.subr.mxu0 0.0
    %907 = vmatpush2.msra.mxu0 0.0
    %908 = vmatprep.subr.mxu0 0.0
    %909 = vmatpush2.msra.mxu0 0.0
    %910 = vmatprep.subr.mxu0 0.0
    %911 = vmatpush2.msra.mxu0 0.0
    %912 = vmatprep.subr.mxu0 0.0
    %913 = vmatpush2.msra.mxu0 0.0
    %914 = vmatprep.subr.mxu0 0.0
    %915 = vmatpush2.msra.mxu0 0.0
    %916 = vmatprep.subr.mxu0 0.0
    %917 = vmatpush2.msra.mxu0 0.0
    %918 = vmatprep.subr.mxu0 0.0
    %919 = vmatpush2.msra.mxu0 0.0
    %920 = vmatprep.subr.mxu0 0.0
    %921 = vmatpush2.msra.mxu0 0.0
    %922 = vmatprep.subr.mxu0 0.0
    %923 = vmatpush2.msra.mxu0 0.0
    %924 = vmatprep.subr.mxu0 0.0
    %925 = vmatpush2.msra.mxu0 0.0
    %926 = vmatprep.subr.mxu0 0.0
    %927 = vmatpush2.msra.mxu0 0.0
    %928 = vmatprep.subr.mxu0 0.0
    %929 = vmatpush2.msra.mxu0 0.0
    %930 = vmatprep.subr.mxu0 0.0
    %931 = vmatpush2.msra.mxu0 0.0
    %932 = vmatprep.subr.mxu0 0.0
    %933 = vmatpush2.msra.mxu0 0.0
    %934 = vmatprep.subr.mxu0 0.0
    %935 = vmatpush2.msra.mxu0 0.0
    %936 = vmatprep.subr.mxu0 0.0
    %937 = vmatpush2.msra.mxu0 0.0
    %938 = vmatprep.mubr.f32.mxu0 0.0
    %939 = vmatmul.mubr.f32.gmra.mxu0 %v872
    %v940 = vpop.f32.mrf.mxu0
    %v941 = vadd.f32 %v868, %v940
    %v942 = vpop.f32.mrf.mxu0
    %943 = vdwg.mxu0
    %v944 = vld [vmem:[%s3] sm:$0x1]
    %v946 = vlaneseq
    %v947 = vshrl.u32 %v946, 7
    %v948 = vsub.s32 0, %v947
    %v949 = vrot.slane %v944, %v948
    %v951 = vadd.f32 %v941, %v949
    %v952 = vmax.f32 %v951, 0.0
    %v953 = vmul.f32 %v779, 0.9
    %v954 = vmul.f32 %v952, 0.1
    %v955 = vadd.f32 %v953, %v954
    %s956 = scalar_lea.vmem [#allocation11], 32
    %957 = vst [vmem:[%s956] sm:$0xff] %v955
    %s958 = scalar_lea.vmem [#allocation3], 40
    %v959 = vld [vmem:[%s958] sm:$0xff]
    %v960 = vld [vmem:[#allocation8] sm:$0xff]
    %v961 = vld [vmem:[#allocation9] sm:$0xff]
    %v962 = vld [vmem:[#allocation9 + $0x8] sm:$0xff]
    %v963 = vld [vmem:[#allocation9 + $0x10] sm:$0xff]
    %v964 = vld [vmem:[#allocation9 + $0x18] sm:$0xff]
    %v965 = vld [vmem:[#allocation9 + $0x20] sm:$0xff]
    %v966 = vld [vmem:[#allocation9 + $0x28] sm:$0xff]
    %v967 = vld [vmem:[#allocation9 + $0x30] sm:$0xff]
    %v968 = vld [vmem:[#allocation9 + $0x38] sm:$0xff]
    %v969 = vld [vmem:[#allocation9 + $0x40] sm:$0xff]
    %v970 = vld [vmem:[#allocation9 + $0x48] sm:$0xff]
    %v971 = vld [vmem:[#allocation9 + $0x50] sm:$0xff]
    %v972 = vld [vmem:[#allocation9 + $0x58] sm:$0xff]
    %v973 = vld [vmem:[#allocation9 + $0x60] sm:$0xff]
    %v974 = vld [vmem:[#allocation9 + $0x68] sm:$0xff]
    %v975 = vld [vmem:[#allocation9 + $0x70] sm:$0xff]
    %v976 = vld [vmem:[#allocation9 + $0x78] sm:$0xff]
    %977 = vmatprep.subr.mxu0 0.0
    %978 = vmatpush1.msra.mxu0 %v976
    %979 = vmatprep.subr.mxu0 0.0
    %980 = vmatpush1.msra.mxu0 %v975
    %981 = vmatprep.subr.mxu0 0.0
    %982 = vmatpush1.msra.mxu0 %v974
    %983 = vmatprep.subr.mxu0 0.0
    %984 = vmatpush1.msra.mxu0 %v973
    %985 = vmatprep.subr.mxu0 0.0
    %986 = vmatpush1.msra.mxu0 %v972
    %987 = vmatprep.subr.mxu0 0.0
    %988 = vmatpush1.msra.mxu0 %v971
    %989 = vmatprep.subr.mxu0 0.0
    %990 = vmatpush1.msra.mxu0 %v970
    %991 = vmatprep.subr.mxu0 0.0
    %992 = vmatpush1.msra.mxu0 %v969
    %993 = vmatprep.subr.mxu0 0.0
    %994 = vmatpush1.msra.mxu0 %v968
    %995 = vmatprep.subr.mxu0 0.0
    %996 = vmatpush1.msra.mxu0 %v967
    %997 = vmatprep.subr.mxu0 0.0
    %998 = vmatpush1.msra.mxu0 %v966
    %999 = vmatprep.subr.mxu0 0.0
    %1000 = vmatpush1.msra.mxu0 %v965
    %1001 = vmatprep.subr.mxu0 0.0
    %1002 = vmatpush1.msra.mxu0 %v964
    %1003 = vmatprep.subr.mxu0 0.0
    %1004 = vmatpush1.msra.mxu0 %v963
    %1005 = vmatprep.subr.mxu0 0.0
    %1006 = vmatpush1.msra.mxu0 %v962
    %1007 = vmatprep.subr.mxu0 0.0
    %1008 = vmatpush1.msra.mxu0 %v961
    %1009 = vmatprep.subr.mxu0 0.0
    %1010 = vmatpush2.msra.mxu0 0.0
    %1011 = vmatprep.subr.mxu0 0.0
    %1012 = vmatpush2.msra.mxu0 0.0
    %1013 = vmatprep.subr.mxu0 0.0
    %1014 = vmatpush2.msra.mxu0 0.0
    %1015 = vmatprep.subr.mxu0 0.0
    %1016 = vmatpush2.msra.mxu0 0.0
    %1017 = vmatprep.subr.mxu0 0.0
    %1018 = vmatpush2.msra.mxu0 0.0
    %1019 = vmatprep.subr.mxu0 0.0
    %1020 = vmatpush2.msra.mxu0 0.0
    %1021 = vmatprep.subr.mxu0 0.0
    %1022 = vmatpush2.msra.mxu0 0.0
    %1023 = vmatprep.subr.mxu0 0.0
    %1024 = vmatpush2.msra.mxu0 0.0
    %1025 = vmatprep.subr.mxu0 0.0
    %1026 = vmatpush2.msra.mxu0 0.0
    %1027 = vmatprep.subr.mxu0 0.0
    %1028 = vmatpush2.msra.mxu0 0.0
    %1029 = vmatprep.subr.mxu0 0.0
    %1030 = vmatpush2.msra.mxu0 0.0
    %1031 = vmatprep.subr.mxu0 0.0
    %1032 = vmatpush2.msra.mxu0 0.0
    %1033 = vmatprep.subr.mxu0 0.0
    %1034 = vmatpush2.msra.mxu0 0.0
    %1035 = vmatprep.subr.mxu0 0.0
    %1036 = vmatpush2.msra.mxu0 0.0
    %1037 = vmatprep.subr.mxu0 0.0
    %1038 = vmatpush2.msra.mxu0 0.0
    %1039 = vmatprep.subr.mxu0 0.0
    %1040 = vmatpush2.msra.mxu0 0.0
    %1041 = vmatprep.mubr.f32.mxu0 0.0
    %1042 = vmatmul.mubr.f32.gmra.mxu0 %v955
    %v1043 = vpop.f32.mrf.mxu0
    %v1044 = vadd.f32 0.0, %v1043
    %v1045 = vpop.f32.mrf.mxu0
    %1046 = vdwg.mxu0
    %v1048 = vsel %vm167, %v959, 0
    %1050 = vmatprep.subr.mxu0 0.0
    %1051 = vmatpush1.msra.mxu0 0.0
    %1052 = vmatprep.subr.mxu0 0.0
    %1053 = vmatpush1.msra.mxu0 0.0
    %1054 = vmatprep.subr.mxu0 0.0
    %1055 = vmatpush1.msra.mxu0 0.0
    %1056 = vmatprep.subr.mxu0 0.0
    %1057 = vmatpush1.msra.mxu0 0.0
    %1058 = vmatprep.subr.mxu0 0.0
    %1059 = vmatpush1.msra.mxu0 0.0
    %1060 = vmatprep.subr.mxu0 0.0
    %1061 = vmatpush1.msra.mxu0 0.0
    %1062 = vmatprep.subr.mxu0 0.0
    %1063 = vmatpush1.msra.mxu0 0.0
    %1064 = vmatprep.subr.mxu0 0.0
    %1065 = vmatpush1.msra.mxu0 0.0
    %1066 = vmatprep.subr.mxu0 0.0
    %1067 = vmatpush1.msra.mxu0 0.0
    %1068 = vmatprep.subr.mxu0 0.0
    %1069 = vmatpush1.msra.mxu0 0.0
    %1070 = vmatprep.subr.mxu0 0.0
    %1071 = vmatpush1.msra.mxu0 0.0
    %1072 = vmatprep.subr.mxu0 0.0
    %1073 = vmatpush1.msra.mxu0 0.0
    %1074 = vmatprep.subr.mxu0 0.0
    %1075 = vmatpush1.msra.mxu0 0.0
    %1076 = vmatprep.subr.mxu0 0.0
    %1077 = vmatpush1.msra.mxu0 0.0
    %1078 = vmatprep.subr.mxu0 0.0
    %1079 = vmatpush1.msra.mxu0 0.0
    %1080 = vmatprep.subr.mxu0 0.0
    %1081 = vmatpush1.msra.mxu0 %v960
    %1082 = vmatprep.subr.mxu0 0.0
    %1083 = vmatpush2.msra.mxu0 0.0
    %1084 = vmatprep.subr.mxu0 0.0
    %1085 = vmatpush2.msra.mxu0 0.0
    %1086 = vmatprep.subr.mxu0 0.0
    %1087 = vmatpush2.msra.mxu0 0.0
    %1088 = vmatprep.subr.mxu0 0.0
    %1089 = vmatpush2.msra.mxu0 0.0
    %1090 = vmatprep.subr.mxu0 0.0
    %1091 = vmatpush2.msra.mxu0 0.0
    %1092 = vmatprep.subr.mxu0 0.0
    %1093 = vmatpush2.msra.mxu0 0.0
    %1094 = vmatprep.subr.mxu0 0.0
    %1095 = vmatpush2.msra.mxu0 0.0
    %1096 = vmatprep.subr.mxu0 0.0
    %1097 = vmatpush2.msra.mxu0 0.0
    %1098 = vmatprep.subr.mxu0 0.0
    %1099 = vmatpush2.msra.mxu0 0.0
    %1100 = vmatprep.subr.mxu0 0.0
    %1101 = vmatpush2.msra.mxu0 0.0
    %1102 = vmatprep.subr.mxu0 0.0
    %1103 = vmatpush2.msra.mxu0 0.0
    %1104 = vmatprep.subr.mxu0 0.0
    %1105 = vmatpush2.msra.mxu0 0.0
    %1106 = vmatprep.subr.mxu0 0.0
    %1107 = vmatpush2.msra.mxu0 0.0
    %1108 = vmatprep.subr.mxu0 0.0
    %1109 = vmatpush2.msra.mxu0 0.0
    %1110 = vmatprep.subr.mxu0 0.0
    %1111 = vmatpush2.msra.mxu0 0.0
    %1112 = vmatprep.subr.mxu0 0.0
    %1113 = vmatpush2.msra.mxu0 0.0
    %1114 = vmatprep.mubr.f32.mxu0 0.0
    %1115 = vmatmul.mubr.f32.gmra.mxu0 %v1048
    %v1116 = vpop.f32.mrf.mxu0
    %v1117 = vadd.f32 %v1044, %v1116
    %v1118 = vpop.f32.mrf.mxu0
    %1119 = vdwg.mxu0
    %v1120 = vld [vmem:[%s3] sm:$0x1]
    %v1122 = vlaneseq
    %v1123 = vshrl.u32 %v1122, 7
    %v1124 = vsub.s32 0, %v1123
    %v1125 = vrot.slane %v1120, %v1124
    %v1127 = vadd.f32 %v1117, %v1125
    %v1128 = vmax.f32 %v1127, 0.0
    %v1129 = vmul.f32 %v955, 0.9
    %v1130 = vmul.f32 %v1128, 0.1
    %v1131 = vadd.f32 %v1129, %v1130
    %s1132 = scalar_lea.vmem [#allocation11], 40
    %1133 = vst [vmem:[%s1132] sm:$0xff] %v1131
    %s1134 = scalar_lea.vmem [#allocation3], 48
    %v1135 = vld [vmem:[%s1134] sm:$0xff]
    %v1136 = vld [vmem:[#allocation8] sm:$0xff]
    %v1137 = vld [vmem:[#allocation9] sm:$0xff]
    %v1138 = vld [vmem:[#allocation9 + $0x8] sm:$0xff]
    %v1139 = vld [vmem:[#allocation9 + $0x10] sm:$0xff]
    %v1140 = vld [vmem:[#allocation9 + $0x18] sm:$0xff]
    %v1141 = vld [vmem:[#allocation9 + $0x20] sm:$0xff]
    %v1142 = vld [vmem:[#allocation9 + $0x28] sm:$0xff]
    %v1143 = vld [vmem:[#allocation9 + $0x30] sm:$0xff]
    %v1144 = vld [vmem:[#allocation9 + $0x38] sm:$0xff]
    %v1145 = vld [vmem:[#allocation9 + $0x40] sm:$0xff]
    %v1146 = vld [vmem:[#allocation9 + $0x48] sm:$0xff]
    %v1147 = vld [vmem:[#allocation9 + $0x50] sm:$0xff]
    %v1148 = vld [vmem:[#allocation9 + $0x58] sm:$0xff]
    %v1149 = vld [vmem:[#allocation9 + $0x60] sm:$0xff]
    %v1150 = vld [vmem:[#allocation9 + $0x68] sm:$0xff]
    %v1151 = vld [vmem:[#allocation9 + $0x70] sm:$0xff]
    %v1152 = vld [vmem:[#allocation9 + $0x78] sm:$0xff]
    %1153 = vmatprep.subr.mxu0 0.0
    %1154 = vmatpush1.msra.mxu0 %v1152
    %1155 = vmatprep.subr.mxu0 0.0
    %1156 = vmatpush1.msra.mxu0 %v1151
    %1157 = vmatprep.subr.mxu0 0.0
    %1158 = vmatpush1.msra.mxu0 %v1150
    %1159 = vmatprep.subr.mxu0 0.0
    %1160 = vmatpush1.msra.mxu0 %v1149
    %1161 = vmatprep.subr.mxu0 0.0
    %1162 = vmatpush1.msra.mxu0 %v1148
    %1163 = vmatprep.subr.mxu0 0.0
    %1164 = vmatpush1.msra.mxu0 %v1147
    %1165 = vmatprep.subr.mxu0 0.0
    %1166 = vmatpush1.msra.mxu0 %v1146
    %1167 = vmatprep.subr.mxu0 0.0
    %1168 = vmatpush1.msra.mxu0 %v1145
    %1169 = vmatprep.subr.mxu0 0.0
    %1170 = vmatpush1.msra.mxu0 %v1144
    %1171 = vmatprep.subr.mxu0 0.0
    %1172 = vmatpush1.msra.mxu0 %v1143
    %1173 = vmatprep.subr.mxu0 0.0
    %1174 = vmatpush1.msra.mxu0 %v1142
    %1175 = vmatprep.subr.mxu0 0.0
    %1176 = vmatpush1.msra.mxu0 %v1141
    %1177 = vmatprep.subr.mxu0 0.0
    %1178 = vmatpush1.msra.mxu0 %v1140
    %1179 = vmatprep.subr.mxu0 0.0
    %1180 = vmatpush1.msra.mxu0 %v1139
    %1181 = vmatprep.subr.mxu0 0.0
    %1182 = vmatpush1.msra.mxu0 %v1138
    %1183 = vmatprep.subr.mxu0 0.0
    %1184 = vmatpush1.msra.mxu0 %v1137
    %1185 = vmatprep.subr.mxu0 0.0
    %1186 = vmatpush2.msra.mxu0 0.0
    %1187 = vmatprep.subr.mxu0 0.0
    %1188 = vmatpush2.msra.mxu0 0.0
    %1189 = vmatprep.subr.mxu0 0.0
    %1190 = vmatpush2.msra.mxu0 0.0
    %1191 = vmatprep.subr.mxu0 0.0
    %1192 = vmatpush2.msra.mxu0 0.0
    %1193 = vmatprep.subr.mxu0 0.0
    %1194 = vmatpush2.msra.mxu0 0.0
    %1195 = vmatprep.subr.mxu0 0.0
    %1196 = vmatpush2.msra.mxu0 0.0
    %1197 = vmatprep.subr.mxu0 0.0
    %1198 = vmatpush2.msra.mxu0 0.0
    %1199 = vmatprep.subr.mxu0 0.0
    %1200 = vmatpush2.msra.mxu0 0.0
    %1201 = vmatprep.subr.mxu0 0.0
    %1202 = vmatpush2.msra.mxu0 0.0
    %1203 = vmatprep.subr.mxu0 0.0
    %1204 = vmatpush2.msra.mxu0 0.0
    %1205 = vmatprep.subr.mxu0 0.0
    %1206 = vmatpush2.msra.mxu0 0.0
    %1207 = vmatprep.subr.mxu0 0.0
    %1208 = vmatpush2.msra.mxu0 0.0
    %1209 = vmatprep.subr.mxu0 0.0
    %1210 = vmatpush2.msra.mxu0 0.0
    %1211 = vmatprep.subr.mxu0 0.0
    %1212 = vmatpush2.msra.mxu0 0.0
    %1213 = vmatprep.subr.mxu0 0.0
    %1214 = vmatpush2.msra.mxu0 0.0
    %1215 = vmatprep.subr.mxu0 0.0
    %1216 = vmatpush2.msra.mxu0 0.0
    %1217 = vmatprep.mubr.f32.mxu0 0.0
    %1218 = vmatmul.mubr.f32.gmra.mxu0 %v1131
    %v1219 = vpop.f32.mrf.mxu0
    %v1220 = vadd.f32 0.0, %v1219
    %v1221 = vpop.f32.mrf.mxu0
    %1222 = vdwg.mxu0
    %v1224 = vsel %vm167, %v1135, 0
    %1226 = vmatprep.subr.mxu0 0.0
    %1227 = vmatpush1.msra.mxu0 0.0
    %1228 = vmatprep.subr.mxu0 0.0
    %1229 = vmatpush1.msra.mxu0 0.0
    %1230 = vmatprep.subr.mxu0 0.0
    %1231 = vmatpush1.msra.mxu0 0.0
    %1232 = vmatprep.subr.mxu0 0.0
    %1233 = vmatpush1.msra.mxu0 0.0
    %1234 = vmatprep.subr.mxu0 0.0
    %1235 = vmatpush1.msra.mxu0 0.0
    %1236 = vmatprep.subr.mxu0 0.0
    %1237 = vmatpush1.msra.mxu0 0.0
    %1238 = vmatprep.subr.mxu0 0.0
    %1239 = vmatpush1.msra.mxu0 0.0
    %1240 = vmatprep.subr.mxu0 0.0
    %1241 = vmatpush1.msra.mxu0 0.0
    %1242 = vmatprep.subr.mxu0 0.0
    %1243 = vmatpush1.msra.mxu0 0.0
    %1244 = vmatprep.subr.mxu0 0.0
    %1245 = vmatpush1.msra.mxu0 0.0
    %1246 = vmatprep.subr.mxu0 0.0
    %1247 = vmatpush1.msra.mxu0 0.0
    %1248 = vmatprep.subr.mxu0 0.0
    %1249 = vmatpush1.msra.mxu0 0.0
    %1250 = vmatprep.subr.mxu0 0.0
    %1251 = vmatpush1.msra.mxu0 0.0
    %1252 = vmatprep.subr.mxu0 0.0
    %1253 = vmatpush1.msra.mxu0 0.0
    %1254 = vmatprep.subr.mxu0 0.0
    %1255 = vmatpush1.msra.mxu0 0.0
    %1256 = vmatprep.subr.mxu0 0.0
    %1257 = vmatpush1.msra.mxu0 %v1136
    %1258 = vmatprep.subr.mxu0 0.0
    %1259 = vmatpush2.msra.mxu0 0.0
    %1260 = vmatprep.subr.mxu0 0.0
    %1261 = vmatpush2.msra.mxu0 0.0
    %1262 = vmatprep.subr.mxu0 0.0
    %1263 = vmatpush2.msra.mxu0 0.0
    %1264 = vmatprep.subr.mxu0 0.0
    %1265 = vmatpush2.msra.mxu0 0.0
    %1266 = vmatprep.subr.mxu0 0.0
    %1267 = vmatpush2.msra.mxu0 0.0
    %1268 = vmatprep.subr.mxu0 0.0
    %1269 = vmatpush2.msra.mxu0 0.0
    %1270 = vmatprep.subr.mxu0 0.0
    %1271 = vmatpush2.msra.mxu0 0.0
    %1272 = vmatprep.subr.mxu0 0.0
    %1273 = vmatpush2.msra.mxu0 0.0
    %1274 = vmatprep.subr.mxu0 0.0
    %1275 = vmatpush2.msra.mxu0 0.0
    %1276 = vmatprep.subr.mxu0 0.0
    %1277 = vmatpush2.msra.mxu0 0.0
    %1278 = vmatprep.subr.mxu0 0.0
    %1279 = vmatpush2.msra.mxu0 0.0
    %1280 = vmatprep.subr.mxu0 0.0
    %1281 = vmatpush2.msra.mxu0 0.0
    %1282 = vmatprep.subr.mxu0 0.0
    %1283 = vmatpush2.msra.mxu0 0.0
    %1284 = vmatprep.subr.mxu0 0.0
    %1285 = vmatpush2.msra.mxu0 0.0
    %1286 = vmatprep.subr.mxu0 0.0
    %1287 = vmatpush2.msra.mxu0 0.0
    %1288 = vmatprep.subr.mxu0 0.0
    %1289 = vmatpush2.msra.mxu0 0.0
    %1290 = vmatprep.mubr.f32.mxu0 0.0
    %1291 = vmatmul.mubr.f32.gmra.mxu0 %v1224
    %v1292 = vpop.f32.mrf.mxu0
    %v1293 = vadd.f32 %v1220, %v1292
    %v1294 = vpop.f32.mrf.mxu0
    %1295 = vdwg.mxu0
    %v1296 = vld [vmem:[%s3] sm:$0x1]
    %v1298 = vlaneseq
    %v1299 = vshrl.u32 %v1298, 7
    %v1300 = vsub.s32 0, %v1299
    %v1301 = vrot.slane %v1296, %v1300
    %v1303 = vadd.f32 %v1293, %v1301
    %v1304 = vmax.f32 %v1303, 0.0
    %v1305 = vmul.f32 %v1131, 0.9
    %v1306 = vmul.f32 %v1304, 0.1
    %v1307 = vadd.f32 %v1305, %v1306
    %s1308 = scalar_lea.vmem [#allocation11], 48
    %1309 = vst [vmem:[%s1308] sm:$0xff] %v1307
    %s1310 = scalar_lea.vmem [#allocation3], 56
    %v1311 = vld [vmem:[%s1310] sm:$0xff]
    %v1312 = vld [vmem:[#allocation8] sm:$0xff]
    %v1313 = vld [vmem:[#allocation9] sm:$0xff]
    %v1314 = vld [vmem:[#allocation9 + $0x8] sm:$0xff]
    %v1315 = vld [vmem:[#allocation9 + $0x10] sm:$0xff]
    %v1316 = vld [vmem:[#allocation9 + $0x18] sm:$0xff]
    %v1317 = vld [vmem:[#allocation9 + $0x20] sm:$0xff]
    %v1318 = vld [vmem:[#allocation9 + $0x28] sm:$0xff]
    %v1319 = vld [vmem:[#allocation9 + $0x30] sm:$0xff]
    %v1320 = vld [vmem:[#allocation9 + $0x38] sm:$0xff]
    %v1321 = vld [vmem:[#allocation9 + $0x40] sm:$0xff]
    %v1322 = vld [vmem:[#allocation9 + $0x48] sm:$0xff]
    %v1323 = vld [vmem:[#allocation9 + $0x50] sm:$0xff]
    %v1324 = vld [vmem:[#allocation9 + $0x58] sm:$0xff]
    %v1325 = vld [vmem:[#allocation9 + $0x60] sm:$0xff]
    %v1326 = vld [vmem:[#allocation9 + $0x68] sm:$0xff]
    %v1327 = vld [vmem:[#allocation9 + $0x70] sm:$0xff]
    %v1328 = vld [vmem:[#allocation9 + $0x78] sm:$0xff]
    %1329 = vmatprep.subr.mxu0 0.0
    %1330 = vmatpush1.msra.mxu0 %v1328
    %1331 = vmatprep.subr.mxu0 0.0
    %1332 = vmatpush1.msra.mxu0 %v1327
    %1333 = vmatprep.subr.mxu0 0.0
    %1334 = vmatpush1.msra.mxu0 %v1326
    %1335 = vmatprep.subr.mxu0 0.0
    %1336 = vmatpush1.msra.mxu0 %v1325
    %1337 = vmatprep.subr.mxu0 0.0
    %1338 = vmatpush1.msra.mxu0 %v1324
    %1339 = vmatprep.subr.mxu0 0.0
    %1340 = vmatpush1.msra.mxu0 %v1323
    %1341 = vmatprep.subr.mxu0 0.0
    %1342 = vmatpush1.msra.mxu0 %v1322
    %1343 = vmatprep.subr.mxu0 0.0
    %1344 = vmatpush1.msra.mxu0 %v1321
    %1345 = vmatprep.subr.mxu0 0.0
    %1346 = vmatpush1.msra.mxu0 %v1320
    %1347 = vmatprep.subr.mxu0 0.0
    %1348 = vmatpush1.msra.mxu0 %v1319
    %1349 = vmatprep.subr.mxu0 0.0
    %1350 = vmatpush1.msra.mxu0 %v1318
    %1351 = vmatprep.subr.mxu0 0.0
    %1352 = vmatpush1.msra.mxu0 %v1317
    %1353 = vmatprep.subr.mxu0 0.0
    %1354 = vmatpush1.msra.mxu0 %v1316
    %1355 = vmatprep.subr.mxu0 0.0
    %1356 = vmatpush1.msra.mxu0 %v1315
    %1357 = vmatprep.subr.mxu0 0.0
    %1358 = vmatpush1.msra.mxu0 %v1314
    %1359 = vmatprep.subr.mxu0 0.0
    %1360 = vmatpush1.msra.mxu0 %v1313
    %1361 = vmatprep.subr.mxu0 0.0
    %1362 = vmatpush2.msra.mxu0 0.0
    %1363 = vmatprep.subr.mxu0 0.0
    %1364 = vmatpush2.msra.mxu0 0.0
    %1365 = vmatprep.subr.mxu0 0.0
    %1366 = vmatpush2.msra.mxu0 0.0
    %1367 = vmatprep.subr.mxu0 0.0
    %1368 = vmatpush2.msra.mxu0 0.0
    %1369 = vmatprep.subr.mxu0 0.0
    %1370 = vmatpush2.msra.mxu0 0.0
    %1371 = vmatprep.subr.mxu0 0.0
    %1372 = vmatpush2.msra.mxu0 0.0
    %1373 = vmatprep.subr.mxu0 0.0
    %1374 = vmatpush2.msra.mxu0 0.0
    %1375 = vmatprep.subr.mxu0 0.0
    %1376 = vmatpush2.msra.mxu0 0.0
    %1377 = vmatprep.subr.mxu0 0.0
    %1378 = vmatpush2.msra.mxu0 0.0
    %1379 = vmatprep.subr.mxu0 0.0
    %1380 = vmatpush2.msra.mxu0 0.0
    %1381 = vmatprep.subr.mxu0 0.0
    %1382 = vmatpush2.msra.mxu0 0.0
    %1383 = vmatprep.subr.mxu0 0.0
    %1384 = vmatpush2.msra.mxu0 0.0
    %1385 = vmatprep.subr.mxu0 0.0
    %1386 = vmatpush2.msra.mxu0 0.0
    %1387 = vmatprep.subr.mxu0 0.0
    %1388 = vmatpush2.msra.mxu0 0.0
    %1389 = vmatprep.subr.mxu0 0.0
    %1390 = vmatpush2.msra.mxu0 0.0
    %1391 = vmatprep.subr.mxu0 0.0
    %1392 = vmatpush2.msra.mxu0 0.0
    %1393 = vmatprep.mubr.f32.mxu0 0.0
    %1394 = vmatmul.mubr.f32.gmra.mxu0 %v1307
    %v1395 = vpop.f32.mrf.mxu0
    %v1396 = vadd.f32 0.0, %v1395
    %v1397 = vpop.f32.mrf.mxu0
    %1398 = vdwg.mxu0
    %v1400 = vsel %vm167, %v1311, 0
    %1402 = vmatprep.subr.mxu0 0.0
    %1403 = vmatpush1.msra.mxu0 0.0
    %1404 = vmatprep.subr.mxu0 0.0
    %1405 = vmatpush1.msra.mxu0 0.0
    %1406 = vmatprep.subr.mxu0 0.0
    %1407 = vmatpush1.msra.mxu0 0.0
    %1408 = vmatprep.subr.mxu0 0.0
    %1409 = vmatpush1.msra.mxu0 0.0
    %1410 = vmatprep.subr.mxu0 0.0
    %1411 = vmatpush1.msra.mxu0 0.0
    %1412 = vmatprep.subr.mxu0 0.0
    %1413 = vmatpush1.msra.mxu0 0.0
    %1414 = vmatprep.subr.mxu0 0.0
    %1415 = vmatpush1.msra.mxu0 0.0
    %1416 = vmatprep.subr.mxu0 0.0
    %1417 = vmatpush1.msra.mxu0 0.0
    %1418 = vmatprep.subr.mxu0 0.0
    %1419 = vmatpush1.msra.mxu0 0.0
    %1420 = vmatprep.subr.mxu0 0.0
    %1421 = vmatpush1.msra.mxu0 0.0
    %1422 = vmatprep.subr.mxu0 0.0
    %1423 = vmatpush1.msra.mxu0 0.0
    %1424 = vmatprep.subr.mxu0 0.0
    %1425 = vmatpush1.msra.mxu0 0.0
    %1426 = vmatprep.subr.mxu0 0.0
    %1427 = vmatpush1.msra.mxu0 0.0
    %1428 = vmatprep.subr.mxu0 0.0
    %1429 = vmatpush1.msra.mxu0 0.0
    %1430 = vmatprep.subr.mxu0 0.0
    %1431 = vmatpush1.msra.mxu0 0.0
    %1432 = vmatprep.subr.mxu0 0.0
    %1433 = vmatpush1.msra.mxu0 %v1312
    %1434 = vmatprep.subr.mxu0 0.0
    %1435 = vmatpush2.msra.mxu0 0.0
    %1436 = vmatprep.subr.mxu0 0.0
    %1437 = vmatpush2.msra.mxu0 0.0
    %1438 = vmatprep.subr.mxu0 0.0
    %1439 = vmatpush2.msra.mxu0 0.0
    %1440 = vmatprep.subr.mxu0 0.0
    %1441 = vmatpush2.msra.mxu0 0.0
    %1442 = vmatprep.subr.mxu0 0.0
    %1443 = vmatpush2.msra.mxu0 0.0
    %1444 = vmatprep.subr.mxu0 0.0
    %1445 = vmatpush2.msra.mxu0 0.0
    %1446 = vmatprep.subr.mxu0 0.0
    %1447 = vmatpush2.msra.mxu0 0.0
    %1448 = vmatprep.subr.mxu0 0.0
    %1449 = vmatpush2.msra.mxu0 0.0
    %1450 = vmatprep.subr.mxu0 0.0
    %1451 = vmatpush2.msra.mxu0 0.0
    %1452 = vmatprep.subr.mxu0 0.0
    %1453 = vmatpush2.msra.mxu0 0.0
    %1454 = vmatprep.subr.mxu0 0.0
    %1455 = vmatpush2.msra.mxu0 0.0
    %1456 = vmatprep.subr.mxu0 0.0
    %1457 = vmatpush2.msra.mxu0 0.0
    %1458 = vmatprep.subr.mxu0 0.0
    %1459 = vmatpush2.msra.mxu0 0.0
    %1460 = vmatprep.subr.mxu0 0.0
    %1461 = vmatpush2.msra.mxu0 0.0
    %1462 = vmatprep.subr.mxu0 0.0
    %1463 = vmatpush2.msra.mxu0 0.0
    %1464 = vmatprep.subr.mxu0 0.0
    %1465 = vmatpush2.msra.mxu0 0.0
    %1466 = vmatprep.mubr.f32.mxu0 0.0
    %1467 = vmatmul.mubr.f32.gmra.mxu0 %v1400
    %v1468 = vpop.f32.mrf.mxu0
    %v1469 = vadd.f32 %v1396, %v1468
    %v1470 = vpop.f32.mrf.mxu0
    %1471 = vdwg.mxu0
    %v1472 = vld [vmem:[%s3] sm:$0x1]
    %v1474 = vlaneseq
    %v1475 = vshrl.u32 %v1474, 7
    %v1476 = vsub.s32 0, %v1475
    %v1477 = vrot.slane %v1472, %v1476
    %v1479 = vadd.f32 %v1469, %v1477
    %v1480 = vmax.f32 %v1479, 0.0
    %v1481 = vmul.f32 %v1307, 0.9
    %v1482 = vmul.f32 %v1480, 0.1
    %v1483 = vadd.f32 %v1481, %v1482
    %s1484 = scalar_lea.vmem [#allocation11], 56
    %1485 = vst [vmem:[%s1484] sm:$0xff] %v1483
    %1486 = vst [vmem:[#allocation2] sm:$0xff] %v1483
    // Predicated region
    $region42: #{tpu_custom_call.1} parent=1 // pred_check
      _
    $region43: #{tpu_custom_call.1} parent=1 // pred_check_branch
      %1488 = sbr.rel (0) target = $region45
    $region44: #{tpu_custom_call.1} parent=1 // pred_region
      %s1490 = ssub.s32 1024, 1024
      %1491 = vsyncadd [#allocation5], %s1490
      %s1492 = sshll.u32 [#allocation11], 4
      %s1493 = int_to_ptr.vmem [resolvable:$true] %s1492
      %1498 = dma.vmem_to_hbm [thread:$0]  %s1493, 1024, %s5, [#allocation5], 128, 128, 8
    $region45: #{tpu_custom_call.1} parent=1 // pred_fallthru
      _
    // Predicated region
    $region46: #{tpu_custom_call.1} parent=1 // pred_check
      _
    $region47: #{tpu_custom_call.1} parent=1 // pred_check_branch
      %1500 = sbr.rel (0) target = $region49
    $region48: #{tpu_custom_call.1} parent=1 // pred_region
      %1501 = dma.done [#allocation5], 1024
    $region49: #{tpu_custom_call.1} parent=1 // pred_fallthru
      _
    %1502 = vsyncpa [#allocation4], 1
    %1503 = vsyncpa [#allocation7], 1
    %1504 = vsyncpa [#allocation10], 1
    %1505 = vsyncpa [#allocation5], 1

// kernel: tpu_custom_call.1
$region0: #{tpu_custom_call.1}
  #allocation0 [shape = 'u32[]', space=smem, size = 0x4, offset = 0x4, fixed_abs, tag = 'smem constant byte address 0x4 - core index']
  #allocation1 [shape = 'u32[144,128]{1,0:T(1,128)}', space=vmem, size = 0x12000, scoped, tag = 'internal scratch']
  #allocation2 [shape = 'f32[8,128]{1,0:T(8,128)}', space=vmem, size = 0x1000, scoped, tag = 'scratch operand']
  %s0 = inlined_call_operand.hbm [shape: f32[8,8,8], index: 0, kind: input, shape index: {}]
  %s1 = inlined_call_operand.hbm [shape: f32[8,128], index: 1, kind: input, shape index: {}]
  %s2 = inlined_call_operand.hbm [shape: f32[8,128], index: 2, kind: input, shape index: {}]
  %s3 = inlined_call_operand.vmem [shape: f32[1,128], index: 3, kind: input, shape index: {}]
  %s4 = inlined_call_operand.hbm [shape: f32[128,128], index: 4, kind: input, shape index: {}]
  %s5 = inlined_call_operand.hbm [shape: f32[8,8,128], index: 5, kind: output, shape index: {}]
  %s6 = sld [smem:[#allocation0]]
  $region50: #{tpu_custom_call.1} parent=0
    _
  %s8 = ssub.s32 1, %s6
  %s9 = scalar_select 0, %s8, %s6
  $region1: #{tpu_custom_call.1} parent=0
    #allocation3 [shape = 'u8[32768]{0}', space=vmem, size = 0x8000, scoped, tag = 'input window, operand 0, single buffered']
    #allocation4 [shape = 's32[1]{0}', space=sflag, size = 0x4, scoped, tag = 'scoped memory for tpu_custom_call.1']
    #allocation5 [shape = 's32[1]{0}', space=sflag, size = 0x4, scoped, tag = 'scoped memory for tpu_custom_call.1']
    #allocation6 [shape = 'u8[4096]{0}', space=vmem, size = 0x1000, scoped, tag = 'input window, operand 1, single buffered']
    #allocation7 [shape = 's32[1]{0}', space=sflag, size = 0x4, scoped, tag = 'scoped memory for tpu_custom_call.1']
    #allocation8 [shape = 'u8[4096]{0}', space=vmem, size = 0x1000, scoped, tag = 'input window, operand 2, single buffered']
    #allocation9 [shape = 'u8[65536]{0}', space=vmem, size = 0x10000, scoped, tag = 'input window, operand 4, single buffered']
    #allocation10 [shape = 's32[1]{0}', space=sflag, size = 0x4, scoped, tag = 'scoped memory for tpu_custom_call.1']
    #allocation11 [shape = 'u8[32768]{0}', space=vmem, size = 0x8000, scoped, tag = 'output window, operand 0, single buffered']
    %10 = vsyncpa [#allocation4], 0
    %11 = vsyncpa [#allocation7], 0
    %12 = vsyncpa [#allocation10], 0
    %13 = vsyncpa [#allocation5], 0
    // Predicated region
    $region2: #{tpu_custom_call.1} parent=1 // pred_check
      _
    $region3: #{tpu_custom_call.1} parent=1 // pred_check_branch
      %15 = sbr.rel (0) target = $region5
    $region4: #{tpu_custom_call.1} parent=1 // pred_region
      %s17 = ssub.s32 1024, 1024
      %18 = vsyncadd [#allocation4], %s17
      %s19 = sshll.u32 [#allocation3], 4
      %s20 = int_to_ptr.vmem [resolvable:$true] %s19
      %25 = dma.hbm_to_vmem [thread:$0]  %s0, 1024, %s20, [#allocation4], 128, 128, 8
    $region5: #{tpu_custom_call.1} parent=1 // pred_fallthru
      _
    // Predicated region
    $region6: #{tpu_custom_call.1} parent=1 // pred_check
      _
    $region7: #{tpu_custom_call.1} parent=1 // pred_check_branch
      %27 = sbr.rel (0) target = $region9
    $region8: #{tpu_custom_call.1} parent=1 // pred_region
      %s29 = ssub.s32 128, 128
      %30 = vsyncadd [#allocation7], %s29
      %s32 = sshll.u32 [#allocation6], 4
      %s33 = int_to_ptr.vmem [resolvable:$true] %s32
      %35 = dma.hbm_to_vmem [thread:$0]  %s1, 128, %s33, [#allocation7]
    $region9: #{tpu_custom_call.1} parent=1 // pred_fallthru
      _
    // Predicated region
    $region10: #{tpu_custom_call.1} parent=1 // pred_check
      _
    $region11: #{tpu_custom_call.1} parent=1 // pred_check_branch
      %37 = sbr.rel (0) target = $region13
    $region12: #{tpu_custom_call.1} parent=1 // pred_region
      %s39 = ssub.s32 128, 128
      %40 = vsyncadd [#allocation7], %s39
      %s42 = sshll.u32 [#allocation8], 4
      %s43 = int_to_ptr.vmem [resolvable:$true] %s42
      %45 = dma.hbm_to_vmem [thread:$0]  %s2, 128, %s43, [#allocation7]
    $region13: #{tpu_custom_call.1} parent=1 // pred_fallthru
      _
    // Predicated region
    $region14: #{tpu_custom_call.1} parent=1 // pred_check
      _
    $region15: #{tpu_custom_call.1} parent=1 // pred_check_branch
      %47 = sbr.rel (0) target = $region17
    $region16: #{tpu_custom_call.1} parent=1 // pred_region
      _
    $region17: #{tpu_custom_call.1} parent=1 // pred_fallthru
      _
    // Predicated region
    $region18: #{tpu_custom_call.1} parent=1 // pred_check
      _
    $region19: #{tpu_custom_call.1} parent=1 // pred_check_branch
      %49 = sbr.rel (0) target = $region21
    $region20: #{tpu_custom_call.1} parent=1 // pred_region
      %s51 = ssub.s32 2048, 2048
      %52 = vsyncadd [#allocation10], %s51
      %s53 = sshll.u32 [#allocation9], 4
      %s54 = int_to_ptr.vmem [resolvable:$true] %s53
      %59 = dma.hbm_to_vmem [thread:$0]  %s4, 2048, %s54, [#allocation10], 128, 128, 8
    $region21: #{tpu_custom_call.1} parent=1 // pred_fallthru
      _
    // Predicated region
    $region22: #{tpu_custom_call.1} parent=1 // pred_check
      _
    $region23: #{tpu_custom_call.1} parent=1 // pred_check_branch
      %61 = sbr.rel (0) target = $region25
    $region24: #{tpu_custom_call.1} parent=1 // pred_region
      %62 = dma.done [#allocation4], 1024
    $region25: #{tpu_custom_call.1} parent=1 // pred_fallthru
      _
    // Predicated region
    $region26: #{tpu_custom_call.1} parent=1 // pred_check
      _
    $region27: #{tpu_custom_call.1} parent=1 // pred_check_branch
      %64 = sbr.rel (0) target = $region29
    $region28: #{tpu_custom_call.1} parent=1 // pred_region
      %65 = dma.done [#allocation7], 128
    $region29: #{tpu_custom_call.1} parent=1 // pred_fallthru
      _
    // Predicated region
    $region30: #{tpu_custom_call.1} parent=1 // pred_check
      _
    $region31: #{tpu_custom_call.1} parent=1 // pred_check_branch
      %67 = sbr.rel (0) target = $region33
    $region32: #{tpu_custom_call.1} parent=1 // pred_region
      %68 = dma.done [#allocation7], 128
    $region33: #{tpu_custom_call.1} parent=1 // pred_fallthru
      _
    // Predicated region
    $region34: #{tpu_custom_call.1} parent=1 // pred_check
      _
    $region35: #{tpu_custom_call.1} parent=1 // pred_check_branch
      %70 = sbr.rel (0) target = $region37
    $region36: #{tpu_custom_call.1} parent=1 // pred_region
      %71 = dma.done [#allocation10], 2048
    $region37: #{tpu_custom_call.1} parent=1 // pred_fallthru
      _
    %p72 = scmp.eq.s32.totalorder 0, 0
    // Predicated region
    $region38: #{tpu_custom_call.1} parent=1 // pred_check
      %p73 = pneg %p72
    $region39: #{tpu_custom_call.1} parent=1 // pred_check_branch
      %75 = sbr.rel (%p73) target = $region41
    $region40: #{tpu_custom_call.1} parent=1 // pred_region
      %v76 = vld [vmem:[#allocation6] sm:$0xff]
      %77 = vst [vmem:[#allocation2] sm:$0xff] %v76
    $region41: #{tpu_custom_call.1} parent=1 // pred_fallthru
      _
    %v78 = vld [vmem:[#allocation2] sm:$0xff]
    %v79 = vld [vmem:[#allocation3] sm:$0xff]
    %v80 = vld [vmem:[#allocation8] sm:$0xff]
    %v81 = vld [vmem:[#allocation9] sm:$0xff]
    %v82 = vld [vmem:[#allocation9 + $0x8] sm:$0xff]
    %v83 = vld [vmem:[#allocation9 + $0x10] sm:$0xff]
    %v84 = vld [vmem:[#allocation9 + $0x18] sm:$0xff]
    %v85 = vld [vmem:[#allocation9 + $0x20] sm:$0xff]
    %v86 = vld [vmem:[#allocation9 + $0x28] sm:$0xff]
    %v87 = vld [vmem:[#allocation9 + $0x30] sm:$0xff]
    %v88 = vld [vmem:[#allocation9 + $0x38] sm:$0xff]
    %v89 = vld [vmem:[#allocation9 + $0x40] sm:$0xff]
    %v90 = vld [vmem:[#allocation9 + $0x48] sm:$0xff]
    %v91 = vld [vmem:[#allocation9 + $0x50] sm:$0xff]
    %v92 = vld [vmem:[#allocation9 + $0x58] sm:$0xff]
    %v93 = vld [vmem:[#allocation9 + $0x60] sm:$0xff]
    %v94 = vld [vmem:[#allocation9 + $0x68] sm:$0xff]
    %v95 = vld [vmem:[#allocation9 + $0x70] sm:$0xff]
    %v96 = vld [vmem:[#allocation9 + $0x78] sm:$0xff]
    %97 = vmatprep.subr.mxu0 0.0
    %98 = vmatpush1.msra.mxu0 %v96
    %99 = vmatprep.subr.mxu0 0.0
    %100 = vmatpush1.msra.mxu0 %v95
    %101 = vmatprep.subr.mxu0 0.0
    %102 = vmatpush1.msra.mxu0 %v94
    %103 = vmatprep.subr.mxu0 0.0
    %104 = vmatpush1.msra.mxu0 %v93
    %105 = vmatprep.subr.mxu0 0.0
    %106 = vmatpush1.msra.mxu0 %v92
    %107 = vmatprep.subr.mxu0 0.0
    %108 = vmatpush1.msra.mxu0 %v91
    %109 = vmatprep.subr.mxu0 0.0
    %110 = vmatpush1.msra.mxu0 %v90
    %111 = vmatprep.subr.mxu0 0.0
    %112 = vmatpush1.msra.mxu0 %v89
    %113 = vmatprep.subr.mxu0 0.0
    %114 = vmatpush1.msra.mxu0 %v88
    %115 = vmatprep.subr.mxu0 0.0
    %116 = vmatpush1.msra.mxu0 %v87
    %117 = vmatprep.subr.mxu0 0.0
    %118 = vmatpush1.msra.mxu0 %v86
    %119 = vmatprep.subr.mxu0 0.0
    %120 = vmatpush1.msra.mxu0 %v85
    %121 = vmatprep.subr.mxu0 0.0
    %122 = vmatpush1.msra.mxu0 %v84
    %123 = vmatprep.subr.mxu0 0.0
    %124 = vmatpush1.msra.mxu0 %v83
    %125 = vmatprep.subr.mxu0 0.0
    %126 = vmatpush1.msra.mxu0 %v82
    %127 = vmatprep.subr.mxu0 0.0
    %128 = vmatpush1.msra.mxu0 %v81
    %129 = vmatprep.subr.mxu0 0.0
    %130 = vmatpush2.msra.mxu0 0.0
    %131 = vmatprep.subr.mxu0 0.0
    %132 = vmatpush2.msra.mxu0 0.0
    %133 = vmatprep.subr.mxu0 0.0
    %134 = vmatpush2.msra.mxu0 0.0
    %135 = vmatprep.subr.mxu0 0.0
    %136 = vmatpush2.msra.mxu0 0.0
    %137 = vmatprep.subr.mxu0 0.0
    %138 = vmatpush2.msra.mxu0 0.0
    %139 = vmatprep.subr.mxu0 0.0
    %140 = vmatpush2.msra.mxu0 0.0
    %141 = vmatprep.subr.mxu0 0.0
    %142 = vmatpush2.msra.mxu0 0.0
    %143 = vmatprep.subr.mxu0 0.0
    %144 = vmatpush2.msra.mxu0 0.0
    %145 = vmatprep.subr.mxu0 0.0
    %146 = vmatpush2.msra.mxu0 0.0
    %147 = vmatprep.subr.mxu0 0.0
    %148 = vmatpush2.msra.mxu0 0.0
    %149 = vmatprep.subr.mxu0 0.0
    %150 = vmatpush2.msra.mxu0 0.0
    %151 = vmatprep.subr.mxu0 0.0
    %152 = vmatpush2.msra.mxu0 0.0
    %153 = vmatprep.subr.mxu0 0.0
    %154 = vmatpush2.msra.mxu0 0.0
    %155 = vmatprep.subr.mxu0 0.0
    %156 = vmatpush2.msra.mxu0 0.0
    %157 = vmatprep.subr.mxu0 0.0
    %158 = vmatpush2.msra.mxu0 0.0
    %159 = vmatprep.subr.mxu0 0.0
    %160 = vmatpush2.msra.mxu0 0.0
    %161 = vmatprep.mubr.f32.mxu0 0.0
    %162 = vmatmul.mubr.f32.gmra.mxu0 %v78
    %v163 = vpop.f32.mrf.mxu0
    %v164 = vadd.f32 0.0, %v163
    %v165 = vpop.f32.mrf.mxu0
    %166 = vdwg.mxu0
    %vm167 = vcmask 64512
    %v169 = vsel %vm167, %v79, 0
    %171 = vmatprep.subr.mxu0 0.0
    %172 = vmatpush1.msra.mxu0 0.0
    %173 = vmatprep.subr.mxu0 0.0
    %174 = vmatpush1.msra.mxu0 0.0
    %175 = vmatprep.subr.mxu0 0.0
    %176 = vmatpush1.msra.mxu0 0.0
    %177 = vmatprep.subr.mxu0 0.0
    %178 = vmatpush1.msra.mxu0 0.0
    %179 = vmatprep.subr.mxu0 0.0
    %180 = vmatpush1.msra.mxu0 0.0
    %181 = vmatprep.subr.mxu0 0.0
    %182 = vmatpush1.msra.mxu0 0.0
    %183 = vmatprep.subr.mxu0 0.0
    %184 = vmatpush1.msra.mxu0 0.0
    %185 = vmatprep.subr.mxu0 0.0
    %186 = vmatpush1.msra.mxu0 0.0
    %187 = vmatprep.subr.mxu0 0.0
    %188 = vmatpush1.msra.mxu0 0.0
    %189 = vmatprep.subr.mxu0 0.0
    %190 = vmatpush1.msra.mxu0 0.0
    %191 = vmatprep.subr.mxu0 0.0
    %192 = vmatpush1.msra.mxu0 0.0
    %193 = vmatprep.subr.mxu0 0.0
    %194 = vmatpush1.msra.mxu0 0.0
    %195 = vmatprep.subr.mxu0 0.0
    %196 = vmatpush1.msra.mxu0 0.0
    %197 = vmatprep.subr.mxu0 0.0
    %198 = vmatpush1.msra.mxu0 0.0
    %199 = vmatprep.subr.mxu0 0.0
    %200 = vmatpush1.msra.mxu0 0.0
    %201 = vmatprep.subr.mxu0 0.0
    %202 = vmatpush1.msra.mxu0 %v80
    %203 = vmatprep.subr.mxu0 0.0
    %204 = vmatpush2.msra.mxu0 0.0
    %205 = vmatprep.subr.mxu0 0.0
    %206 = vmatpush2.msra.mxu0 0.0
    %207 = vmatprep.subr.mxu0 0.0
    %208 = vmatpush2.msra.mxu0 0.0
    %209 = vmatprep.subr.mxu0 0.0
    %210 = vmatpush2.msra.mxu0 0.0
    %211 = vmatprep.subr.mxu0 0.0
    %212 = vmatpush2.msra.mxu0 0.0
    %213 = vmatprep.subr.mxu0 0.0
    %214 = vmatpush2.msra.mxu0 0.0
    %215 = vmatprep.subr.mxu0 0.0
    %216 = vmatpush2.msra.mxu0 0.0
    %217 = vmatprep.subr.mxu0 0.0
    %218 = vmatpush2.msra.mxu0 0.0
    %219 = vmatprep.subr.mxu0 0.0
    %220 = vmatpush2.msra.mxu0 0.0
    %221 = vmatprep.subr.mxu0 0.0
    %222 = vmatpush2.msra.mxu0 0.0
    %223 = vmatprep.subr.mxu0 0.0
    %224 = vmatpush2.msra.mxu0 0.0
    %225 = vmatprep.subr.mxu0 0.0
    %226 = vmatpush2.msra.mxu0 0.0
    %227 = vmatprep.subr.mxu0 0.0
    %228 = vmatpush2.msra.mxu0 0.0
    %229 = vmatprep.subr.mxu0 0.0
    %230 = vmatpush2.msra.mxu0 0.0
    %231 = vmatprep.subr.mxu0 0.0
    %232 = vmatpush2.msra.mxu0 0.0
    %233 = vmatprep.subr.mxu0 0.0
    %234 = vmatpush2.msra.mxu0 0.0
    %235 = vmatprep.mubr.f32.mxu0 0.0
    %236 = vmatmul.mubr.f32.gmra.mxu0 %v169
    %v237 = vpop.f32.mrf.mxu0
    %v238 = vadd.f32 %v164, %v237
    %v239 = vpop.f32.mrf.mxu0
    %240 = vdwg.mxu0
    %v241 = vld [vmem:[%s3] sm:$0x1]
    %v243 = vlaneseq
    %v244 = vshrl.u32 %v243, 7
    %v245 = vsub.s32 0, %v244
    %v246 = vrot.slane %v241, %v245
    %v248 = vadd.f32 %v238, %v246
    %v249 = vmax.f32 %v248, 0.0
    %v250 = vmul.f32 %v78, 0.9
    %v251 = vmul.f32 %v249, 0.1
    %v252 = vadd.f32 %v250, %v251
    %253 = vst [vmem:[#allocation11] sm:$0xff] %v252
    %s254 = scalar_lea.vmem [#allocation3], 8
    %v255 = vld [vmem:[%s254] sm:$0xff]
    %v256 = vld [vmem:[#allocation8] sm:$0xff]
    %v257 = vld [vmem:[#allocation9] sm:$0xff]
    %v258 = vld [vmem:[#allocation9 + $0x8] sm:$0xff]
    %v259 = vld [vmem:[#allocation9 + $0x10] sm:$0xff]
    %v260 = vld [vmem:[#allocation9 + $0x18] sm:$0xff]
    %v261 = vld [vmem:[#allocation9 + $0x20] sm:$0xff]
    %v262 = vld [vmem:[#allocation9 + $0x28] sm:$0xff]
    %v263 = vld [vmem:[#allocation9 + $0x30] sm:$0xff]
    %v264 = vld [vmem:[#allocation9 + $0x38] sm:$0xff]
    %v265 = vld [vmem:[#allocation9 + $0x40] sm:$0xff]
    %v266 = vld [vmem:[#allocation9 + $0x48] sm:$0xff]
    %v267 = vld [vmem:[#allocation9 + $0x50] sm:$0xff]
    %v268 = vld [vmem:[#allocation9 + $0x58] sm:$0xff]
    %v269 = vld [vmem:[#allocation9 + $0x60] sm:$0xff]
    %v270 = vld [vmem:[#allocation9 + $0x68] sm:$0xff]
    %v271 = vld [vmem:[#allocation9 + $0x70] sm:$0xff]
    %v272 = vld [vmem:[#allocation9 + $0x78] sm:$0xff]
    %273 = vmatprep.subr.mxu0 0.0
    %274 = vmatpush1.msra.mxu0 %v272
    %275 = vmatprep.subr.mxu0 0.0
    %276 = vmatpush1.msra.mxu0 %v271
    %277 = vmatprep.subr.mxu0 0.0
    %278 = vmatpush1.msra.mxu0 %v270
    %279 = vmatprep.subr.mxu0 0.0
    %280 = vmatpush1.msra.mxu0 %v269
    %281 = vmatprep.subr.mxu0 0.0
    %282 = vmatpush1.msra.mxu0 %v268
    %283 = vmatprep.subr.mxu0 0.0
    %284 = vmatpush1.msra.mxu0 %v267
    %285 = vmatprep.subr.mxu0 0.0
    %286 = vmatpush1.msra.mxu0 %v266
    %287 = vmatprep.subr.mxu0 0.0
    %288 = vmatpush1.msra.mxu0 %v265
    %289 = vmatprep.subr.mxu0 0.0
    %290 = vmatpush1.msra.mxu0 %v264
    %291 = vmatprep.subr.mxu0 0.0
    %292 = vmatpush1.msra.mxu0 %v263
    %293 = vmatprep.subr.mxu0 0.0
    %294 = vmatpush1.msra.mxu0 %v262
    %295 = vmatprep.subr.mxu0 0.0
    %296 = vmatpush1.msra.mxu0 %v261
    %297 = vmatprep.subr.mxu0 0.0
    %298 = vmatpush1.msra.mxu0 %v260
    %299 = vmatprep.subr.mxu0 0.0
    %300 = vmatpush1.msra.mxu0 %v259
    %301 = vmatprep.subr.mxu0 0.0
    %302 = vmatpush1.msra.mxu0 %v258
    %303 = vmatprep.subr.mxu0 0.0
    %304 = vmatpush1.msra.mxu0 %v257
    %305 = vmatprep.subr.mxu0 0.0
    %306 = vmatpush2.msra.mxu0 0.0
    %307 = vmatprep.subr.mxu0 0.0
    %308 = vmatpush2.msra.mxu0 0.0
    %309 = vmatprep.subr.mxu0 0.0
    %310 = vmatpush2.msra.mxu0 0.0
    %311 = vmatprep.subr.mxu0 0.0
    %312 = vmatpush2.msra.mxu0 0.0
    %313 = vmatprep.subr.mxu0 0.0
    %314 = vmatpush2.msra.mxu0 0.0
    %315 = vmatprep.subr.mxu0 0.0
    %316 = vmatpush2.msra.mxu0 0.0
    %317 = vmatprep.subr.mxu0 0.0
    %318 = vmatpush2.msra.mxu0 0.0
    %319 = vmatprep.subr.mxu0 0.0
    %320 = vmatpush2.msra.mxu0 0.0
    %321 = vmatprep.subr.mxu0 0.0
    %322 = vmatpush2.msra.mxu0 0.0
    %323 = vmatprep.subr.mxu0 0.0
    %324 = vmatpush2.msra.mxu0 0.0
    %325 = vmatprep.subr.mxu0 0.0
    %326 = vmatpush2.msra.mxu0 0.0
    %327 = vmatprep.subr.mxu0 0.0
    %328 = vmatpush2.msra.mxu0 0.0
    %329 = vmatprep.subr.mxu0 0.0
    %330 = vmatpush2.msra.mxu0 0.0
    %331 = vmatprep.subr.mxu0 0.0
    %332 = vmatpush2.msra.mxu0 0.0
    %333 = vmatprep.subr.mxu0 0.0
    %334 = vmatpush2.msra.mxu0 0.0
    %335 = vmatprep.subr.mxu0 0.0
    %336 = vmatpush2.msra.mxu0 0.0
    %337 = vmatprep.mubr.f32.mxu0 0.0
    %338 = vmatmul.mubr.f32.gmra.mxu0 %v252
    %v339 = vpop.f32.mrf.mxu0
    %v340 = vadd.f32 0.0, %v339
    %v341 = vpop.f32.mrf.mxu0
    %342 = vdwg.mxu0
    %v344 = vsel %vm167, %v255, 0
    %346 = vmatprep.subr.mxu0 0.0
    %347 = vmatpush1.msra.mxu0 0.0
    %348 = vmatprep.subr.mxu0 0.0
    %349 = vmatpush1.msra.mxu0 0.0
    %350 = vmatprep.subr.mxu0 0.0
    %351 = vmatpush1.msra.mxu0 0.0
    %352 = vmatprep.subr.mxu0 0.0
    %353 = vmatpush1.msra.mxu0 0.0
    %354 = vmatprep.subr.mxu0 0.0
    %355 = vmatpush1.msra.mxu0 0.0
    %356 = vmatprep.subr.mxu0 0.0
    %357 = vmatpush1.msra.mxu0 0.0
    %358 = vmatprep.subr.mxu0 0.0
    %359 = vmatpush1.msra.mxu0 0.0
    %360 = vmatprep.subr.mxu0 0.0
    %361 = vmatpush1.msra.mxu0 0.0
    %362 = vmatprep.subr.mxu0 0.0
    %363 = vmatpush1.msra.mxu0 0.0
    %364 = vmatprep.subr.mxu0 0.0
    %365 = vmatpush1.msra.mxu0 0.0
    %366 = vmatprep.subr.mxu0 0.0
    %367 = vmatpush1.msra.mxu0 0.0
    %368 = vmatprep.subr.mxu0 0.0
    %369 = vmatpush1.msra.mxu0 0.0
    %370 = vmatprep.subr.mxu0 0.0
    %371 = vmatpush1.msra.mxu0 0.0
    %372 = vmatprep.subr.mxu0 0.0
    %373 = vmatpush1.msra.mxu0 0.0
    %374 = vmatprep.subr.mxu0 0.0
    %375 = vmatpush1.msra.mxu0 0.0
    %376 = vmatprep.subr.mxu0 0.0
    %377 = vmatpush1.msra.mxu0 %v256
    %378 = vmatprep.subr.mxu0 0.0
    %379 = vmatpush2.msra.mxu0 0.0
    %380 = vmatprep.subr.mxu0 0.0
    %381 = vmatpush2.msra.mxu0 0.0
    %382 = vmatprep.subr.mxu0 0.0
    %383 = vmatpush2.msra.mxu0 0.0
    %384 = vmatprep.subr.mxu0 0.0
    %385 = vmatpush2.msra.mxu0 0.0
    %386 = vmatprep.subr.mxu0 0.0
    %387 = vmatpush2.msra.mxu0 0.0
    %388 = vmatprep.subr.mxu0 0.0
    %389 = vmatpush2.msra.mxu0 0.0
    %390 = vmatprep.subr.mxu0 0.0
    %391 = vmatpush2.msra.mxu0 0.0
    %392 = vmatprep.subr.mxu0 0.0
    %393 = vmatpush2.msra.mxu0 0.0
    %394 = vmatprep.subr.mxu0 0.0
    %395 = vmatpush2.msra.mxu0 0.0
    %396 = vmatprep.subr.mxu0 0.0
    %397 = vmatpush2.msra.mxu0 0.0
    %398 = vmatprep.subr.mxu0 0.0
    %399 = vmatpush2.msra.mxu0 0.0
    %400 = vmatprep.subr.mxu0 0.0
    %401 = vmatpush2.msra.mxu0 0.0
    %402 = vmatprep.subr.mxu0 0.0
    %403 = vmatpush2.msra.mxu0 0.0
    %404 = vmatprep.subr.mxu0 0.0
    %405 = vmatpush2.msra.mxu0 0.0
    %406 = vmatprep.subr.mxu0 0.0
    %407 = vmatpush2.msra.mxu0 0.0
    %408 = vmatprep.subr.mxu0 0.0
    %409 = vmatpush2.msra.mxu0 0.0
    %410 = vmatprep.mubr.f32.mxu0 0.0
    %411 = vmatmul.mubr.f32.gmra.mxu0 %v344
    %v412 = vpop.f32.mrf.mxu0
    %v413 = vadd.f32 %v340, %v412
    %v414 = vpop.f32.mrf.mxu0
    %415 = vdwg.mxu0
    %v416 = vld [vmem:[%s3] sm:$0x1]
    %v418 = vlaneseq
    %v419 = vshrl.u32 %v418, 7
    %v420 = vsub.s32 0, %v419
    %v421 = vrot.slane %v416, %v420
    %v423 = vadd.f32 %v413, %v421
    %v424 = vmax.f32 %v423, 0.0
    %v425 = vmul.f32 %v252, 0.9
    %v426 = vmul.f32 %v424, 0.1
    %v427 = vadd.f32 %v425, %v426
    %s428 = scalar_lea.vmem [#allocation11], 8
    %429 = vst [vmem:[%s428] sm:$0xff] %v427
    %s430 = scalar_lea.vmem [#allocation3], 16
    %v431 = vld [vmem:[%s430] sm:$0xff]
    %v432 = vld [vmem:[#allocation8] sm:$0xff]
    %v433 = vld [vmem:[#allocation9] sm:$0xff]
    %v434 = vld [vmem:[#allocation9 + $0x8] sm:$0xff]
    %v435 = vld [vmem:[#allocation9 + $0x10] sm:$0xff]
    %v436 = vld [vmem:[#allocation9 + $0x18] sm:$0xff]
    %v437 = vld [vmem:[#allocation9 + $0x20] sm:$0xff]
    %v438 = vld [vmem:[#allocation9 + $0x28] sm:$0xff]
    %v439 = vld [vmem:[#allocation9 + $0x30] sm:$0xff]
    %v440 = vld [vmem:[#allocation9 + $0x38] sm:$0xff]
    %v441 = vld [vmem:[#allocation9 + $0x40] sm:$0xff]
    %v442 = vld [vmem:[#allocation9 + $0x48] sm:$0xff]
    %v443 = vld [vmem:[#allocation9 + $0x50] sm:$0xff]
    %v444 = vld [vmem:[#allocation9 + $0x58] sm:$0xff]
    %v445 = vld [vmem:[#allocation9 + $0x60] sm:$0xff]
    %v446 = vld [vmem:[#allocation9 + $0x68] sm:$0xff]
    %v447 = vld [vmem:[#allocation9 + $0x70] sm:$0xff]
    %v448 = vld [vmem:[#allocation9 + $0x78] sm:$0xff]
    %449 = vmatprep.subr.mxu0 0.0
    %450 = vmatpush1.msra.mxu0 %v448
    %451 = vmatprep.subr.mxu0 0.0
    %452 = vmatpush1.msra.mxu0 %v447
    %453 = vmatprep.subr.mxu0 0.0
    %454 = vmatpush1.msra.mxu0 %v446
    %455 = vmatprep.subr.mxu0 0.0
    %456 = vmatpush1.msra.mxu0 %v445
    %457 = vmatprep.subr.mxu0 0.0
    %458 = vmatpush1.msra.mxu0 %v444
    %459 = vmatprep.subr.mxu0 0.0
    %460 = vmatpush1.msra.mxu0 %v443
    %461 = vmatprep.subr.mxu0 0.0
    %462 = vmatpush1.msra.mxu0 %v442
    %463 = vmatprep.subr.mxu0 0.0
    %464 = vmatpush1.msra.mxu0 %v441
    %465 = vmatprep.subr.mxu0 0.0
    %466 = vmatpush1.msra.mxu0 %v440
    %467 = vmatprep.subr.mxu0 0.0
    %468 = vmatpush1.msra.mxu0 %v439
    %469 = vmatprep.subr.mxu0 0.0
    %470 = vmatpush1.msra.mxu0 %v438
    %471 = vmatprep.subr.mxu0 0.0
    %472 = vmatpush1.msra.mxu0 %v437
    %473 = vmatprep.subr.mxu0 0.0
    %474 = vmatpush1.msra.mxu0 %v436
    %475 = vmatprep.subr.mxu0 0.0
    %476 = vmatpush1.msra.mxu0 %v435
    %477 = vmatprep.subr.mxu0 0.0
    %478 = vmatpush1.msra.mxu0 %v434
    %479 = vmatprep.subr.mxu0 0.0
    %480 = vmatpush1.msra.mxu0 %v433
    %481 = vmatprep.subr.mxu0 0.0
    %482 = vmatpush2.msra.mxu0 0.0
    %483 = vmatprep.subr.mxu0 0.0
    %484 = vmatpush2.msra.mxu0 0.0
    %485 = vmatprep.subr.mxu0 0.0
    %486 = vmatpush2.msra.mxu0 0.0
    %487 = vmatprep.subr.mxu0 0.0
    %488 = vmatpush2.msra.mxu0 0.0
    %489 = vmatprep.subr.mxu0 0.0
    %490 = vmatpush2.msra.mxu0 0.0
    %491 = vmatprep.subr.mxu0 0.0
    %492 = vmatpush2.msra.mxu0 0.0
    %493 = vmatprep.subr.mxu0 0.0
    %494 = vmatpush2.msra.mxu0 0.0
    %495 = vmatprep.subr.mxu0 0.0
    %496 = vmatpush2.msra.mxu0 0.0
    %497 = vmatprep.subr.mxu0 0.0
    %498 = vmatpush2.msra.mxu0 0.0
    %499 = vmatprep.subr.mxu0 0.0
    %500 = vmatpush2.msra.mxu0 0.0
    %501 = vmatprep.subr.mxu0 0.0
    %502 = vmatpush2.msra.mxu0 0.0
    %503 = vmatprep.subr.mxu0 0.0
    %504 = vmatpush2.msra.mxu0 0.0
    %505 = vmatprep.subr.mxu0 0.0
    %506 = vmatpush2.msra.mxu0 0.0
    %507 = vmatprep.subr.mxu0 0.0
    %508 = vmatpush2.msra.mxu0 0.0
    %509 = vmatprep.subr.mxu0 0.0
    %510 = vmatpush2.msra.mxu0 0.0
    %511 = vmatprep.subr.mxu0 0.0
    %512 = vmatpush2.msra.mxu0 0.0
    %513 = vmatprep.mubr.f32.mxu0 0.0
    %514 = vmatmul.mubr.f32.gmra.mxu0 %v427
    %v515 = vpop.f32.mrf.mxu0
    %v516 = vadd.f32 0.0, %v515
    %v517 = vpop.f32.mrf.mxu0
    %518 = vdwg.mxu0
    %v520 = vsel %vm167, %v431, 0
    %522 = vmatprep.subr.mxu0 0.0
    %523 = vmatpush1.msra.mxu0 0.0
    %524 = vmatprep.subr.mxu0 0.0
    %525 = vmatpush1.msra.mxu0 0.0
    %526 = vmatprep.subr.mxu0 0.0
    %527 = vmatpush1.msra.mxu0 0.0
    %528 = vmatprep.subr.mxu0 0.0
    %529 = vmatpush1.msra.mxu0 0.0
    %530 = vmatprep.subr.mxu0 0.0
    %531 = vmatpush1.msra.mxu0 0.0
    %532 = vmatprep.subr.mxu0 0.0
    %533 = vmatpush1.msra.mxu0 0.0
    %534 = vmatprep.subr.mxu0 0.0
    %535 = vmatpush1.msra.mxu0 0.0
    %536 = vmatprep.subr.mxu0 0.0
    %537 = vmatpush1.msra.mxu0 0.0
    %538 = vmatprep.subr.mxu0 0.0
    %539 = vmatpush1.msra.mxu0 0.0
    %540 = vmatprep.subr.mxu0 0.0
    %541 = vmatpush1.msra.mxu0 0.0
    %542 = vmatprep.subr.mxu0 0.0
    %543 = vmatpush1.msra.mxu0 0.0
    %544 = vmatprep.subr.mxu0 0.0
    %545 = vmatpush1.msra.mxu0 0.0
    %546 = vmatprep.subr.mxu0 0.0
    %547 = vmatpush1.msra.mxu0 0.0
    %548 = vmatprep.subr.mxu0 0.0
    %549 = vmatpush1.msra.mxu0 0.0
    %550 = vmatprep.subr.mxu0 0.0
    %551 = vmatpush1.msra.mxu0 0.0
    %552 = vmatprep.subr.mxu0 0.0
    %553 = vmatpush1.msra.mxu0 %v432
    %554 = vmatprep.subr.mxu0 0.0
    %555 = vmatpush2.msra.mxu0 0.0
    %556 = vmatprep.subr.mxu0 0.0
    %557 = vmatpush2.msra.mxu0 0.0
    %558 = vmatprep.subr.mxu0 0.0
    %559 = vmatpush2.msra.mxu0 0.0
    %560 = vmatprep.subr.mxu0 0.0
    %561 = vmatpush2.msra.mxu0 0.0
    %562 = vmatprep.subr.mxu0 0.0
    %563 = vmatpush2.msra.mxu0 0.0
    %564 = vmatprep.subr.mxu0 0.0
    %565 = vmatpush2.msra.mxu0 0.0
    %566 = vmatprep.subr.mxu0 0.0
    %567 = vmatpush2.msra.mxu0 0.0
    %568 = vmatprep.subr.mxu0 0.0
    %569 = vmatpush2.msra.mxu0 0.0
    %570 = vmatprep.subr.mxu0 0.0
    %571 = vmatpush2.msra.mxu0 0.0
    %572 = vmatprep.subr.mxu0 0.0
    %573 = vmatpush2.msra.mxu0 0.0
    %574 = vmatprep.subr.mxu0 0.0
    %575 = vmatpush2.msra.mxu0 0.0
    %576 = vmatprep.subr.mxu0 0.0
    %577 = vmatpush2.msra.mxu0 0.0
    %578 = vmatprep.subr.mxu0 0.0
    %579 = vmatpush2.msra.mxu0 0.0
    %580 = vmatprep.subr.mxu0 0.0
    %581 = vmatpush2.msra.mxu0 0.0
    %582 = vmatprep.subr.mxu0 0.0
    %583 = vmatpush2.msra.mxu0 0.0
    %584 = vmatprep.subr.mxu0 0.0
    %585 = vmatpush2.msra.mxu0 0.0
    %586 = vmatprep.mubr.f32.mxu0 0.0
    %587 = vmatmul.mubr.f32.gmra.mxu0 %v520
    %v588 = vpop.f32.mrf.mxu0
    %v589 = vadd.f32 %v516, %v588
    %v590 = vpop.f32.mrf.mxu0
    %591 = vdwg.mxu0
    %v592 = vld [vmem:[%s3] sm:$0x1]
    %v594 = vlaneseq
    %v595 = vshrl.u32 %v594, 7
    %v596 = vsub.s32 0, %v595
    %v597 = vrot.slane %v592, %v596
    %v599 = vadd.f32 %v589, %v597
    %v600 = vmax.f32 %v599, 0.0
    %v601 = vmul.f32 %v427, 0.9
    %v602 = vmul.f32 %v600, 0.1
    %v603 = vadd.f32 %v601, %v602
    %s604 = scalar_lea.vmem [#allocation11], 16
    %605 = vst [vmem:[%s604] sm:$0xff] %v603
    %s606 = scalar_lea.vmem [#allocation3], 24
    %v607 = vld [vmem:[%s606] sm:$0xff]
    %v608 = vld [vmem:[#allocation8] sm:$0xff]
    %v609 = vld [vmem:[#allocation9] sm:$0xff]
    %v610 = vld [vmem:[#allocation9 + $0x8] sm:$0xff]
    %v611 = vld [vmem:[#allocation9 + $0x10] sm:$0xff]
    %v612 = vld [vmem:[#allocation9 + $0x18] sm:$0xff]
    %v613 = vld [vmem:[#allocation9 + $0x20] sm:$0xff]
    %v614 = vld [vmem:[#allocation9 + $0x28] sm:$0xff]
    %v615 = vld [vmem:[#allocation9 + $0x30] sm:$0xff]
    %v616 = vld [vmem:[#allocation9 + $0x38] sm:$0xff]
    %v617 = vld [vmem:[#allocation9 + $0x40] sm:$0xff]
    %v618 = vld [vmem:[#allocation9 + $0x48] sm:$0xff]
    %v619 = vld [vmem:[#allocation9 + $0x50] sm:$0xff]
    %v620 = vld [vmem:[#allocation9 + $0x58] sm:$0xff]
    %v621 = vld [vmem:[#allocation9 + $0x60] sm:$0xff]
    %v622 = vld [vmem:[#allocation9 + $0x68] sm:$0xff]
    %v623 = vld [vmem:[#allocation9 + $0x70] sm:$0xff]
    %v624 = vld [vmem:[#allocation9 + $0x78] sm:$0xff]
    %625 = vmatprep.subr.mxu0 0.0
    %626 = vmatpush1.msra.mxu0 %v624
    %627 = vmatprep.subr.mxu0 0.0
    %628 = vmatpush1.msra.mxu0 %v623
    %629 = vmatprep.subr.mxu0 0.0
    %630 = vmatpush1.msra.mxu0 %v622
    %631 = vmatprep.subr.mxu0 0.0
    %632 = vmatpush1.msra.mxu0 %v621
    %633 = vmatprep.subr.mxu0 0.0
    %634 = vmatpush1.msra.mxu0 %v620
    %635 = vmatprep.subr.mxu0 0.0
    %636 = vmatpush1.msra.mxu0 %v619
    %637 = vmatprep.subr.mxu0 0.0
    %638 = vmatpush1.msra.mxu0 %v618
    %639 = vmatprep.subr.mxu0 0.0
    %640 = vmatpush1.msra.mxu0 %v617
    %641 = vmatprep.subr.mxu0 0.0
    %642 = vmatpush1.msra.mxu0 %v616
    %643 = vmatprep.subr.mxu0 0.0
    %644 = vmatpush1.msra.mxu0 %v615
    %645 = vmatprep.subr.mxu0 0.0
    %646 = vmatpush1.msra.mxu0 %v614
    %647 = vmatprep.subr.mxu0 0.0
    %648 = vmatpush1.msra.mxu0 %v613
    %649 = vmatprep.subr.mxu0 0.0
    %650 = vmatpush1.msra.mxu0 %v612
    %651 = vmatprep.subr.mxu0 0.0
    %652 = vmatpush1.msra.mxu0 %v611
    %653 = vmatprep.subr.mxu0 0.0
    %654 = vmatpush1.msra.mxu0 %v610
    %655 = vmatprep.subr.mxu0 0.0
    %656 = vmatpush1.msra.mxu0 %v609
    %657 = vmatprep.subr.mxu0 0.0
    %658 = vmatpush2.msra.mxu0 0.0
    %659 = vmatprep.subr.mxu0 0.0
    %660 = vmatpush2.msra.mxu0 0.0
    %661 = vmatprep.subr.mxu0 0.0
    %662 = vmatpush2.msra.mxu0 0.0
    %663 = vmatprep.subr.mxu0 0.0
    %664 = vmatpush2.msra.mxu0 0.0
    %665 = vmatprep.subr.mxu0 0.0
    %666 = vmatpush2.msra.mxu0 0.0
    %667 = vmatprep.subr.mxu0 0.0
    %668 = vmatpush2.msra.mxu0 0.0
    %669 = vmatprep.subr.mxu0 0.0
    %670 = vmatpush2.msra.mxu0 0.0
    %671 = vmatprep.subr.mxu0 0.0
    %672 = vmatpush2.msra.mxu0 0.0
    %673 = vmatprep.subr.mxu0 0.0
    %674 = vmatpush2.msra.mxu0 0.0
    %675 = vmatprep.subr.mxu0 0.0
    %676 = vmatpush2.msra.mxu0 0.0
    %677 = vmatprep.subr.mxu0 0.0
    %678 = vmatpush2.msra.mxu0 0.0
    %679 = vmatprep.subr.mxu0 0.0
    %680 = vmatpush2.msra.mxu0 0.0
    %681 = vmatprep.subr.mxu0 0.0
    %682 = vmatpush2.msra.mxu0 0.0
    %683 = vmatprep.subr.mxu0 0.0
    %684 = vmatpush2.msra.mxu0 0.0
    %685 = vmatprep.subr.mxu0 0.0
    %686 = vmatpush2.msra.mxu0 0.0
    %687 = vmatprep.subr.mxu0 0.0
    %688 = vmatpush2.msra.mxu0 0.0
    %689 = vmatprep.mubr.f32.mxu0 0.0
    %690 = vmatmul.mubr.f32.gmra.mxu0 %v603
    %v691 = vpop.f32.mrf.mxu0
    %v692 = vadd.f32 0.0, %v691
    %v693 = vpop.f32.mrf.mxu0
    %694 = vdwg.mxu0
    %v696 = vsel %vm167, %v607, 0
    %698 = vmatprep.subr.mxu0 0.0
    %699 = vmatpush1.msra.mxu0 0.0
    %700 = vmatprep.subr.mxu0 0.0
    %701 = vmatpush1.msra.mxu0 0.0
    %702 = vmatprep.subr.mxu0 0.0
    %703 = vmatpush1.msra.mxu0 0.0
    %704 = vmatprep.subr.mxu0 0.0
    %705 = vmatpush1.msra.mxu0 0.0
    %706 = vmatprep.subr.mxu0 0.0
    %707 = vmatpush1.msra.mxu0 0.0
    %708 = vmatprep.subr.mxu0 0.0
    %709 = vmatpush1.msra.mxu0 0.0
    %710 = vmatprep.subr.mxu0 0.0
    %711 = vmatpush1.msra.mxu0 0.0
    %712 = vmatprep.subr.mxu0 0.0
    %713 = vmatpush1.msra.mxu0 0.0
    %714 = vmatprep.subr.mxu0 0.0
    %715 = vmatpush1.msra.mxu0 0.0
    %716 = vmatprep.subr.mxu0 0.0
    %717 = vmatpush1.msra.mxu0 0.0
    %718 = vmatprep.subr.mxu0 0.0
    %719 = vmatpush1.msra.mxu0 0.0
    %720 = vmatprep.subr.mxu0 0.0
    %721 = vmatpush1.msra.mxu0 0.0
    %722 = vmatprep.subr.mxu0 0.0
    %723 = vmatpush1.msra.mxu0 0.0
    %724 = vmatprep.subr.mxu0 0.0
    %725 = vmatpush1.msra.mxu0 0.0
    %726 = vmatprep.subr.mxu0 0.0
    %727 = vmatpush1.msra.mxu0 0.0
    %728 = vmatprep.subr.mxu0 0.0
    %729 = vmatpush1.msra.mxu0 %v608
    %730 = vmatprep.subr.mxu0 0.0
    %731 = vmatpush2.msra.mxu0 0.0
    %732 = vmatprep.subr.mxu0 0.0
    %733 = vmatpush2.msra.mxu0 0.0
    %734 = vmatprep.subr.mxu0 0.0
    %735 = vmatpush2.msra.mxu0 0.0
    %736 = vmatprep.subr.mxu0 0.0
    %737 = vmatpush2.msra.mxu0 0.0
    %738 = vmatprep.subr.mxu0 0.0
    %739 = vmatpush2.msra.mxu0 0.0
    %740 = vmatprep.subr.mxu0 0.0
    %741 = vmatpush2.msra.mxu0 0.0
    %742 = vmatprep.subr.mxu0 0.0
    %743 = vmatpush2.msra.mxu0 0.0
    %744 = vmatprep.subr.mxu0 0.0
    %745 = vmatpush2.msra.mxu0 0.0
    %746 = vmatprep.subr.mxu0 0.0
    %747 = vmatpush2.msra.mxu0 0.0
    %748 = vmatprep.subr.mxu0 0.0
    %749 = vmatpush2.msra.mxu0 0.0
    %750 = vmatprep.subr.mxu0 0.0
    %751 = vmatpush2.msra.mxu0 0.0
    %752 = vmatprep.subr.mxu0 0.0
    %753 = vmatpush2.msra.mxu0 0.0
    %754 = vmatprep.subr.mxu0 0.0
    %755 = vmatpush2.msra.mxu0 0.0
    %756 = vmatprep.subr.mxu0 0.0
    %757 = vmatpush2.msra.mxu0 0.0
    %758 = vmatprep.subr.mxu0 0.0
    %759 = vmatpush2.msra.mxu0 0.0
    %760 = vmatprep.subr.mxu0 0.0
    %761 = vmatpush2.msra.mxu0 0.0
    %762 = vmatprep.mubr.f32.mxu0 0.0
    %763 = vmatmul.mubr.f32.gmra.mxu0 %v696
    %v764 = vpop.f32.mrf.mxu0
    %v765 = vadd.f32 %v692, %v764
    %v766 = vpop.f32.mrf.mxu0
    %767 = vdwg.mxu0
    %v768 = vld [vmem:[%s3] sm:$0x1]
    %v770 = vlaneseq
    %v771 = vshrl.u32 %v770, 7
    %v772 = vsub.s32 0, %v771
    %v773 = vrot.slane %v768, %v772
    %v775 = vadd.f32 %v765, %v773
    %v776 = vmax.f32 %v775, 0.0
    %v777 = vmul.f32 %v603, 0.9
    %v778 = vmul.f32 %v776, 0.1
    %v779 = vadd.f32 %v777, %v778
    %s780 = scalar_lea.vmem [#allocation11], 24
    %781 = vst [vmem:[%s780] sm:$0xff] %v779
    %s782 = scalar_lea.vmem [#allocation3], 32
    %v783 = vld [vmem:[%s782] sm:$0xff]
    %v784 = vld [vmem:[#allocation8] sm:$0xff]
    %v785 = vld [vmem:[#allocation9] sm:$0xff]
    %v786 = vld [vmem:[#allocation9 + $0x8] sm:$0xff]
    %v787 = vld [vmem:[#allocation9 + $0x10] sm:$0xff]
    %v788 = vld [vmem:[#allocation9 + $0x18] sm:$0xff]
    %v789 = vld [vmem:[#allocation9 + $0x20] sm:$0xff]
    %v790 = vld [vmem:[#allocation9 + $0x28] sm:$0xff]
    %v791 = vld [vmem:[#allocation9 + $0x30] sm:$0xff]
    %v792 = vld [vmem:[#allocation9 + $0x38] sm:$0xff]
    %v793 = vld [vmem:[#allocation9 + $0x40] sm:$0xff]
    %v794 = vld [vmem:[#allocation9 + $0x48] sm:$0xff]
    %v795 = vld [vmem:[#allocation9 + $0x50] sm:$0xff]
    %v796 = vld [vmem:[#allocation9 + $0x58] sm:$0xff]
    %v797 = vld [vmem:[#allocation9 + $0x60] sm:$0xff]
    %v798 = vld [vmem:[#allocation9 + $0x68] sm:$0xff]
    %v799 = vld [vmem:[#allocation9 + $0x70] sm:$0xff]
    %v800 = vld [vmem:[#allocation9 + $0x78] sm:$0xff]
    %801 = vmatprep.subr.mxu0 0.0
    %802 = vmatpush1.msra.mxu0 %v800
    %803 = vmatprep.subr.mxu0 0.0
    %804 = vmatpush1.msra.mxu0 %v799
    %805 = vmatprep.subr.mxu0 0.0
    %806 = vmatpush1.msra.mxu0 %v798
    %807 = vmatprep.subr.mxu0 0.0
    %808 = vmatpush1.msra.mxu0 %v797
    %809 = vmatprep.subr.mxu0 0.0
    %810 = vmatpush1.msra.mxu0 %v796
    %811 = vmatprep.subr.mxu0 0.0
    %812 = vmatpush1.msra.mxu0 %v795
    %813 = vmatprep.subr.mxu0 0.0
    %814 = vmatpush1.msra.mxu0 %v794
    %815 = vmatprep.subr.mxu0 0.0
    %816 = vmatpush1.msra.mxu0 %v793
    %817 = vmatprep.subr.mxu0 0.0
    %818 = vmatpush1.msra.mxu0 %v792
    %819 = vmatprep.subr.mxu0 0.0
    %820 = vmatpush1.msra.mxu0 %v791
    %821 = vmatprep.subr.mxu0 0.0
    %822 = vmatpush1.msra.mxu0 %v790
    %823 = vmatprep.subr.mxu0 0.0
    %824 = vmatpush1.msra.mxu0 %v789
    %825 = vmatprep.subr.mxu0 0.0
    %826 = vmatpush1.msra.mxu0 %v788
    %827 = vmatprep.subr.mxu0 0.0
    %828 = vmatpush1.msra.mxu0 %v787
    %829 = vmatprep.subr.mxu0 0.0
    %830 = vmatpush1.msra.mxu0 %v786
    %831 = vmatprep.subr.mxu0 0.0
    %832 = vmatpush1.msra.mxu0 %v785
    %833 = vmatprep.subr.mxu0 0.0
    %834 = vmatpush2.msra.mxu0 0.0
    %835 = vmatprep.subr.mxu0 0.0
    %836 = vmatpush2.msra.mxu0 0.0
    %837 = vmatprep.subr.mxu0 0.0
    %838 = vmatpush2.msra.mxu0 0.0
    %839 = vmatprep.subr.mxu0 0.0
    %840 = vmatpush2.msra.mxu0 0.0
    %841 = vmatprep.subr.mxu0 0.0
    %842 = vmatpush2.msra.mxu0 0.0
    %843 = vmatprep.subr.mxu0 0.0
    %844 = vmatpush2.msra.mxu0 0.0
    %845 = vmatprep.subr.mxu0 0.0
    %846 = vmatpush2.msra.mxu0 0.0
    %847 = vmatprep.subr.mxu0 0.0
    %848 = vmatpush2.msra.mxu0 0.0
    %849 = vmatprep.subr.mxu0 0.0
    %850 = vmatpush2.msra.mxu0 0.0
    %851 = vmatprep.subr.mxu0 0.0
    %852 = vmatpush2.msra.mxu0 0.0
    %853 = vmatprep.subr.mxu0 0.0
    %854 = vmatpush2.msra.mxu0 0.0
    %855 = vmatprep.subr.mxu0 0.0
    %856 = vmatpush2.msra.mxu0 0.0
    %857 = vmatprep.subr.mxu0 0.0
    %858 = vmatpush2.msra.mxu0 0.0
    %859 = vmatprep.subr.mxu0 0.0
    %860 = vmatpush2.msra.mxu0 0.0
    %861 = vmatprep.subr.mxu0 0.0
    %862 = vmatpush2.msra.mxu0 0.0
    %863 = vmatprep.subr.mxu0 0.0
    %864 = vmatpush2.msra.mxu0 0.0
    %865 = vmatprep.mubr.f32.mxu0 0.0
    %866 = vmatmul.mubr.f32.gmra.mxu0 %v779
    %v867 = vpop.f32.mrf.mxu0
    %v868 = vadd.f32 0.0, %v867
    %v869 = vpop.f32.mrf.mxu0
    %870 = vdwg.mxu0
    %v872 = vsel %vm167, %v783, 0
    %874 = vmatprep.subr.mxu0 0.0
    %875 = vmatpush1.msra.mxu0 0.0
    %876 = vmatprep.subr.mxu0 0.0
    %877 = vmatpush1.msra.mxu0 0.0
    %878 = vmatprep.subr.mxu0 0.0
    %879 = vmatpush1.msra.mxu0 0.0
    %880 = vmatprep.subr.mxu0 0.0
    %881 = vmatpush1.msra.mxu0 0.0
    %882 = vmatprep.subr.mxu0 0.0
    %883 = vmatpush1.msra.mxu0 0.0
    %884 = vmatprep.subr.mxu0 0.0
    %885 = vmatpush1.msra.mxu0 0.0
    %886 = vmatprep.subr.mxu0 0.0
    %887 = vmatpush1.msra.mxu0 0.0
    %888 = vmatprep.subr.mxu0 0.0
    %889 = vmatpush1.msra.mxu0 0.0
    %890 = vmatprep.subr.mxu0 0.0
    %891 = vmatpush1.msra.mxu0 0.0
    %892 = vmatprep.subr.mxu0 0.0
    %893 = vmatpush1.msra.mxu0 0.0
    %894 = vmatprep.subr.mxu0 0.0
    %895 = vmatpush1.msra.mxu0 0.0
    %896 = vmatprep.subr.mxu0 0.0
    %897 = vmatpush1.msra.mxu0 0.0
    %898 = vmatprep.subr.mxu0 0.0
    %899 = vmatpush1.msra.mxu0 0.0
    %900 = vmatprep.subr.mxu0 0.0
    %901 = vmatpush1.msra.mxu0 0.0
    %902 = vmatprep.subr.mxu0 0.0
    %903 = vmatpush1.msra.mxu0 0.0
    %904 = vmatprep.subr.mxu0 0.0
    %905 = vmatpush1.msra.mxu0 %v784
    %906 = vmatprep.subr.mxu0 0.0
    %907 = vmatpush2.msra.mxu0 0.0
    %908 = vmatprep.subr.mxu0 0.0
    %909 = vmatpush2.msra.mxu0 0.0
    %910 = vmatprep.subr.mxu0 0.0
    %911 = vmatpush2.msra.mxu0 0.0
    %912 = vmatprep.subr.mxu0 0.0
    %913 = vmatpush2.msra.mxu0 0.0
    %914 = vmatprep.subr.mxu0 0.0
    %915 = vmatpush2.msra.mxu0 0.0
    %916 = vmatprep.subr.mxu0 0.0
    %917 = vmatpush2.msra.mxu0 0.0
    %918 = vmatprep.subr.mxu0 0.0
    %919 = vmatpush2.msra.mxu0 0.0
    %920 = vmatprep.subr.mxu0 0.0
    %921 = vmatpush2.msra.mxu0 0.0
    %922 = vmatprep.subr.mxu0 0.0
    %923 = vmatpush2.msra.mxu0 0.0
    %924 = vmatprep.subr.mxu0 0.0
    %925 = vmatpush2.msra.mxu0 0.0
    %926 = vmatprep.subr.mxu0 0.0
    %927 = vmatpush2.msra.mxu0 0.0
    %928 = vmatprep.subr.mxu0 0.0
    %929 = vmatpush2.msra.mxu0 0.0
    %930 = vmatprep.subr.mxu0 0.0
    %931 = vmatpush2.msra.mxu0 0.0
    %932 = vmatprep.subr.mxu0 0.0
    %933 = vmatpush2.msra.mxu0 0.0
    %934 = vmatprep.subr.mxu0 0.0
    %935 = vmatpush2.msra.mxu0 0.0
    %936 = vmatprep.subr.mxu0 0.0
    %937 = vmatpush2.msra.mxu0 0.0
    %938 = vmatprep.mubr.f32.mxu0 0.0
    %939 = vmatmul.mubr.f32.gmra.mxu0 %v872
    %v940 = vpop.f32.mrf.mxu0
    %v941 = vadd.f32 %v868, %v940
    %v942 = vpop.f32.mrf.mxu0
    %943 = vdwg.mxu0
    %v944 = vld [vmem:[%s3] sm:$0x1]
    %v946 = vlaneseq
    %v947 = vshrl.u32 %v946, 7
    %v948 = vsub.s32 0, %v947
    %v949 = vrot.slane %v944, %v948
    %v951 = vadd.f32 %v941, %v949
    %v952 = vmax.f32 %v951, 0.0
    %v953 = vmul.f32 %v779, 0.9
    %v954 = vmul.f32 %v952, 0.1
    %v955 = vadd.f32 %v953, %v954
    %s956 = scalar_lea.vmem [#allocation11], 32
    %957 = vst [vmem:[%s956] sm:$0xff] %v955
    %s958 = scalar_lea.vmem [#allocation3], 40
    %v959 = vld [vmem:[%s958] sm:$0xff]
    %v960 = vld [vmem:[#allocation8] sm:$0xff]
    %v961 = vld [vmem:[#allocation9] sm:$0xff]
    %v962 = vld [vmem:[#allocation9 + $0x8] sm:$0xff]
    %v963 = vld [vmem:[#allocation9 + $0x10] sm:$0xff]
    %v964 = vld [vmem:[#allocation9 + $0x18] sm:$0xff]
    %v965 = vld [vmem:[#allocation9 + $0x20] sm:$0xff]
    %v966 = vld [vmem:[#allocation9 + $0x28] sm:$0xff]
    %v967 = vld [vmem:[#allocation9 + $0x30] sm:$0xff]
    %v968 = vld [vmem:[#allocation9 + $0x38] sm:$0xff]
    %v969 = vld [vmem:[#allocation9 + $0x40] sm:$0xff]
    %v970 = vld [vmem:[#allocation9 + $0x48] sm:$0xff]
    %v971 = vld [vmem:[#allocation9 + $0x50] sm:$0xff]
    %v972 = vld [vmem:[#allocation9 + $0x58] sm:$0xff]
    %v973 = vld [vmem:[#allocation9 + $0x60] sm:$0xff]
    %v974 = vld [vmem:[#allocation9 + $0x68] sm:$0xff]
    %v975 = vld [vmem:[#allocation9 + $0x70] sm:$0xff]
    %v976 = vld [vmem:[#allocation9 + $0x78] sm:$0xff]
    %977 = vmatprep.subr.mxu0 0.0
    %978 = vmatpush1.msra.mxu0 %v976
    %979 = vmatprep.subr.mxu0 0.0
    %980 = vmatpush1.msra.mxu0 %v975
    %981 = vmatprep.subr.mxu0 0.0
    %982 = vmatpush1.msra.mxu0 %v974
    %983 = vmatprep.subr.mxu0 0.0
    %984 = vmatpush1.msra.mxu0 %v973
    %985 = vmatprep.subr.mxu0 0.0
    %986 = vmatpush1.msra.mxu0 %v972
    %987 = vmatprep.subr.mxu0 0.0
    %988 = vmatpush1.msra.mxu0 %v971
    %989 = vmatprep.subr.mxu0 0.0
    %990 = vmatpush1.msra.mxu0 %v970
    %991 = vmatprep.subr.mxu0 0.0
    %992 = vmatpush1.msra.mxu0 %v969
    %993 = vmatprep.subr.mxu0 0.0
    %994 = vmatpush1.msra.mxu0 %v968
    %995 = vmatprep.subr.mxu0 0.0
    %996 = vmatpush1.msra.mxu0 %v967
    %997 = vmatprep.subr.mxu0 0.0
    %998 = vmatpush1.msra.mxu0 %v966
    %999 = vmatprep.subr.mxu0 0.0
    %1000 = vmatpush1.msra.mxu0 %v965
    %1001 = vmatprep.subr.mxu0 0.0
    %1002 = vmatpush1.msra.mxu0 %v964
    %1003 = vmatprep.subr.mxu0 0.0
    %1004 = vmatpush1.msra.mxu0 %v963
    %1005 = vmatprep.subr.mxu0 0.0
    %1006 = vmatpush1.msra.mxu0 %v962
    %1007 = vmatprep.subr.mxu0 0.0
    %1008 = vmatpush1.msra.mxu0 %v961
    %1009 = vmatprep.subr.mxu0 0.0
    %1010 = vmatpush2.msra.mxu0 0.0
    %1011 = vmatprep.subr.mxu0 0.0
    %1012 = vmatpush2.msra.mxu0 0.0
    %1013 = vmatprep.subr.mxu0 0.0
    %1014 = vmatpush2.msra.mxu0 0.0
    %1015 = vmatprep.subr.mxu0 0.0
    %1016 = vmatpush2.msra.mxu0 0.0
    %1017 = vmatprep.subr.mxu0 0.0
    %1018 = vmatpush2.msra.mxu0 0.0
    %1019 = vmatprep.subr.mxu0 0.0
    %1020 = vmatpush2.msra.mxu0 0.0
    %1021 = vmatprep.subr.mxu0 0.0
    %1022 = vmatpush2.msra.mxu0 0.0
    %1023 = vmatprep.subr.mxu0 0.0
    %1024 = vmatpush2.msra.mxu0 0.0
    %1025 = vmatprep.subr.mxu0 0.0
    %1026 = vmatpush2.msra.mxu0 0.0
    %1027 = vmatprep.subr.mxu0 0.0
    %1028 = vmatpush2.msra.mxu0 0.0
    %1029 = vmatprep.subr.mxu0 0.0
    %1030 = vmatpush2.msra.mxu0 0.0
    %1031 = vmatprep.subr.mxu0 0.0
    %1032 = vmatpush2.msra.mxu0 0.0
    %1033 = vmatprep.subr.mxu0 0.0
    %1034 = vmatpush2.msra.mxu0 0.0
    %1035 = vmatprep.subr.mxu0 0.0
    %1036 = vmatpush2.msra.mxu0 0.0
    %1037 = vmatprep.subr.mxu0 0.0
    %1038 = vmatpush2.msra.mxu0 0.0
    %1039 = vmatprep.subr.mxu0 0.0
    %1040 = vmatpush2.msra.mxu0 0.0
    %1041 = vmatprep.mubr.f32.mxu0 0.0
    %1042 = vmatmul.mubr.f32.gmra.mxu0 %v955
    %v1043 = vpop.f32.mrf.mxu0
    %v1044 = vadd.f32 0.0, %v1043
    %v1045 = vpop.f32.mrf.mxu0
    %1046 = vdwg.mxu0
    %v1048 = vsel %vm167, %v959, 0
    %1050 = vmatprep.subr.mxu0 0.0
    %1051 = vmatpush1.msra.mxu0 0.0
    %1052 = vmatprep.subr.mxu0 0.0
    %1053 = vmatpush1.msra.mxu0 0.0
    %1054 = vmatprep.subr.mxu0 0.0
    %1055 = vmatpush1.msra.mxu0 0.0
    %1056 = vmatprep.subr.mxu0 0.0
    %1057 = vmatpush1.msra.mxu0 0.0
    %1058 = vmatprep.subr.mxu0 0.0
    %1059 = vmatpush1.msra.mxu0 0.0
    %1060 = vmatprep.subr.mxu0 0.0
    %1061 = vmatpush1.msra.mxu0 0.0
    %1062 = vmatprep.subr.mxu0 0.0
    %1063 = vmatpush1.msra.mxu0 0.0
    %1064 = vmatprep.subr.mxu0 0.0
    %1065 = vmatpush1.msra.mxu0 0.0
    %1066 = vmatprep.subr.mxu0 0.0
    %1067 = vmatpush1.msra.mxu0 0.0
    %1068 = vmatprep.subr.mxu0 0.0
    %1069 = vmatpush1.msra.mxu0 0.0
    %1070 = vmatprep.subr.mxu0 0.0
    %1071 = vmatpush1.msra.mxu0 0.0
    %1072 = vmatprep.subr.mxu0 0.0
    %1073 = vmatpush1.msra.mxu0 0.0
    %1074 = vmatprep.subr.mxu0 0.0
    %1075 = vmatpush1.msra.mxu0 0.0
    %1076 = vmatprep.subr.mxu0 0.0
    %1077 = vmatpush1.msra.mxu0 0.0
    %1078 = vmatprep.subr.mxu0 0.0
    %1079 = vmatpush1.msra.mxu0 0.0
    %1080 = vmatprep.subr.mxu0 0.0
    %1081 = vmatpush1.msra.mxu0 %v960
    %1082 = vmatprep.subr.mxu0 0.0
    %1083 = vmatpush2.msra.mxu0 0.0
    %1084 = vmatprep.subr.mxu0 0.0
    %1085 = vmatpush2.msra.mxu0 0.0
    %1086 = vmatprep.subr.mxu0 0.0
    %1087 = vmatpush2.msra.mxu0 0.0
    %1088 = vmatprep.subr.mxu0 0.0
    %1089 = vmatpush2.msra.mxu0 0.0
    %1090 = vmatprep.subr.mxu0 0.0
    %1091 = vmatpush2.msra.mxu0 0.0
    %1092 = vmatprep.subr.mxu0 0.0
    %1093 = vmatpush2.msra.mxu0 0.0
    %1094 = vmatprep.subr.mxu0 0.0
    %1095 = vmatpush2.msra.mxu0 0.0
    %1096 = vmatprep.subr.mxu0 0.0
    %1097 = vmatpush2.msra.mxu0 0.0
    %1098 = vmatprep.subr.mxu0 0.0
    %1099 = vmatpush2.msra.mxu0 0.0
    %1100 = vmatprep.subr.mxu0 0.0
    %1101 = vmatpush2.msra.mxu0 0.0
    %1102 = vmatprep.subr.mxu0 0.0
    %1103 = vmatpush2.msra.mxu0 0.0
    %1104 = vmatprep.subr.mxu0 0.0
    %1105 = vmatpush2.msra.mxu0 0.0
    %1106 = vmatprep.subr.mxu0 0.0
    %1107 = vmatpush2.msra.mxu0 0.0
    %1108 = vmatprep.subr.mxu0 0.0
    %1109 = vmatpush2.msra.mxu0 0.0
    %1110 = vmatprep.subr.mxu0 0.0
    %1111 = vmatpush2.msra.mxu0 0.0
    %1112 = vmatprep.subr.mxu0 0.0
    %1113 = vmatpush2.msra.mxu0 0.0
    %1114 = vmatprep.mubr.f32.mxu0 0.0
    %1115 = vmatmul.mubr.f32.gmra.mxu0 %v1048
    %v1116 = vpop.f32.mrf.mxu0
    %v1117 = vadd.f32 %v1044, %v1116
    %v1118 = vpop.f32.mrf.mxu0
    %1119 = vdwg.mxu0
    %v1120 = vld [vmem:[%s3] sm:$0x1]
    %v1122 = vlaneseq
    %v1123 = vshrl.u32 %v1122, 7
    %v1124 = vsub.s32 0, %v1123
    %v1125 = vrot.slane %v1120, %v1124
    %v1127 = vadd.f32 %v1117, %v1125
    %v1128 = vmax.f32 %v1127, 0.0
    %v1129 = vmul.f32 %v955, 0.9
    %v1130 = vmul.f32 %v1128, 0.1
    %v1131 = vadd.f32 %v1129, %v1130
    %s1132 = scalar_lea.vmem [#allocation11], 40
    %1133 = vst [vmem:[%s1132] sm:$0xff] %v1131
    %s1134 = scalar_lea.vmem [#allocation3], 48
    %v1135 = vld [vmem:[%s1134] sm:$0xff]
    %v1136 = vld [vmem:[#allocation8] sm:$0xff]
    %v1137 = vld [vmem:[#allocation9] sm:$0xff]
    %v1138 = vld [vmem:[#allocation9 + $0x8] sm:$0xff]
    %v1139 = vld [vmem:[#allocation9 + $0x10] sm:$0xff]
    %v1140 = vld [vmem:[#allocation9 + $0x18] sm:$0xff]
    %v1141 = vld [vmem:[#allocation9 + $0x20] sm:$0xff]
    %v1142 = vld [vmem:[#allocation9 + $0x28] sm:$0xff]
    %v1143 = vld [vmem:[#allocation9 + $0x30] sm:$0xff]
    %v1144 = vld [vmem:[#allocation9 + $0x38] sm:$0xff]
    %v1145 = vld [vmem:[#allocation9 + $0x40] sm:$0xff]
    %v1146 = vld [vmem:[#allocation9 + $0x48] sm:$0xff]
    %v1147 = vld [vmem:[#allocation9 + $0x50] sm:$0xff]
    %v1148 = vld [vmem:[#allocation9 + $0x58] sm:$0xff]
    %v1149 = vld [vmem:[#allocation9 + $0x60] sm:$0xff]
    %v1150 = vld [vmem:[#allocation9 + $0x68] sm:$0xff]
    %v1151 = vld [vmem:[#allocation9 + $0x70] sm:$0xff]
    %v1152 = vld [vmem:[#allocation9 + $0x78] sm:$0xff]
    %1153 = vmatprep.subr.mxu0 0.0
    %1154 = vmatpush1.msra.mxu0 %v1152
    %1155 = vmatprep.subr.mxu0 0.0
    %1156 = vmatpush1.msra.mxu0 %v1151
    %1157 = vmatprep.subr.mxu0 0.0
    %1158 = vmatpush1.msra.mxu0 %v1150
    %1159 = vmatprep.subr.mxu0 0.0
    %1160 = vmatpush1.msra.mxu0 %v1149
    %1161 = vmatprep.subr.mxu0 0.0
    %1162 = vmatpush1.msra.mxu0 %v1148
    %1163 = vmatprep.subr.mxu0 0.0
    %1164 = vmatpush1.msra.mxu0 %v1147
    %1165 = vmatprep.subr.mxu0 0.0
    %1166 = vmatpush1.msra.mxu0 %v1146
    %1167 = vmatprep.subr.mxu0 0.0
    %1168 = vmatpush1.msra.mxu0 %v1145
    %1169 = vmatprep.subr.mxu0 0.0
    %1170 = vmatpush1.msra.mxu0 %v1144
    %1171 = vmatprep.subr.mxu0 0.0
    %1172 = vmatpush1.msra.mxu0 %v1143
    %1173 = vmatprep.subr.mxu0 0.0
    %1174 = vmatpush1.msra.mxu0 %v1142
    %1175 = vmatprep.subr.mxu0 0.0
    %1176 = vmatpush1.msra.mxu0 %v1141
    %1177 = vmatprep.subr.mxu0 0.0
    %1178 = vmatpush1.msra.mxu0 %v1140
    %1179 = vmatprep.subr.mxu0 0.0
    %1180 = vmatpush1.msra.mxu0 %v1139
    %1181 = vmatprep.subr.mxu0 0.0
    %1182 = vmatpush1.msra.mxu0 %v1138
    %1183 = vmatprep.subr.mxu0 0.0
    %1184 = vmatpush1.msra.mxu0 %v1137
    %1185 = vmatprep.subr.mxu0 0.0
    %1186 = vmatpush2.msra.mxu0 0.0
    %1187 = vmatprep.subr.mxu0 0.0
    %1188 = vmatpush2.msra.mxu0 0.0
    %1189 = vmatprep.subr.mxu0 0.0
    %1190 = vmatpush2.msra.mxu0 0.0
    %1191 = vmatprep.subr.mxu0 0.0
    %1192 = vmatpush2.msra.mxu0 0.0
    %1193 = vmatprep.subr.mxu0 0.0
    %1194 = vmatpush2.msra.mxu0 0.0
    %1195 = vmatprep.subr.mxu0 0.0
    %1196 = vmatpush2.msra.mxu0 0.0
    %1197 = vmatprep.subr.mxu0 0.0
    %1198 = vmatpush2.msra.mxu0 0.0
    %1199 = vmatprep.subr.mxu0 0.0
    %1200 = vmatpush2.msra.mxu0 0.0
    %1201 = vmatprep.subr.mxu0 0.0
    %1202 = vmatpush2.msra.mxu0 0.0
    %1203 = vmatprep.subr.mxu0 0.0
    %1204 = vmatpush2.msra.mxu0 0.0
    %1205 = vmatprep.subr.mxu0 0.0
    %1206 = vmatpush2.msra.mxu0 0.0
    %1207 = vmatprep.subr.mxu0 0.0
    %1208 = vmatpush2.msra.mxu0 0.0
    %1209 = vmatprep.subr.mxu0 0.0
    %1210 = vmatpush2.msra.mxu0 0.0
    %1211 = vmatprep.subr.mxu0 0.0
    %1212 = vmatpush2.msra.mxu0 0.0
    %1213 = vmatprep.subr.mxu0 0.0
    %1214 = vmatpush2.msra.mxu0 0.0
    %1215 = vmatprep.subr.mxu0 0.0
    %1216 = vmatpush2.msra.mxu0 0.0
    %1217 = vmatprep.mubr.f32.mxu0 0.0
    %1218 = vmatmul.mubr.f32.gmra.mxu0 %v1131
    %v1219 = vpop.f32.mrf.mxu0
    %v1220 = vadd.f32 0.0, %v1219
    %v1221 = vpop.f32.mrf.mxu0
    %1222 = vdwg.mxu0
    %v1224 = vsel %vm167, %v1135, 0
    %1226 = vmatprep.subr.mxu0 0.0
    %1227 = vmatpush1.msra.mxu0 0.0
    %1228 = vmatprep.subr.mxu0 0.0
    %1229 = vmatpush1.msra.mxu0 0.0
    %1230 = vmatprep.subr.mxu0 0.0
    %1231 = vmatpush1.msra.mxu0 0.0
    %1232 = vmatprep.subr.mxu0 0.0
    %1233 = vmatpush1.msra.mxu0 0.0
    %1234 = vmatprep.subr.mxu0 0.0
    %1235 = vmatpush1.msra.mxu0 0.0
    %1236 = vmatprep.subr.mxu0 0.0
    %1237 = vmatpush1.msra.mxu0 0.0
    %1238 = vmatprep.subr.mxu0 0.0
    %1239 = vmatpush1.msra.mxu0 0.0
    %1240 = vmatprep.subr.mxu0 0.0
    %1241 = vmatpush1.msra.mxu0 0.0
    %1242 = vmatprep.subr.mxu0 0.0
    %1243 = vmatpush1.msra.mxu0 0.0
    %1244 = vmatprep.subr.mxu0 0.0
    %1245 = vmatpush1.msra.mxu0 0.0
    %1246 = vmatprep.subr.mxu0 0.0
    %1247 = vmatpush1.msra.mxu0 0.0
    %1248 = vmatprep.subr.mxu0 0.0
    %1249 = vmatpush1.msra.mxu0 0.0
    %1250 = vmatprep.subr.mxu0 0.0
    %1251 = vmatpush1.msra.mxu0 0.0
    %1252 = vmatprep.subr.mxu0 0.0
    %1253 = vmatpush1.msra.mxu0 0.0
    %1254 = vmatprep.subr.mxu0 0.0
    %1255 = vmatpush1.msra.mxu0 0.0
    %1256 = vmatprep.subr.mxu0 0.0
    %1257 = vmatpush1.msra.mxu0 %v1136
    %1258 = vmatprep.subr.mxu0 0.0
    %1259 = vmatpush2.msra.mxu0 0.0
    %1260 = vmatprep.subr.mxu0 0.0
    %1261 = vmatpush2.msra.mxu0 0.0
    %1262 = vmatprep.subr.mxu0 0.0
    %1263 = vmatpush2.msra.mxu0 0.0
    %1264 = vmatprep.subr.mxu0 0.0
    %1265 = vmatpush2.msra.mxu0 0.0
    %1266 = vmatprep.subr.mxu0 0.0
    %1267 = vmatpush2.msra.mxu0 0.0
    %1268 = vmatprep.subr.mxu0 0.0
    %1269 = vmatpush2.msra.mxu0 0.0
    %1270 = vmatprep.subr.mxu0 0.0
    %1271 = vmatpush2.msra.mxu0 0.0
    %1272 = vmatprep.subr.mxu0 0.0
    %1273 = vmatpush2.msra.mxu0 0.0
    %1274 = vmatprep.subr.mxu0 0.0
    %1275 = vmatpush2.msra.mxu0 0.0
    %1276 = vmatprep.subr.mxu0 0.0
    %1277 = vmatpush2.msra.mxu0 0.0
    %1278 = vmatprep.subr.mxu0 0.0
    %1279 = vmatpush2.msra.mxu0 0.0
    %1280 = vmatprep.subr.mxu0 0.0
    %1281 = vmatpush2.msra.mxu0 0.0
    %1282 = vmatprep.subr.mxu0 0.0
    %1283 = vmatpush2.msra.mxu0 0.0
    %1284 = vmatprep.subr.mxu0 0.0
    %1285 = vmatpush2.msra.mxu0 0.0
    %1286 = vmatprep.subr.mxu0 0.0
    %1287 = vmatpush2.msra.mxu0 0.0
    %1288 = vmatprep.subr.mxu0 0.0
    %1289 = vmatpush2.msra.mxu0 0.0
    %1290 = vmatprep.mubr.f32.mxu0 0.0
    %1291 = vmatmul.mubr.f32.gmra.mxu0 %v1224
    %v1292 = vpop.f32.mrf.mxu0
    %v1293 = vadd.f32 %v1220, %v1292
    %v1294 = vpop.f32.mrf.mxu0
    %1295 = vdwg.mxu0
    %v1296 = vld [vmem:[%s3] sm:$0x1]
    %v1298 = vlaneseq
    %v1299 = vshrl.u32 %v1298, 7
    %v1300 = vsub.s32 0, %v1299
    %v1301 = vrot.slane %v1296, %v1300
    %v1303 = vadd.f32 %v1293, %v1301
    %v1304 = vmax.f32 %v1303, 0.0
    %v1305 = vmul.f32 %v1131, 0.9
    %v1306 = vmul.f32 %v1304, 0.1
    %v1307 = vadd.f32 %v1305, %v1306
    %s1308 = scalar_lea.vmem [#allocation11], 48
    %1309 = vst [vmem:[%s1308] sm:$0xff] %v1307
    %s1310 = scalar_lea.vmem [#allocation3], 56
    %v1311 = vld [vmem:[%s1310] sm:$0xff]
    %v1312 = vld [vmem:[#allocation8] sm:$0xff]
    %v1313 = vld [vmem:[#allocation9] sm:$0xff]
    %v1314 = vld [vmem:[#allocation9 + $0x8] sm:$0xff]
    %v1315 = vld [vmem:[#allocation9 + $0x10] sm:$0xff]
    %v1316 = vld [vmem:[#allocation9 + $0x18] sm:$0xff]
    %v1317 = vld [vmem:[#allocation9 + $0x20] sm:$0xff]
    %v1318 = vld [vmem:[#allocation9 + $0x28] sm:$0xff]
    %v1319 = vld [vmem:[#allocation9 + $0x30] sm:$0xff]
    %v1320 = vld [vmem:[#allocation9 + $0x38] sm:$0xff]
    %v1321 = vld [vmem:[#allocation9 + $0x40] sm:$0xff]
    %v1322 = vld [vmem:[#allocation9 + $0x48] sm:$0xff]
    %v1323 = vld [vmem:[#allocation9 + $0x50] sm:$0xff]
    %v1324 = vld [vmem:[#allocation9 + $0x58] sm:$0xff]
    %v1325 = vld [vmem:[#allocation9 + $0x60] sm:$0xff]
    %v1326 = vld [vmem:[#allocation9 + $0x68] sm:$0xff]
    %v1327 = vld [vmem:[#allocation9 + $0x70] sm:$0xff]
    %v1328 = vld [vmem:[#allocation9 + $0x78] sm:$0xff]
    %1329 = vmatprep.subr.mxu0 0.0
    %1330 = vmatpush1.msra.mxu0 %v1328
    %1331 = vmatprep.subr.mxu0 0.0
    %1332 = vmatpush1.msra.mxu0 %v1327
    %1333 = vmatprep.subr.mxu0 0.0
    %1334 = vmatpush1.msra.mxu0 %v1326
    %1335 = vmatprep.subr.mxu0 0.0
    %1336 = vmatpush1.msra.mxu0 %v1325
    %1337 = vmatprep.subr.mxu0 0.0
    %1338 = vmatpush1.msra.mxu0 %v1324
    %1339 = vmatprep.subr.mxu0 0.0
    %1340 = vmatpush1.msra.mxu0 %v1323
    %1341 = vmatprep.subr.mxu0 0.0
    %1342 = vmatpush1.msra.mxu0 %v1322
    %1343 = vmatprep.subr.mxu0 0.0
    %1344 = vmatpush1.msra.mxu0 %v1321
    %1345 = vmatprep.subr.mxu0 0.0
    %1346 = vmatpush1.msra.mxu0 %v1320
    %1347 = vmatprep.subr.mxu0 0.0
    %1348 = vmatpush1.msra.mxu0 %v1319
    %1349 = vmatprep.subr.mxu0 0.0
    %1350 = vmatpush1.msra.mxu0 %v1318
    %1351 = vmatprep.subr.mxu0 0.0
    %1352 = vmatpush1.msra.mxu0 %v1317
    %1353 = vmatprep.subr.mxu0 0.0
    %1354 = vmatpush1.msra.mxu0 %v1316
    %1355 = vmatprep.subr.mxu0 0.0
    %1356 = vmatpush1.msra.mxu0 %v1315
    %1357 = vmatprep.subr.mxu0 0.0
    %1358 = vmatpush1.msra.mxu0 %v1314
    %1359 = vmatprep.subr.mxu0 0.0
    %1360 = vmatpush1.msra.mxu0 %v1313
    %1361 = vmatprep.subr.mxu0 0.0
    %1362 = vmatpush2.msra.mxu0 0.0
    %1363 = vmatprep.subr.mxu0 0.0
    %1364 = vmatpush2.msra.mxu0 0.0
    %1365 = vmatprep.subr.mxu0 0.0
    %1366 = vmatpush2.msra.mxu0 0.0
    %1367 = vmatprep.subr.mxu0 0.0
    %1368 = vmatpush2.msra.mxu0 0.0
    %1369 = vmatprep.subr.mxu0 0.0
    %1370 = vmatpush2.msra.mxu0 0.0
    %1371 = vmatprep.subr.mxu0 0.0
    %1372 = vmatpush2.msra.mxu0 0.0
    %1373 = vmatprep.subr.mxu0 0.0
    %1374 = vmatpush2.msra.mxu0 0.0
    %1375 = vmatprep.subr.mxu0 0.0
    %1376 = vmatpush2.msra.mxu0 0.0
    %1377 = vmatprep.subr.mxu0 0.0
    %1378 = vmatpush2.msra.mxu0 0.0
    %1379 = vmatprep.subr.mxu0 0.0
    %1380 = vmatpush2.msra.mxu0 0.0
    %1381 = vmatprep.subr.mxu0 0.0
    %1382 = vmatpush2.msra.mxu0 0.0
    %1383 = vmatprep.subr.mxu0 0.0
    %1384 = vmatpush2.msra.mxu0 0.0
    %1385 = vmatprep.subr.mxu0 0.0
    %1386 = vmatpush2.msra.mxu0 0.0
    %1387 = vmatprep.subr.mxu0 0.0
    %1388 = vmatpush2.msra.mxu0 0.0
    %1389 = vmatprep.subr.mxu0 0.0
    %1390 = vmatpush2.msra.mxu0 0.0
    %1391 = vmatprep.subr.mxu0 0.0
    %1392 = vmatpush2.msra.mxu0 0.0
    %1393 = vmatprep.mubr.f32.mxu0 0.0
    %1394 = vmatmul.mubr.f32.gmra.mxu0 %v1307
    %v1395 = vpop.f32.mrf.mxu0
    %v1396 = vadd.f32 0.0, %v1395
    %v1397 = vpop.f32.mrf.mxu0
    %1398 = vdwg.mxu0
    %v1400 = vsel %vm167, %v1311, 0
    %1402 = vmatprep.subr.mxu0 0.0
    %1403 = vmatpush1.msra.mxu0 0.0
    %1404 = vmatprep.subr.mxu0 0.0
    %1405 = vmatpush1.msra.mxu0 0.0
    %1406 = vmatprep.subr.mxu0 0.0
    %1407 = vmatpush1.msra.mxu0 0.0
    %1408 = vmatprep.subr.mxu0 0.0
    %1409 = vmatpush1.msra.mxu0 0.0
    %1410 = vmatprep.subr.mxu0 0.0
    %1411 = vmatpush1.msra.mxu0 0.0
    %1412 = vmatprep.subr.mxu0 0.0
    %1413 = vmatpush1.msra.mxu0 0.0
    %1414 = vmatprep.subr.mxu0 0.0
    %1415 = vmatpush1.msra.mxu0 0.0
    %1416 = vmatprep.subr.mxu0 0.0
    %1417 = vmatpush1.msra.mxu0 0.0
    %1418 = vmatprep.subr.mxu0 0.0
    %1419 = vmatpush1.msra.mxu0 0.0
    %1420 = vmatprep.subr.mxu0 0.0
    %1421 = vmatpush1.msra.mxu0 0.0
    %1422 = vmatprep.subr.mxu0 0.0
    %1423 = vmatpush1.msra.mxu0 0.0
    %1424 = vmatprep.subr.mxu0 0.0
    %1425 = vmatpush1.msra.mxu0 0.0
    %1426 = vmatprep.subr.mxu0 0.0
    %1427 = vmatpush1.msra.mxu0 0.0
    %1428 = vmatprep.subr.mxu0 0.0
    %1429 = vmatpush1.msra.mxu0 0.0
    %1430 = vmatprep.subr.mxu0 0.0
    %1431 = vmatpush1.msra.mxu0 0.0
    %1432 = vmatprep.subr.mxu0 0.0
    %1433 = vmatpush1.msra.mxu0 %v1312
    %1434 = vmatprep.subr.mxu0 0.0
    %1435 = vmatpush2.msra.mxu0 0.0
    %1436 = vmatprep.subr.mxu0 0.0
    %1437 = vmatpush2.msra.mxu0 0.0
    %1438 = vmatprep.subr.mxu0 0.0
    %1439 = vmatpush2.msra.mxu0 0.0
    %1440 = vmatprep.subr.mxu0 0.0
    %1441 = vmatpush2.msra.mxu0 0.0
    %1442 = vmatprep.subr.mxu0 0.0
    %1443 = vmatpush2.msra.mxu0 0.0
    %1444 = vmatprep.subr.mxu0 0.0
    %1445 = vmatpush2.msra.mxu0 0.0
    %1446 = vmatprep.subr.mxu0 0.0
    %1447 = vmatpush2.msra.mxu0 0.0
    %1448 = vmatprep.subr.mxu0 0.0
    %1449 = vmatpush2.msra.mxu0 0.0
    %1450 = vmatprep.subr.mxu0 0.0
    %1451 = vmatpush2.msra.mxu0 0.0
    %1452 = vmatprep.subr.mxu0 0.0
    %1453 = vmatpush2.msra.mxu0 0.0
    %1454 = vmatprep.subr.mxu0 0.0
    %1455 = vmatpush2.msra.mxu0 0.0
    %1456 = vmatprep.subr.mxu0 0.0
    %1457 = vmatpush2.msra.mxu0 0.0
    %1458 = vmatprep.subr.mxu0 0.0
    %1459 = vmatpush2.msra.mxu0 0.0
    %1460 = vmatprep.subr.mxu0 0.0
    %1461 = vmatpush2.msra.mxu0 0.0
    %1462 = vmatprep.subr.mxu0 0.0
    %1463 = vmatpush2.msra.mxu0 0.0
    %1464 = vmatprep.subr.mxu0 0.0
    %1465 = vmatpush2.msra.mxu0 0.0
    %1466 = vmatprep.mubr.f32.mxu0 0.0
    %1467 = vmatmul.mubr.f32.gmra.mxu0 %v1400
    %v1468 = vpop.f32.mrf.mxu0
    %v1469 = vadd.f32 %v1396, %v1468
    %v1470 = vpop.f32.mrf.mxu0
    %1471 = vdwg.mxu0
    %v1472 = vld [vmem:[%s3] sm:$0x1]
    %v1474 = vlaneseq
    %v1475 = vshrl.u32 %v1474, 7
    %v1476 = vsub.s32 0, %v1475
    %v1477 = vrot.slane %v1472, %v1476
    %v1479 = vadd.f32 %v1469, %v1477
    %v1480 = vmax.f32 %v1479, 0.0
    %v1481 = vmul.f32 %v1307, 0.9
    %v1482 = vmul.f32 %v1480, 0.1
    %v1483 = vadd.f32 %v1481, %v1482
    %s1484 = scalar_lea.vmem [#allocation11], 56
    %1485 = vst [vmem:[%s1484] sm:$0xff] %v1483
    %1486 = vst [vmem:[#allocation2] sm:$0xff] %v1483
    // Predicated region
    $region42: #{tpu_custom_call.1} parent=1 // pred_check
      _
    $region43: #{tpu_custom_call.1} parent=1 // pred_check_branch
      %1488 = sbr.rel (0) target = $region45
    $region44: #{tpu_custom_call.1} parent=1 // pred_region
      %s1490 = ssub.s32 1024, 1024
      %1491 = vsyncadd [#allocation5], %s1490
      %s1492 = sshll.u32 [#allocation11], 4
      %s1493 = int_to_ptr.vmem [resolvable:$true] %s1492
      %1498 = dma.vmem_to_hbm [thread:$0]  %s1493, 1024, %s5, [#allocation5], 128, 128, 8
    $region45: #{tpu_custom_call.1} parent=1 // pred_fallthru
      _
    // Predicated region
    $region46: #{tpu_custom_call.1} parent=1 // pred_check
      _
    $region47: #{tpu_custom_call.1} parent=1 // pred_check_branch
      %1500 = sbr.rel (0) target = $region49
    $region48: #{tpu_custom_call.1} parent=1 // pred_region
      %1501 = dma.done [#allocation5], 1024
    $region49: #{tpu_custom_call.1} parent=1 // pred_fallthru
      _
    %1502 = vsyncpa [#allocation4], 1
    %1503 = vsyncpa [#allocation7], 1
    %1504 = vsyncpa [#allocation10], 1
    %1505 = vsyncpa [#allocation5], 1

</llo_original>
